<compile_context>
chip_gen: v7x
topology: tpu7x:2x2x1
jax: 0.10.0
libtpu: 0.0.40
codegen_flags: <defaults>
</compile_context>

<pallas_src>
import jax
import jax.numpy as jnp
from jax.experimental import pallas as pl
from jax.experimental.pallas import tpu as pltpu

IN_DIM = 92
HID = 1024
OUT_DIM = 1
NEG_SLOPE = 0.01       # PyTorch F.leaky_relu default
MAX_TB = 512           # fits default scoped VMEM on v5e/v6e/v7x


def mlp_kernel(x_ref, w1_ref, b1_ref, w2_ref, b2_ref, w3_ref, b3_ref, o_ref):
    # fc1: in-kernel bf16 cast of the f32 x tile, bf16 MXU matmul (K=92,
    # compiler masks the padded contraction rows), f32 accumulate + bias + ReLU
    x_bf = x_ref[...].astype(jnp.bfloat16)                       # (tb, 92)
    h1 = jnp.dot(x_bf, w1_ref[...], preferred_element_type=jnp.float32)
    h1 = jnp.maximum(h1 + b1_ref[...], 0.0)
    # do1: identity (eval mode)

    # fc2: bf16 MXU matmul, f32 accumulate + bias + ReLU
    h2 = jnp.dot(h1.astype(jnp.bfloat16), w2_ref[...],
                 preferred_element_type=jnp.float32)
    h2 = jnp.maximum(h2 + b2_ref[...], 0.0)
    # do2: identity (eval mode)

    # fc3 (out_features = 1): VPU multiply + lane reduction instead of an
    # N=1 MXU matmul; w3 is a (1, 1024) row broadcasting over (tb, 1024).
    y = jnp.sum(h2 * w3_ref[...], axis=-1, keepdims=True) + b3_ref[...]

    # LeakyReLU (negative_slope = 0.01)
    o_ref[...] = jnp.where(y >= 0.0, y, NEG_SLOPE * y).astype(o_ref.dtype)


def prepare_params(params):
    """One-time parameter prep (hoisted out of the per-call path).

    params = (w1, b1, w2, b2, w3, b3) with w* stored as (in, out), f32.
    Returns kernel-ready tensors: bf16 weights for the MXU, f32 biases,
    and w3 laid out as a (1, 1024) f32 row for the VPU reduction.
    """
    w1, b1, w2, b2, w3, b3 = params
    return (
        w1.astype(jnp.bfloat16),                       # (92, 1024)   bf16
        b1.reshape(1, HID).astype(jnp.float32),        # (1, 1024)    f32
        w2.astype(jnp.bfloat16),                       # (1024, 1024) bf16
        b2.reshape(1, HID).astype(jnp.float32),        # (1, 1024)    f32
        w3.reshape(1, HID).astype(jnp.float32),        # (1, 1024)    f32
        b3.reshape(1, OUT_DIM).astype(jnp.float32),    # (1, 1)       f32
    )


def _round_up(n, m):
    return ((n + m - 1) // m) * m


def _choose_tb(B):
    # >=2 grid steps for medium batches (keeps both v7x TCs busy), capped at
    # MAX_TB so intermediates fit default scoped VMEM; multiple of 16 for
    # bf16 sublane packing / (tb,1) f32 output tiling.
    tb = _round_up(max(pl.cdiv(B, 2), 1), 16)
    return max(16, min(MAX_TB, tb))


def net_forward(x, prepared_params, *, tb=None):
    """x: (B, 92) float32. prepared_params: output of prepare_params().
    Returns (B, 1) float32."""
    w1_bf, b1, w2_bf, b2, w3_row, b3 = prepared_params
    B = x.shape[0]
    if tb is None:
        tb = _choose_tb(B)

    # single fused batch pad (only op touching x outside the kernel)
    Bp = _round_up(B, tb)
    if Bp != B:
        x = jnp.pad(x, ((0, Bp - B), (0, 0)))

    const = lambda i: (0, 0)   # grid-invariant blocks (fetched once)
    grid = (Bp // tb,)

    out = pl.pallas_call(
        mlp_kernel,
        out_shape=jax.ShapeDtypeStruct((Bp, OUT_DIM), jnp.float32),
        grid_spec=pltpu.PrefetchScalarGridSpec(
            num_scalar_prefetch=0,
            grid=grid,
            in_specs=[
                pl.BlockSpec((tb, IN_DIM), lambda i: (i, 0)),           # x (f32)
                pl.BlockSpec((IN_DIM, HID), const,
                             pipeline_mode=pl.Buffered(1)),             # w1 (bf16)
                pl.BlockSpec((1, HID), const,
                             pipeline_mode=pl.Buffered(1)),             # b1 (f32)
                pl.BlockSpec((HID, HID), const,
                             pipeline_mode=pl.Buffered(1)),             # w2 (bf16)
                pl.BlockSpec((1, HID), const,
                             pipeline_mode=pl.Buffered(1)),             # b2 (f32)
                pl.BlockSpec((1, HID), const,
                             pipeline_mode=pl.Buffered(1)),             # w3 row (f32)
                pl.BlockSpec((1, OUT_DIM), const,
                             pipeline_mode=pl.Buffered(1)),             # b3 (f32)
            ],
            out_specs=pl.BlockSpec((tb, OUT_DIM), lambda i: (i, 0)),
        ),
        compiler_params=pltpu.CompilerParams(
            dimension_semantics=("parallel",),   # batch axis shards across TCs
        ),
    )(x, w1_bf, b1, w2_bf, b2, w3_row, b3)

    return out[:B]


def init_params(key):
    """Deterministic init mimicking PyTorch nn.Linear default U(+-1/sqrt(fan_in))."""
    ks = jax.random.split(key, 6)

    def linear(kw, kb, fan_in, fan_out):
        bound = 1.0 / jnp.sqrt(jnp.float32(fan_in))
        # stored as (in, out) so the kernel computes x @ W
        w = jax.random.uniform(kw, (fan_in, fan_out), jnp.float32, -bound, bound)
        b = jax.random.uniform(kb, (1, fan_out), jnp.float32, -bound, bound)
        return w, b

    w1, b1 = linear(ks[0], ks[1], IN_DIM, HID)
    w2, b2 = linear(ks[2], ks[3], HID, HID)
    w3, b3 = linear(ks[4], ks[5], HID, OUT_DIM)
    return (w1, b1, w2, b2, w3, b3)


def net_forward_ref(x, params):
    """Pure-JAX reference mirroring the kernel's numerics (bf16 MXU inputs, f32 acc)."""
    w1, b1, w2, b2, w3, b3 = params
    h1 = jnp.dot(x.astype(jnp.bfloat16), w1.astype(jnp.bfloat16),
                 preferred_element_type=jnp.float32) + b1.reshape(1, HID)
    h1 = jnp.maximum(h1, 0.0)
    h2 = jnp.dot(h1.astype(jnp.bfloat16), w2.astype(jnp.bfloat16),
                 preferred_element_type=jnp.float32) + b2.reshape(1, HID)
    h2 = jnp.maximum(h2, 0.0)
    y = jnp.sum(h2 * w3.reshape(1, HID), axis=-1, keepdims=True) + b3.reshape(1, OUT_DIM)
    return jnp.where(y >= 0.0, y, NEG_SLOPE * y)


if __name__ == "__main__":
    key = jax.random.PRNGKey(0)
    k_param, k_x = jax.random.split(key)

    params = init_params(k_param)
    prepared = prepare_params(params)        # one-time weight prep (hoisted)

    B = 8
    x = jax.random.normal(k_x, (B, IN_DIM), jnp.float32)

    out = net_forward(x, prepared)
    out = jax.block_until_ready(out)

    ref = net_forward_ref(x, params)
    assert out.shape == (B, OUT_DIM)
    assert jnp.allclose(out, ref, atol=1e-2, rtol=1e-2), "mismatch vs JAX reference"

    print("KERNEL_OK")
</pallas_src>

<mosaic_0001>
module attributes {stable_mosaic.version = 11 : i64} {
  func.func @mlp_kernel(%arg0: i32, %arg1: memref<16x92xf32, #tpu.memory_space<vmem>>, %arg2: memref<92x1024xbf16, #tpu.memory_space<vmem>>, %arg3: memref<1x1024xf32, #tpu.memory_space<vmem>>, %arg4: memref<1024x1024xbf16, #tpu.memory_space<vmem>>, %arg5: memref<1x1024xf32, #tpu.memory_space<vmem>>, %arg6: memref<1x1024xf32, #tpu.memory_space<vmem>>, %arg7: memref<1x1xf32, #tpu.memory_space<vmem>>, %arg8: memref<16x1xf32, #tpu.memory_space<vmem>>) attributes {dimension_semantics = [#tpu.dimension_semantics<parallel>], iteration_bounds = array<i64: 1>, scalar_prefetch = 0 : i64, scratch_operands = 0 : i64, tpu.core_type = #tpu.core_type<tc>, window_params = [{transform_indices = @transform_0, window_bounds = array<i64: 16, 92>}, {pipeline_mode = #tpu.pipeline_mode<synchronous>, transform_indices = @transform_1, window_bounds = array<i64: 92, 1024>}, {pipeline_mode = #tpu.pipeline_mode<synchronous>, transform_indices = @transform_2, window_bounds = array<i64: 1, 1024>}, {pipeline_mode = #tpu.pipeline_mode<synchronous>, transform_indices = @transform_3, window_bounds = array<i64: 1024, 1024>}, {pipeline_mode = #tpu.pipeline_mode<synchronous>, transform_indices = @transform_4, window_bounds = array<i64: 1, 1024>}, {pipeline_mode = #tpu.pipeline_mode<synchronous>, transform_indices = @transform_5, window_bounds = array<i64: 1, 1024>}, {pipeline_mode = #tpu.pipeline_mode<synchronous>, transform_indices = @transform_6, window_bounds = array<i64: 1, 1>}, {transform_indices = @transform_7, window_bounds = array<i64: 16, 1>}]} {
    %c0 = arith.constant 0 : index
    %c0_0 = arith.constant 0 : index
    %0 = vector.load %arg1[%c0, %c0_0] : memref<16x92xf32, #tpu.memory_space<vmem>>, vector<16x92xf32>
    %1 = arith.truncf %0 : vector<16x92xf32> to vector<16x92xbf16>
    %c0_1 = arith.constant 0 : index
    %c0_2 = arith.constant 0 : index
    %2 = vector.load %arg2[%c0_1, %c0_2] : memref<92x1024xbf16, #tpu.memory_space<vmem>>, vector<92x1024xbf16>
    %cst = arith.constant dense<0.000000e+00> : vector<16x1024xf32>
    %3 = tpu.matmul %1, %2, %cst {dimension_numbers = #tpu.dot_dimension_numbers<[1], [0], [0], [1], [0, 0, 1, 1], [], []>} : vector<16x92xbf16>, vector<92x1024xbf16>, vector<16x1024xf32> -> vector<16x1024xf32>
    %c0_3 = arith.constant 0 : index
    %c0_4 = arith.constant 0 : index
    %4 = vector.load %arg3[%c0_3, %c0_4] : memref<1x1024xf32, #tpu.memory_space<vmem>>, vector<1x1024xf32>
    %5 = vector.broadcast %4 : vector<1x1024xf32> to vector<16x1024xf32>
    %6 = arith.addf %3, %5 : vector<16x1024xf32>
    %cst_5 = arith.constant 0.000000e+00 : f32
    %7 = vector.broadcast %cst_5 : f32 to vector<16x1024xf32>
    %8 = arith.maximumf %6, %7 : vector<16x1024xf32>
    %9 = arith.truncf %8 : vector<16x1024xf32> to vector<16x1024xbf16>
    %c0_6 = arith.constant 0 : index
    %c0_7 = arith.constant 0 : index
    %10 = vector.load %arg4[%c0_6, %c0_7] : memref<1024x1024xbf16, #tpu.memory_space<vmem>>, vector<1024x1024xbf16>
    %cst_8 = arith.constant dense<0.000000e+00> : vector<16x1024xf32>
    %11 = tpu.matmul %9, %10, %cst_8 {dimension_numbers = #tpu.dot_dimension_numbers<[1], [0], [0], [1], [0, 0, 1, 1], [], []>} : vector<16x1024xbf16>, vector<1024x1024xbf16>, vector<16x1024xf32> -> vector<16x1024xf32>
    %c0_9 = arith.constant 0 : index
    %c0_10 = arith.constant 0 : index
    %12 = vector.load %arg5[%c0_9, %c0_10] : memref<1x1024xf32, #tpu.memory_space<vmem>>, vector<1x1024xf32>
    %13 = vector.broadcast %12 : vector<1x1024xf32> to vector<16x1024xf32>
    %14 = arith.addf %11, %13 : vector<16x1024xf32>
    %cst_11 = arith.constant 0.000000e+00 : f32
    %15 = vector.broadcast %cst_11 : f32 to vector<16x1024xf32>
    %16 = arith.maximumf %14, %15 : vector<16x1024xf32>
    %c0_12 = arith.constant 0 : index
    %c0_13 = arith.constant 0 : index
    %17 = vector.load %arg6[%c0_12, %c0_13] : memref<1x1024xf32, #tpu.memory_space<vmem>>, vector<1x1024xf32>
    %18 = vector.broadcast %17 : vector<1x1024xf32> to vector<16x1024xf32>
    %19 = arith.mulf %16, %18 : vector<16x1024xf32>
    %cst_14 = arith.constant dense<0.000000e+00> : vector<16xf32>
    %20 = vector.multi_reduction <add>, %19, %cst_14 [1] : vector<16x1024xf32> to vector<16xf32>
    %21 = vector.shape_cast %20 : vector<16xf32> to vector<16x1xf32>
    %c0_15 = arith.constant 0 : index
    %c0_16 = arith.constant 0 : index
    %22 = vector.load %arg7[%c0_15, %c0_16] : memref<1x1xf32, #tpu.memory_space<vmem>>, vector<1x1xf32>
    %23 = vector.broadcast %22 : vector<1x1xf32> to vector<16x1xf32>
    %24 = arith.addf %21, %23 : vector<16x1xf32>
    %cst_17 = arith.constant 0.000000e+00 : f32
    %25 = vector.broadcast %cst_17 : f32 to vector<16x1xf32>
    %26 = arith.cmpf oge, %24, %25 : vector<16x1xf32>
    %cst_18 = arith.constant 0.00999999977 : f32
    %27 = vector.broadcast %cst_18 : f32 to vector<16x1xf32>
    %28 = arith.mulf %27, %24 : vector<16x1xf32>
    %29 = arith.select %26, %24, %28 : vector<16x1xi1>, vector<16x1xf32>
    %c0_19 = arith.constant 0 : index
    %c0_20 = arith.constant 0 : index
    %30 = vector.load %arg8[%c0_19, %c0_20] : memref<16x1xf32, #tpu.memory_space<vmem>>, vector<16x1xf32>
    tpu.vector_store %arg8[%c0_19, %c0_20], %29 {strides = array<i32>} : memref<16x1xf32, #tpu.memory_space<vmem>>, vector<16x1xf32>,
    return
  }
  func.func @transform_0(%arg0: i32) -> (i32, i32) {
    %c0_i32 = arith.constant 0 : i32
    %c0_i32_0 = arith.constant 0 : i32
    return %arg0, %c0_i32 : i32, i32
  }
  func.func @transform_1(%arg0: i32) -> (i32, i32) {
    %c0_i32 = arith.constant 0 : i32
    %c0_i32_0 = arith.constant 0 : i32
    %c0_i32_1 = arith.constant 0 : i32
    return %c0_i32, %c0_i32_0 : i32, i32
  }
  func.func @transform_2(%arg0: i32) -> (i32, i32) {
    %c0_i32 = arith.constant 0 : i32
    %c0_i32_0 = arith.constant 0 : i32
    %c0_i32_1 = arith.constant 0 : i32
    return %c0_i32, %c0_i32_0 : i32, i32
  }
  func.func @transform_3(%arg0: i32) -> (i32, i32) {
    %c0_i32 = arith.constant 0 : i32
    %c0_i32_0 = arith.constant 0 : i32
    %c0_i32_1 = arith.constant 0 : i32
    return %c0_i32, %c0_i32_0 : i32, i32
  }
  func.func @transform_4(%arg0: i32) -> (i32, i32) {
    %c0_i32 = arith.constant 0 : i32
    %c0_i32_0 = arith.constant 0 : i32
    %c0_i32_1 = arith.constant 0 : i32
    return %c0_i32, %c0_i32_0 : i32, i32
  }
  func.func @transform_5(%arg0: i32) -> (i32, i32) {
    %c0_i32 = arith.constant 0 : i32
    %c0_i32_0 = arith.constant 0 : i32
    %c0_i32_1 = arith.constant 0 : i32
    return %c0_i32, %c0_i32_0 : i32, i32
  }
  func.func @transform_6(%arg0: i32) -> (i32, i32) {
    %c0_i32 = arith.constant 0 : i32
    %c0_i32_0 = arith.constant 0 : i32
    %c0_i32_1 = arith.constant 0 : i32
    return %c0_i32, %c0_i32_0 : i32, i32
  }
  func.func @transform_7(%arg0: i32) -> (i32, i32) {
    %c0_i32 = arith.constant 0 : i32
    %c0_i32_0 = arith.constant 0 : i32
    return %arg0, %c0_i32 : i32, i32
  }
}

</mosaic_0001>

<llo_original>
// kernel: tpu_custom_call.1
$region0: #{tpu_custom_call.1}
  #allocation0 [shape = 'u32[]', space=smem, size = 0x4, offset = 0x4, fixed_abs, tag = 'smem constant byte address 0x4 - core index']
  #allocation1 [shape = 'u32[144,128]{1,0:T(1,128)}', space=vmem, size = 0x12000, scoped, tag = 'internal scratch']
  #allocation2 [shape = 'f32[1,1]{1,0:T(1,128)S(1)}', space=vmem, size = 0x200, scoped, tag = 'scoped memory for tpu_custom_call.1']
  %s0 = inlined_call_operand.hbm [shape: f32[16,92], index: 0, kind: input, shape index: {}]
  %s1 = inlined_call_operand.hbm [shape: bf16[92,1024], index: 1, kind: input, shape index: {}]
  %s2 = inlined_call_operand.hbm [shape: f32[1,1024], index: 2, kind: input, shape index: {}]
  %s3 = inlined_call_operand.hbm [shape: bf16[1024,1024], index: 3, kind: input, shape index: {}]
  %s4 = inlined_call_operand.hbm [shape: f32[1,1024], index: 4, kind: input, shape index: {}]
  %s5 = inlined_call_operand.hbm [shape: f32[1,1024], index: 5, kind: input, shape index: {}]
  %s6 = inlined_call_operand.<no memory space> [shape: f32[1,1], index: 6, kind: input, shape index: {}]
  %s7 = inlined_call_operand.vmem [shape: f32[16,1], index: 7, kind: output, shape index: {}]
  %s8 = sld [smem:[#allocation0]]
  $region62: #{tpu_custom_call.1} parent=0
    _
  %s10 = ssub.s32 1, %s8
  %s11 = scalar_select 0, %s10, %s8
  %v12 = vstv %s6
  %13 = vst [vmem:[#allocation2] sm:$0x1] %v12
  $region1: #{tpu_custom_call.1} parent=0
    #allocation3 [shape = 'u8[8192]{0}', space=vmem, size = 0x2000, scoped, tag = 'input window, operand 0, single buffered']
    #allocation4 [shape = 's32[1]{0}', space=sflag, size = 0x4, scoped, tag = 'scoped memory for tpu_custom_call.1']
    #allocation5 [shape = 'u8[196608]{0}', space=vmem, size = 0x30000, scoped, tag = 'input window, operand 1, single buffered']
    #allocation6 [shape = 's32[1]{0}', space=sflag, size = 0x4, scoped, tag = 'scoped memory for tpu_custom_call.1']
    #allocation7 [shape = 'u8[4096]{0}', space=vmem, size = 0x1000, scoped, tag = 'input window, operand 2, single buffered']
    #allocation8 [shape = 'u8[2097152]{0}', space=vmem, size = 0x200000, scoped, tag = 'input window, operand 3, single buffered']
    #allocation9 [shape = 's32[1]{0}', space=sflag, size = 0x4, scoped, tag = 'scoped memory for tpu_custom_call.1']
    #allocation10 [shape = 'u8[4096]{0}', space=vmem, size = 0x1000, scoped, tag = 'input window, operand 4, single buffered']
    #allocation11 [shape = 'u8[4096]{0}', space=vmem, size = 0x1000, scoped, tag = 'input window, operand 5, single buffered']
    #allocation12 [shape = 's32[1]{0}', space=sflag, size = 0x4, scoped, tag = 'scoped memory for tpu_custom_call.1']
    %14 = vsyncpa [#allocation4], 0
    %15 = vsyncpa [#allocation6], 0
    %16 = vsyncpa [#allocation9], 0
    %17 = vsyncpa [#allocation12], 0
    // Predicated region
    $region2: #{tpu_custom_call.1} parent=1 // pred_check
      _
    $region3: #{tpu_custom_call.1} parent=1 // pred_check_branch
      %19 = sbr.rel (0) target = $region5
    $region4: #{tpu_custom_call.1} parent=1 // pred_region
      %s21 = ssub.s32 256, 256
      %22 = vsyncadd [#allocation4], %s21
      %s23 = sshll.u32 [#allocation3], 4
      %s24 = int_to_ptr.vmem [resolvable:$true] %s23
      %29 = dma.hbm_to_vmem [thread:$0]  %s0, 256, %s24, [#allocation4], 128, 128, 8
    $region5: #{tpu_custom_call.1} parent=1 // pred_fallthru
      _
    // Predicated region
    $region6: #{tpu_custom_call.1} parent=1 // pred_check
      _
    $region7: #{tpu_custom_call.1} parent=1 // pred_check_branch
      %31 = sbr.rel (0) target = $region9
    $region8: #{tpu_custom_call.1} parent=1 // pred_region
      %s33 = ssub.s32 6144, 6144
      %34 = vsyncadd [#allocation6], %s33
      %s35 = sshll.u32 [#allocation5], 4
      %s36 = int_to_ptr.vmem [resolvable:$true] %s35
      %41 = dma.hbm_to_vmem [thread:$0]  %s1, 6144, %s36, [#allocation6], 512, 512, 32
    $region9: #{tpu_custom_call.1} parent=1 // pred_fallthru
      _
    // Predicated region
    $region10: #{tpu_custom_call.1} parent=1 // pred_check
      _
    $region11: #{tpu_custom_call.1} parent=1 // pred_check_branch
      %43 = sbr.rel (0) target = $region13
    $region12: #{tpu_custom_call.1} parent=1 // pred_region
      %s45 = ssub.s32 128, 128
      %46 = vsyncadd [#allocation6], %s45
      %s48 = sshll.u32 [#allocation7], 4
      %s49 = int_to_ptr.vmem [resolvable:$true] %s48
      %51 = dma.hbm_to_vmem [thread:$0]  %s2, 128, %s49, [#allocation6]
    $region13: #{tpu_custom_call.1} parent=1 // pred_fallthru
      _
    // Predicated region
    $region14: #{tpu_custom_call.1} parent=1 // pred_check
      _
    $region15: #{tpu_custom_call.1} parent=1 // pred_check_branch
      %53 = sbr.rel (0) target = $region17
    $region16: #{tpu_custom_call.1} parent=1 // pred_region
      %s55 = ssub.s32 65536, 65536
      %56 = vsyncadd [#allocation9], %s55
      %s57 = sshll.u32 [#allocation8], 4
      %s58 = int_to_ptr.vmem [resolvable:$true] %s57
      %63 = dma.hbm_to_vmem [thread:$0]  %s3, 65536, %s58, [#allocation9], 512, 512, 32
    $region17: #{tpu_custom_call.1} parent=1 // pred_fallthru
      _
    // Predicated region
    $region18: #{tpu_custom_call.1} parent=1 // pred_check
      _
    $region19: #{tpu_custom_call.1} parent=1 // pred_check_branch
      %65 = sbr.rel (0) target = $region21
    $region20: #{tpu_custom_call.1} parent=1 // pred_region
      %s67 = ssub.s32 128, 128
      %68 = vsyncadd [#allocation9], %s67
      %s70 = sshll.u32 [#allocation10], 4
      %s71 = int_to_ptr.vmem [resolvable:$true] %s70
      %73 = dma.hbm_to_vmem [thread:$0]  %s4, 128, %s71, [#allocation9]
    $region21: #{tpu_custom_call.1} parent=1 // pred_fallthru
      _
    // Predicated region
    $region22: #{tpu_custom_call.1} parent=1 // pred_check
      _
    $region23: #{tpu_custom_call.1} parent=1 // pred_check_branch
      %75 = sbr.rel (0) target = $region25
    $region24: #{tpu_custom_call.1} parent=1 // pred_region
      %s77 = ssub.s32 128, 128
      %78 = vsyncadd [#allocation12], %s77
      %s80 = sshll.u32 [#allocation11], 4
      %s81 = int_to_ptr.vmem [resolvable:$true] %s80
      %83 = dma.hbm_to_vmem [thread:$0]  %s5, 128, %s81, [#allocation12]
    $region25: #{tpu_custom_call.1} parent=1 // pred_fallthru
      _
    // Predicated region
    $region26: #{tpu_custom_call.1} parent=1 // pred_check
      _
    $region27: #{tpu_custom_call.1} parent=1 // pred_check_branch
      %85 = sbr.rel (0) target = $region29
    $region28: #{tpu_custom_call.1} parent=1 // pred_region
      _
    $region29: #{tpu_custom_call.1} parent=1 // pred_fallthru
      _
    // Predicated region
    $region30: #{tpu_custom_call.1} parent=1 // pred_check
      _
    $region31: #{tpu_custom_call.1} parent=1 // pred_check_branch
      %87 = sbr.rel (0) target = $region33
    $region32: #{tpu_custom_call.1} parent=1 // pred_region
      %88 = dma.done [#allocation4], 256
    $region33: #{tpu_custom_call.1} parent=1 // pred_fallthru
      _
    // Predicated region
    $region34: #{tpu_custom_call.1} parent=1 // pred_check
      _
    $region35: #{tpu_custom_call.1} parent=1 // pred_check_branch
      %90 = sbr.rel (0) target = $region37
    $region36: #{tpu_custom_call.1} parent=1 // pred_region
      %91 = dma.done [#allocation6], 6144
    $region37: #{tpu_custom_call.1} parent=1 // pred_fallthru
      _
    // Predicated region
    $region38: #{tpu_custom_call.1} parent=1 // pred_check
      _
    $region39: #{tpu_custom_call.1} parent=1 // pred_check_branch
      %93 = sbr.rel (0) target = $region41
    $region40: #{tpu_custom_call.1} parent=1 // pred_region
      %94 = dma.done [#allocation6], 128
    $region41: #{tpu_custom_call.1} parent=1 // pred_fallthru
      _
    // Predicated region
    $region42: #{tpu_custom_call.1} parent=1 // pred_check
      _
    $region43: #{tpu_custom_call.1} parent=1 // pred_check_branch
      %96 = sbr.rel (0) target = $region45
    $region44: #{tpu_custom_call.1} parent=1 // pred_region
      %97 = dma.done [#allocation9], 65536
    $region45: #{tpu_custom_call.1} parent=1 // pred_fallthru
      _
    // Predicated region
    $region46: #{tpu_custom_call.1} parent=1 // pred_check
      _
    $region47: #{tpu_custom_call.1} parent=1 // pred_check_branch
      %99 = sbr.rel (0) target = $region49
    $region48: #{tpu_custom_call.1} parent=1 // pred_region
      %100 = dma.done [#allocation9], 128
    $region49: #{tpu_custom_call.1} parent=1 // pred_fallthru
      _
    // Predicated region
    $region50: #{tpu_custom_call.1} parent=1 // pred_check
      _
    $region51: #{tpu_custom_call.1} parent=1 // pred_check_branch
      %102 = sbr.rel (0) target = $region53
    $region52: #{tpu_custom_call.1} parent=1 // pred_region
      %103 = dma.done [#allocation12], 128
    $region53: #{tpu_custom_call.1} parent=1 // pred_fallthru
      _
    %v105 = vld [vmem:[#allocation3] sm:$0xff]
    %v106 = vld [vmem:[#allocation3 + $0x8] sm:$0xff]
    %v107 = vpack.c.bf16 %v106, %v105
    %v108 = vld [vmem:[#allocation5] sm:$0xff]
    %v109 = vld [vmem:[#allocation5 + $0x8] sm:$0xff]
    %v110 = vld [vmem:[#allocation5 + $0x10] sm:$0xff]
    %v111 = vld [vmem:[#allocation5 + $0x18] sm:$0xff]
    %v112 = vld [vmem:[#allocation5 + $0x20] sm:$0xff]
    %v113 = vld [vmem:[#allocation5 + $0x28] sm:$0xff]
    %v114 = vld [vmem:[#allocation5 + $0x30] sm:$0xff]
    %v115 = vld [vmem:[#allocation5 + $0x38] sm:$0xff]
    %v116 = vld [vmem:[#allocation5 + $0x40] sm:$0xff]
    %v117 = vld [vmem:[#allocation5 + $0x48] sm:$0xff]
    %v118 = vld [vmem:[#allocation5 + $0x50] sm:$0xff]
    %v119 = vld [vmem:[#allocation5 + $0x58] sm:$0xff]
    %v120 = vld [vmem:[#allocation5 + $0x60] sm:$0xff]
    %v121 = vld [vmem:[#allocation5 + $0x68] sm:$0xff]
    %v122 = vld [vmem:[#allocation5 + $0x70] sm:$0xff]
    %v123 = vld [vmem:[#allocation5 + $0x78] sm:$0xff]
    %v124 = vld [vmem:[#allocation5 + $0x80] sm:$0xff]
    %v125 = vld [vmem:[#allocation5 + $0x88] sm:$0xff]
    %v126 = vld [vmem:[#allocation5 + $0x90] sm:$0xff]
    %v127 = vld [vmem:[#allocation5 + $0x98] sm:$0xff]
    %v128 = vld [vmem:[#allocation5 + $0xa0] sm:$0xff]
    %v129 = vld [vmem:[#allocation5 + $0xa8] sm:$0xff]
    %v130 = vld [vmem:[#allocation5 + $0xb0] sm:$0xff]
    %v131 = vld [vmem:[#allocation5 + $0xb8] sm:$0xff]
    %v132 = vld [vmem:[#allocation5 + $0xc0] sm:$0xff]
    %v133 = vld [vmem:[#allocation5 + $0xc8] sm:$0xff]
    %v134 = vld [vmem:[#allocation5 + $0xd0] sm:$0xff]
    %v135 = vld [vmem:[#allocation5 + $0xd8] sm:$0xff]
    %v136 = vld [vmem:[#allocation5 + $0xe0] sm:$0xff]
    %v137 = vld [vmem:[#allocation5 + $0xe8] sm:$0xff]
    %v138 = vld [vmem:[#allocation5 + $0xf0] sm:$0xff]
    %v139 = vld [vmem:[#allocation5 + $0xf8] sm:$0xff]
    %v140 = vld [vmem:[#allocation5 + $0x100] sm:$0xff]
    %v141 = vld [vmem:[#allocation5 + $0x108] sm:$0xff]
    %v142 = vld [vmem:[#allocation5 + $0x110] sm:$0xff]
    %v143 = vld [vmem:[#allocation5 + $0x118] sm:$0xff]
    %v144 = vld [vmem:[#allocation5 + $0x120] sm:$0xff]
    %v145 = vld [vmem:[#allocation5 + $0x128] sm:$0xff]
    %v146 = vld [vmem:[#allocation5 + $0x130] sm:$0xff]
    %v147 = vld [vmem:[#allocation5 + $0x138] sm:$0xff]
    %v148 = vld [vmem:[#allocation5 + $0x140] sm:$0xff]
    %v149 = vld [vmem:[#allocation5 + $0x148] sm:$0xff]
    %v150 = vld [vmem:[#allocation5 + $0x150] sm:$0xff]
    %v151 = vld [vmem:[#allocation5 + $0x158] sm:$0xff]
    %v152 = vld [vmem:[#allocation5 + $0x160] sm:$0x33]
    %v153 = vld [vmem:[#allocation5 + $0x168] sm:$0x33]
    %v154 = vld [vmem:[#allocation5 + $0x170] sm:$0x33]
    %v155 = vld [vmem:[#allocation5 + $0x178] sm:$0x33]
    %v156 = vld [vmem:[#allocation7] sm:$0xff]
    %v158 = vlaneseq
    %v159 = vshrl.u32 %v158, 7
    %v160 = vsub.s32 0, %v159
    %v161 = vrot.slane %v156, %v160
    %v162 = vlaneseq
    %v163 = vshrl.u32 %v162, 7
    %v164 = vsub.s32 1, %v163
    %v165 = vrot.slane %v156, %v164
    %v166 = vlaneseq
    %v167 = vshrl.u32 %v166, 7
    %v168 = vsub.s32 2, %v167
    %v169 = vrot.slane %v156, %v168
    %v170 = vlaneseq
    %v171 = vshrl.u32 %v170, 7
    %v172 = vsub.s32 3, %v171
    %v173 = vrot.slane %v156, %v172
    %v174 = vlaneseq
    %v175 = vshrl.u32 %v174, 7
    %v176 = vsub.s32 4, %v175
    %v177 = vrot.slane %v156, %v176
    %v178 = vlaneseq
    %v179 = vshrl.u32 %v178, 7
    %v180 = vsub.s32 5, %v179
    %v181 = vrot.slane %v156, %v180
    %v182 = vlaneseq
    %v183 = vshrl.u32 %v182, 7
    %v184 = vsub.s32 6, %v183
    %v185 = vrot.slane %v156, %v184
    %v186 = vlaneseq
    %v187 = vshrl.u32 %v186, 7
    %v188 = vsub.s32 7, %v187
    %v189 = vrot.slane %v156, %v188
    %v246 = vunpack.c.l.b16 %v108
    %v247 = vunpack.c.h.b16 %v108
    %v248 = vunpack.c.l.b16 %v109
    %v249 = vunpack.c.h.b16 %v109
    %v250 = vunpack.c.l.b16 %v110
    %v251 = vunpack.c.h.b16 %v110
    %v252 = vunpack.c.l.b16 %v111
    %v253 = vunpack.c.h.b16 %v111
    %v254 = vunpack.c.l.b16 %v112
    %v255 = vunpack.c.h.b16 %v112
    %v256 = vunpack.c.l.b16 %v113
    %v257 = vunpack.c.h.b16 %v113
    %v258 = vunpack.c.l.b16 %v114
    %v259 = vunpack.c.h.b16 %v114
    %v260 = vunpack.c.l.b16 %v115
    %v261 = vunpack.c.h.b16 %v115
    %v262 = vunpack.c.l.b16 %v116
    %v263 = vunpack.c.h.b16 %v116
    %v264 = vunpack.c.l.b16 %v117
    %v265 = vunpack.c.h.b16 %v117
    %v266 = vunpack.c.l.b16 %v118
    %v267 = vunpack.c.h.b16 %v118
    %v268 = vunpack.c.l.b16 %v119
    %v269 = vunpack.c.h.b16 %v119
    %v270 = vunpack.c.l.b16 %v120
    %v271 = vunpack.c.h.b16 %v120
    %v272 = vunpack.c.l.b16 %v121
    %v273 = vunpack.c.h.b16 %v121
    %v274 = vunpack.c.l.b16 %v122
    %v275 = vunpack.c.h.b16 %v122
    %v276 = vunpack.c.l.b16 %v123
    %v277 = vunpack.c.h.b16 %v123
    %v278 = vunpack.c.l.b16 %v124
    %v279 = vunpack.c.h.b16 %v124
    %v280 = vunpack.c.l.b16 %v125
    %v281 = vunpack.c.h.b16 %v125
    %v282 = vunpack.c.l.b16 %v126
    %v283 = vunpack.c.h.b16 %v126
    %v284 = vunpack.c.l.b16 %v127
    %v285 = vunpack.c.h.b16 %v127
    %v286 = vunpack.c.l.b16 %v128
    %v287 = vunpack.c.h.b16 %v128
    %v288 = vunpack.c.l.b16 %v129
    %v289 = vunpack.c.h.b16 %v129
    %v290 = vunpack.c.l.b16 %v130
    %v291 = vunpack.c.h.b16 %v130
    %v292 = vunpack.c.l.b16 %v131
    %v293 = vunpack.c.h.b16 %v131
    %v294 = vunpack.c.l.b16 %v132
    %v295 = vunpack.c.h.b16 %v132
    %v296 = vunpack.c.l.b16 %v133
    %v297 = vunpack.c.h.b16 %v133
    %v298 = vunpack.c.l.b16 %v134
    %v299 = vunpack.c.h.b16 %v134
    %v300 = vunpack.c.l.b16 %v135
    %v301 = vunpack.c.h.b16 %v135
    %v302 = vunpack.c.l.b16 %v136
    %v303 = vunpack.c.h.b16 %v136
    %v304 = vunpack.c.l.b16 %v137
    %v305 = vunpack.c.h.b16 %v137
    %v306 = vunpack.c.l.b16 %v138
    %v307 = vunpack.c.h.b16 %v138
    %v308 = vunpack.c.l.b16 %v139
    %v309 = vunpack.c.h.b16 %v139
    %v310 = vunpack.c.l.b16 %v140
    %v311 = vunpack.c.h.b16 %v140
    %v312 = vunpack.c.l.b16 %v141
    %v313 = vunpack.c.h.b16 %v141
    %v314 = vunpack.c.l.b16 %v142
    %v315 = vunpack.c.h.b16 %v142
    %v316 = vunpack.c.l.b16 %v143
    %v317 = vunpack.c.h.b16 %v143
    %v318 = vunpack.c.l.b16 %v144
    %v319 = vunpack.c.h.b16 %v144
    %v320 = vunpack.c.l.b16 %v145
    %v321 = vunpack.c.h.b16 %v145
    %v322 = vunpack.c.l.b16 %v146
    %v323 = vunpack.c.h.b16 %v146
    %v324 = vunpack.c.l.b16 %v147
    %v325 = vunpack.c.h.b16 %v147
    %v326 = vunpack.c.l.b16 %v148
    %v327 = vunpack.c.h.b16 %v148
    %v328 = vunpack.c.l.b16 %v149
    %v329 = vunpack.c.h.b16 %v149
    %v330 = vunpack.c.l.b16 %v150
    %v331 = vunpack.c.h.b16 %v150
    %v332 = vunpack.c.l.b16 %v151
    %v333 = vunpack.c.h.b16 %v151
    %v334 = vunpack.c.l.b16 %v152
    %v335 = vunpack.c.h.b16 %v152
    %v336 = vunpack.c.l.b16 %v153
    %v337 = vunpack.c.h.b16 %v153
    %v338 = vunpack.c.l.b16 %v154
    %v339 = vunpack.c.h.b16 %v154
    %v340 = vunpack.c.l.b16 %v155
    %v341 = vunpack.c.h.b16 %v155
    %v342 = vpack.c.b16 %v254, %v246
    %v343 = vpack.c.b16 %v255, %v247
    %v344 = vpack.c.b16 %v256, %v248
    %v345 = vpack.c.b16 %v257, %v249
    %v346 = vpack.c.b16 %v258, %v250
    %v347 = vpack.c.b16 %v259, %v251
    %v348 = vpack.c.b16 %v260, %v252
    %v349 = vpack.c.b16 %v261, %v253
    %v350 = vpack.c.b16 %v270, %v262
    %v351 = vpack.c.b16 %v271, %v263
    %v352 = vpack.c.b16 %v272, %v264
    %v353 = vpack.c.b16 %v273, %v265
    %v354 = vpack.c.b16 %v274, %v266
    %v355 = vpack.c.b16 %v275, %v267
    %v356 = vpack.c.b16 %v276, %v268
    %v357 = vpack.c.b16 %v277, %v269
    %v358 = vpack.c.b16 %v286, %v278
    %v359 = vpack.c.b16 %v287, %v279
    %v360 = vpack.c.b16 %v288, %v280
    %v361 = vpack.c.b16 %v289, %v281
    %v362 = vpack.c.b16 %v290, %v282
    %v363 = vpack.c.b16 %v291, %v283
    %v364 = vpack.c.b16 %v292, %v284
    %v365 = vpack.c.b16 %v293, %v285
    %v366 = vpack.c.b16 %v302, %v294
    %v367 = vpack.c.b16 %v303, %v295
    %v368 = vpack.c.b16 %v304, %v296
    %v369 = vpack.c.b16 %v305, %v297
    %v370 = vpack.c.b16 %v306, %v298
    %v371 = vpack.c.b16 %v307, %v299
    %v372 = vpack.c.b16 %v308, %v300
    %v373 = vpack.c.b16 %v309, %v301
    %v374 = vpack.c.b16 %v318, %v310
    %v375 = vpack.c.b16 %v319, %v311
    %v376 = vpack.c.b16 %v320, %v312
    %v377 = vpack.c.b16 %v321, %v313
    %v378 = vpack.c.b16 %v322, %v314
    %v379 = vpack.c.b16 %v323, %v315
    %v380 = vpack.c.b16 %v324, %v316
    %v381 = vpack.c.b16 %v325, %v317
    %v382 = vpack.c.b16 %v334, %v326
    %v383 = vpack.c.b16 %v335, %v327
    %v384 = vpack.c.b16 %v336, %v328
    %v385 = vpack.c.b16 %v337, %v329
    %v386 = vpack.c.b16 %v338, %v330
    %v387 = vpack.c.b16 %v339, %v331
    %v388 = vpack.c.b16 %v340, %v332
    %v389 = vpack.c.b16 %v341, %v333
    %vm430 = vcmask 752640
    %v432 = vsel %vm430, %v107, 0
    %vm434 = vcmask 1045504
    %v436 = vsel %vm434, %v382, 0
    %v439 = vsel %vm434, %v383, 0
    %v442 = vsel %vm434, %v384, 0
    %v445 = vsel %vm434, %v385, 0
    %v448 = vsel %vm434, %v386, 0
    %v451 = vsel %vm434, %v387, 0
    %v454 = vsel %vm434, %v388, 0
    %v457 = vsel %vm434, %v389, 0
    %459 = vmatprep.subr.bf16.mxu0 %v343
    %460 = vmatpush1.bf16.msra.mxu0 %v342
    %461 = vmatprep.subr.bf16.mxu0 %v351
    %462 = vmatpush1.bf16.msra.mxu0 %v350
    %463 = vmatprep.subr.bf16.mxu0 %v359
    %464 = vmatpush1.bf16.msra.mxu0 %v358
    %465 = vmatprep.subr.bf16.mxu0 %v367
    %466 = vmatpush1.bf16.msra.mxu0 %v366
    %467 = vmatprep.subr.bf16.mxu0 %v375
    %468 = vmatpush1.bf16.msra.mxu0 %v374
    %469 = vmatprep.subr.bf16.mxu0 %v439
    %470 = vmatpush1.bf16.msra.mxu0 %v436
    %471 = vmatprep.subr.bf16.mxu0 0
    %472 = vmatpush1.bf16.msra.mxu0 0
    %473 = vmatprep.subr.bf16.mxu0 0
    %474 = vmatpush1.bf16.msra.mxu0 0
    %475 = vmatprep.subr.bf16.mxu0 0
    %476 = vmatpush1.bf16.msra.mxu0 0
    %477 = vmatprep.subr.bf16.mxu0 0
    %478 = vmatpush1.bf16.msra.mxu0 0
    %479 = vmatprep.subr.bf16.mxu0 0
    %480 = vmatpush1.bf16.msra.mxu0 0
    %481 = vmatprep.subr.bf16.mxu0 0
    %482 = vmatpush1.bf16.msra.mxu0 0
    %483 = vmatprep.subr.bf16.mxu0 0
    %484 = vmatpush1.bf16.msra.mxu0 0
    %485 = vmatprep.subr.bf16.mxu0 0
    %486 = vmatpush1.bf16.msra.mxu0 0
    %487 = vmatprep.subr.bf16.mxu0 0
    %488 = vmatpush1.bf16.msra.mxu0 0
    %489 = vmatprep.subr.bf16.mxu0 0
    %490 = vmatpush1.bf16.msra.mxu0 0
    %491 = vmatprep.mubr.bf16.mxu0 0
    %492 = vmatmul.mubr.bf16.gmra.mrb[0].mxu0 %v432
    %v493 = vpop.f32.mrb[0].mxu0
    %v494 = vadd.f32 %v161, %v493
    %v495 = vpop.f32.mrb[0].mxu0
    %v496 = vadd.f32 %v165, %v495
    %v497 = vpop.f32.mrb[0].mxu0
    %v498 = vadd.f32 %v161, %v497
    %v499 = vpop.f32.mrb[0].mxu0
    %v500 = vadd.f32 %v165, %v499
    %501 = vdwg.mxu0
    %502 = vmatprep.subr.bf16.mxu0 %v345
    %503 = vmatpush1.bf16.msra.mxu0 %v344
    %504 = vmatprep.subr.bf16.mxu0 %v353
    %505 = vmatpush1.bf16.msra.mxu0 %v352
    %506 = vmatprep.subr.bf16.mxu0 %v361
    %507 = vmatpush1.bf16.msra.mxu0 %v360
    %508 = vmatprep.subr.bf16.mxu0 %v369
    %509 = vmatpush1.bf16.msra.mxu0 %v368
    %510 = vmatprep.subr.bf16.mxu0 %v377
    %511 = vmatpush1.bf16.msra.mxu0 %v376
    %512 = vmatprep.subr.bf16.mxu0 %v445
    %513 = vmatpush1.bf16.msra.mxu0 %v442
    %514 = vmatprep.subr.bf16.mxu0 0
    %515 = vmatpush1.bf16.msra.mxu0 0
    %516 = vmatprep.subr.bf16.mxu0 0
    %517 = vmatpush1.bf16.msra.mxu0 0
    %518 = vmatprep.subr.bf16.mxu0 0
    %519 = vmatpush1.bf16.msra.mxu0 0
    %520 = vmatprep.subr.bf16.mxu0 0
    %521 = vmatpush1.bf16.msra.mxu0 0
    %522 = vmatprep.subr.bf16.mxu0 0
    %523 = vmatpush1.bf16.msra.mxu0 0
    %524 = vmatprep.subr.bf16.mxu0 0
    %525 = vmatpush1.bf16.msra.mxu0 0
    %526 = vmatprep.subr.bf16.mxu0 0
    %527 = vmatpush1.bf16.msra.mxu0 0
    %528 = vmatprep.subr.bf16.mxu0 0
    %529 = vmatpush1.bf16.msra.mxu0 0
    %530 = vmatprep.subr.bf16.mxu0 0
    %531 = vmatpush1.bf16.msra.mxu0 0
    %532 = vmatprep.subr.bf16.mxu0 0
    %533 = vmatpush1.bf16.msra.mxu0 0
    %534 = vmatprep.mubr.bf16.mxu0 0
    %535 = vmatmul.mubr.bf16.gmra.mrb[0].mxu0 %v432
    %v536 = vpop.f32.mrb[0].mxu0
    %v537 = vadd.f32 %v169, %v536
    %v538 = vpop.f32.mrb[0].mxu0
    %v539 = vadd.f32 %v173, %v538
    %v540 = vpop.f32.mrb[0].mxu0
    %v541 = vadd.f32 %v169, %v540
    %v542 = vpop.f32.mrb[0].mxu0
    %v543 = vadd.f32 %v173, %v542
    %544 = vdwg.mxu0
    %545 = vmatprep.subr.bf16.mxu0 %v347
    %546 = vmatpush1.bf16.msra.mxu0 %v346
    %547 = vmatprep.subr.bf16.mxu0 %v355
    %548 = vmatpush1.bf16.msra.mxu0 %v354
    %549 = vmatprep.subr.bf16.mxu0 %v363
    %550 = vmatpush1.bf16.msra.mxu0 %v362
    %551 = vmatprep.subr.bf16.mxu0 %v371
    %552 = vmatpush1.bf16.msra.mxu0 %v370
    %553 = vmatprep.subr.bf16.mxu0 %v379
    %554 = vmatpush1.bf16.msra.mxu0 %v378
    %555 = vmatprep.subr.bf16.mxu0 %v451
    %556 = vmatpush1.bf16.msra.mxu0 %v448
    %557 = vmatprep.subr.bf16.mxu0 0
    %558 = vmatpush1.bf16.msra.mxu0 0
    %559 = vmatprep.subr.bf16.mxu0 0
    %560 = vmatpush1.bf16.msra.mxu0 0
    %561 = vmatprep.subr.bf16.mxu0 0
    %562 = vmatpush1.bf16.msra.mxu0 0
    %563 = vmatprep.subr.bf16.mxu0 0
    %564 = vmatpush1.bf16.msra.mxu0 0
    %565 = vmatprep.subr.bf16.mxu0 0
    %566 = vmatpush1.bf16.msra.mxu0 0
    %567 = vmatprep.subr.bf16.mxu0 0
    %568 = vmatpush1.bf16.msra.mxu0 0
    %569 = vmatprep.subr.bf16.mxu0 0
    %570 = vmatpush1.bf16.msra.mxu0 0
    %571 = vmatprep.subr.bf16.mxu0 0
    %572 = vmatpush1.bf16.msra.mxu0 0
    %573 = vmatprep.subr.bf16.mxu0 0
    %574 = vmatpush1.bf16.msra.mxu0 0
    %575 = vmatprep.subr.bf16.mxu0 0
    %576 = vmatpush1.bf16.msra.mxu0 0
    %577 = vmatprep.mubr.bf16.mxu0 0
    %578 = vmatmul.mubr.bf16.gmra.mrb[0].mxu0 %v432
    %v579 = vpop.f32.mrb[0].mxu0
    %v580 = vadd.f32 %v177, %v579
    %v581 = vpop.f32.mrb[0].mxu0
    %v582 = vadd.f32 %v181, %v581
    %v583 = vpop.f32.mrb[0].mxu0
    %v584 = vadd.f32 %v177, %v583
    %v585 = vpop.f32.mrb[0].mxu0
    %v586 = vadd.f32 %v181, %v585
    %587 = vdwg.mxu0
    %588 = vmatprep.subr.bf16.mxu0 %v349
    %589 = vmatpush1.bf16.msra.mxu0 %v348
    %590 = vmatprep.subr.bf16.mxu0 %v357
    %591 = vmatpush1.bf16.msra.mxu0 %v356
    %592 = vmatprep.subr.bf16.mxu0 %v365
    %593 = vmatpush1.bf16.msra.mxu0 %v364
    %594 = vmatprep.subr.bf16.mxu0 %v373
    %595 = vmatpush1.bf16.msra.mxu0 %v372
    %596 = vmatprep.subr.bf16.mxu0 %v381
    %597 = vmatpush1.bf16.msra.mxu0 %v380
    %598 = vmatprep.subr.bf16.mxu0 %v457
    %599 = vmatpush1.bf16.msra.mxu0 %v454
    %600 = vmatprep.subr.bf16.mxu0 0
    %601 = vmatpush1.bf16.msra.mxu0 0
    %602 = vmatprep.subr.bf16.mxu0 0
    %603 = vmatpush1.bf16.msra.mxu0 0
    %604 = vmatprep.subr.bf16.mxu0 0
    %605 = vmatpush1.bf16.msra.mxu0 0
    %606 = vmatprep.subr.bf16.mxu0 0
    %607 = vmatpush1.bf16.msra.mxu0 0
    %608 = vmatprep.subr.bf16.mxu0 0
    %609 = vmatpush1.bf16.msra.mxu0 0
    %610 = vmatprep.subr.bf16.mxu0 0
    %611 = vmatpush1.bf16.msra.mxu0 0
    %612 = vmatprep.subr.bf16.mxu0 0
    %613 = vmatpush1.bf16.msra.mxu0 0
    %614 = vmatprep.subr.bf16.mxu0 0
    %615 = vmatpush1.bf16.msra.mxu0 0
    %616 = vmatprep.subr.bf16.mxu0 0
    %617 = vmatpush1.bf16.msra.mxu0 0
    %618 = vmatprep.subr.bf16.mxu0 0
    %619 = vmatpush1.bf16.msra.mxu0 0
    %620 = vmatprep.mubr.bf16.mxu0 0
    %621 = vmatmul.mubr.bf16.gmra.mrb[0].mxu0 %v432
    %v622 = vpop.f32.mrb[0].mxu0
    %v623 = vadd.f32 %v185, %v622
    %v624 = vpop.f32.mrb[0].mxu0
    %v625 = vadd.f32 %v189, %v624
    %v626 = vpop.f32.mrb[0].mxu0
    %v627 = vadd.f32 %v185, %v626
    %v628 = vpop.f32.mrb[0].mxu0
    %v629 = vadd.f32 %v189, %v628
    %630 = vdwg.mxu0
    %v631 = vmax.f32 %v494, 0.0
    %v632 = vmax.f32 %v496, 0.0
    %v633 = vmax.f32 %v537, 0.0
    %v634 = vmax.f32 %v539, 0.0
    %v635 = vmax.f32 %v580, 0.0
    %v636 = vmax.f32 %v582, 0.0
    %v637 = vmax.f32 %v623, 0.0
    %v638 = vmax.f32 %v625, 0.0
    %v639 = vmax.f32 %v498, 0.0
    %v640 = vmax.f32 %v500, 0.0
    %v641 = vmax.f32 %v541, 0.0
    %v642 = vmax.f32 %v543, 0.0
    %v643 = vmax.f32 %v584, 0.0
    %v644 = vmax.f32 %v586, 0.0
    %v645 = vmax.f32 %v627, 0.0
    %v646 = vmax.f32 %v629, 0.0
    %v647 = vpack.c.bf16 %v639, %v631
    %v648 = vpack.c.bf16 %v640, %v632
    %v649 = vpack.c.bf16 %v641, %v633
    %v650 = vpack.c.bf16 %v642, %v634
    %v651 = vpack.c.bf16 %v643, %v635
    %v652 = vpack.c.bf16 %v644, %v636
    %v653 = vpack.c.bf16 %v645, %v637
    %v654 = vpack.c.bf16 %v646, %v638
    %v655 = vld [vmem:[#allocation8] sm:$0xff]
    %v656 = vld [vmem:[#allocation8 + $0x8] sm:$0xff]
    %v657 = vld [vmem:[#allocation8 + $0x10] sm:$0xff]
    %v658 = vld [vmem:[#allocation8 + $0x18] sm:$0xff]
    %v659 = vld [vmem:[#allocation8 + $0x20] sm:$0xff]
    %v660 = vld [vmem:[#allocation8 + $0x28] sm:$0xff]
    %v661 = vld [vmem:[#allocation8 + $0x30] sm:$0xff]
    %v662 = vld [vmem:[#allocation8 + $0x38] sm:$0xff]
    %v663 = vld [vmem:[#allocation8 + $0x40] sm:$0xff]
    %v664 = vld [vmem:[#allocation8 + $0x48] sm:$0xff]
    %v665 = vld [vmem:[#allocation8 + $0x50] sm:$0xff]
    %v666 = vld [vmem:[#allocation8 + $0x58] sm:$0xff]
    %v667 = vld [vmem:[#allocation8 + $0x60] sm:$0xff]
    %v668 = vld [vmem:[#allocation8 + $0x68] sm:$0xff]
    %v669 = vld [vmem:[#allocation8 + $0x70] sm:$0xff]
    %v670 = vld [vmem:[#allocation8 + $0x78] sm:$0xff]
    %v671 = vld [vmem:[#allocation8 + $0x80] sm:$0xff]
    %v672 = vld [vmem:[#allocation8 + $0x88] sm:$0xff]
    %v673 = vld [vmem:[#allocation8 + $0x90] sm:$0xff]
    %v674 = vld [vmem:[#allocation8 + $0x98] sm:$0xff]
    %v675 = vld [vmem:[#allocation8 + $0xa0] sm:$0xff]
    %v676 = vld [vmem:[#allocation8 + $0xa8] sm:$0xff]
    %v677 = vld [vmem:[#allocation8 + $0xb0] sm:$0xff]
    %v678 = vld [vmem:[#allocation8 + $0xb8] sm:$0xff]
    %v679 = vld [vmem:[#allocation8 + $0xc0] sm:$0xff]
    %v680 = vld [vmem:[#allocation8 + $0xc8] sm:$0xff]
    %v681 = vld [vmem:[#allocation8 + $0xd0] sm:$0xff]
    %v682 = vld [vmem:[#allocation8 + $0xd8] sm:$0xff]
    %v683 = vld [vmem:[#allocation8 + $0xe0] sm:$0xff]
    %v684 = vld [vmem:[#allocation8 + $0xe8] sm:$0xff]
    %v685 = vld [vmem:[#allocation8 + $0xf0] sm:$0xff]
    %v686 = vld [vmem:[#allocation8 + $0xf8] sm:$0xff]
    %v687 = vld [vmem:[#allocation8 + $0x100] sm:$0xff]
    %v688 = vld [vmem:[#allocation8 + $0x108] sm:$0xff]
    %v689 = vld [vmem:[#allocation8 + $0x110] sm:$0xff]
    %v690 = vld [vmem:[#allocation8 + $0x118] sm:$0xff]
    %v691 = vld [vmem:[#allocation8 + $0x120] sm:$0xff]
    %v692 = vld [vmem:[#allocation8 + $0x128] sm:$0xff]
    %v693 = vld [vmem:[#allocation8 + $0x130] sm:$0xff]
    %v694 = vld [vmem:[#allocation8 + $0x138] sm:$0xff]
    %v695 = vld [vmem:[#allocation8 + $0x140] sm:$0xff]
    %v696 = vld [vmem:[#allocation8 + $0x148] sm:$0xff]
    %v697 = vld [vmem:[#allocation8 + $0x150] sm:$0xff]
    %v698 = vld [vmem:[#allocation8 + $0x158] sm:$0xff]
    %v699 = vld [vmem:[#allocation8 + $0x160] sm:$0xff]
    %v700 = vld [vmem:[#allocation8 + $0x168] sm:$0xff]
    %v701 = vld [vmem:[#allocation8 + $0x170] sm:$0xff]
    %v702 = vld [vmem:[#allocation8 + $0x178] sm:$0xff]
    %v703 = vld [vmem:[#allocation8 + $0x180] sm:$0xff]
    %v704 = vld [vmem:[#allocation8 + $0x188] sm:$0xff]
    %v705 = vld [vmem:[#allocation8 + $0x190] sm:$0xff]
    %v706 = vld [vmem:[#allocation8 + $0x198] sm:$0xff]
    %v707 = vld [vmem:[#allocation8 + $0x1a0] sm:$0xff]
    %v708 = vld [vmem:[#allocation8 + $0x1a8] sm:$0xff]
    %v709 = vld [vmem:[#allocation8 + $0x1b0] sm:$0xff]
    %v710 = vld [vmem:[#allocation8 + $0x1b8] sm:$0xff]
    %v711 = vld [vmem:[#allocation8 + $0x1c0] sm:$0xff]
    %v712 = vld [vmem:[#allocation8 + $0x1c8] sm:$0xff]
    %v713 = vld [vmem:[#allocation8 + $0x1d0] sm:$0xff]
    %v714 = vld [vmem:[#allocation8 + $0x1d8] sm:$0xff]
    %v715 = vld [vmem:[#allocation8 + $0x1e0] sm:$0xff]
    %v716 = vld [vmem:[#allocation8 + $0x1e8] sm:$0xff]
    %v717 = vld [vmem:[#allocation8 + $0x1f0] sm:$0xff]
    %v718 = vld [vmem:[#allocation8 + $0x1f8] sm:$0xff]
    %v719 = vld [vmem:[#allocation8 + $0x200] sm:$0xff]
    %v720 = vld [vmem:[#allocation8 + $0x208] sm:$0xff]
    %v721 = vld [vmem:[#allocation8 + $0x210] sm:$0xff]
    %v722 = vld [vmem:[#allocation8 + $0x218] sm:$0xff]
    %v723 = vld [vmem:[#allocation8 + $0x220] sm:$0xff]
    %v724 = vld [vmem:[#allocation8 + $0x228] sm:$0xff]
    %v725 = vld [vmem:[#allocation8 + $0x230] sm:$0xff]
    %v726 = vld [vmem:[#allocation8 + $0x238] sm:$0xff]
    %v727 = vld [vmem:[#allocation8 + $0x240] sm:$0xff]
    %v728 = vld [vmem:[#allocation8 + $0x248] sm:$0xff]
    %v729 = vld [vmem:[#allocation8 + $0x250] sm:$0xff]
    %v730 = vld [vmem:[#allocation8 + $0x258] sm:$0xff]
    %v731 = vld [vmem:[#allocation8 + $0x260] sm:$0xff]
    %v732 = vld [vmem:[#allocation8 + $0x268] sm:$0xff]
    %v733 = vld [vmem:[#allocation8 + $0x270] sm:$0xff]
    %v734 = vld [vmem:[#allocation8 + $0x278] sm:$0xff]
    %v735 = vld [vmem:[#allocation8 + $0x280] sm:$0xff]
    %v736 = vld [vmem:[#allocation8 + $0x288] sm:$0xff]
    %v737 = vld [vmem:[#allocation8 + $0x290] sm:$0xff]
    %v738 = vld [vmem:[#allocation8 + $0x298] sm:$0xff]
    %v739 = vld [vmem:[#allocation8 + $0x2a0] sm:$0xff]
    %v740 = vld [vmem:[#allocation8 + $0x2a8] sm:$0xff]
    %v741 = vld [vmem:[#allocation8 + $0x2b0] sm:$0xff]
    %v742 = vld [vmem:[#allocation8 + $0x2b8] sm:$0xff]
    %v743 = vld [vmem:[#allocation8 + $0x2c0] sm:$0xff]
    %v744 = vld [vmem:[#allocation8 + $0x2c8] sm:$0xff]
    %v745 = vld [vmem:[#allocation8 + $0x2d0] sm:$0xff]
    %v746 = vld [vmem:[#allocation8 + $0x2d8] sm:$0xff]
    %v747 = vld [vmem:[#allocation8 + $0x2e0] sm:$0xff]
    %v748 = vld [vmem:[#allocation8 + $0x2e8] sm:$0xff]
    %v749 = vld [vmem:[#allocation8 + $0x2f0] sm:$0xff]
    %v750 = vld [vmem:[#allocation8 + $0x2f8] sm:$0xff]
    %v751 = vld [vmem:[#allocation8 + $0x300] sm:$0xff]
    %v752 = vld [vmem:[#allocation8 + $0x308] sm:$0xff]
    %v753 = vld [vmem:[#allocation8 + $0x310] sm:$0xff]
    %v754 = vld [vmem:[#allocation8 + $0x318] sm:$0xff]
    %v755 = vld [vmem:[#allocation8 + $0x320] sm:$0xff]
    %v756 = vld [vmem:[#allocation8 + $0x328] sm:$0xff]
    %v757 = vld [vmem:[#allocation8 + $0x330] sm:$0xff]
    %v758 = vld [vmem:[#allocation8 + $0x338] sm:$0xff]
    %v759 = vld [vmem:[#allocation8 + $0x340] sm:$0xff]
    %v760 = vld [vmem:[#allocation8 + $0x348] sm:$0xff]
    %v761 = vld [vmem:[#allocation8 + $0x350] sm:$0xff]
    %v762 = vld [vmem:[#allocation8 + $0x358] sm:$0xff]
    %v763 = vld [vmem:[#allocation8 + $0x360] sm:$0xff]
    %v764 = vld [vmem:[#allocation8 + $0x368] sm:$0xff]
    %v765 = vld [vmem:[#allocation8 + $0x370] sm:$0xff]
    %v766 = vld [vmem:[#allocation8 + $0x378] sm:$0xff]
    %v767 = vld [vmem:[#allocation8 + $0x380] sm:$0xff]
    %v768 = vld [vmem:[#allocation8 + $0x388] sm:$0xff]
    %v769 = vld [vmem:[#allocation8 + $0x390] sm:$0xff]
    %v770 = vld [vmem:[#allocation8 + $0x398] sm:$0xff]
    %v771 = vld [vmem:[#allocation8 + $0x3a0] sm:$0xff]
    %v772 = vld [vmem:[#allocation8 + $0x3a8] sm:$0xff]
    %v773 = vld [vmem:[#allocation8 + $0x3b0] sm:$0xff]
    %v774 = vld [vmem:[#allocation8 + $0x3b8] sm:$0xff]
    %v775 = vld [vmem:[#allocation8 + $0x3c0] sm:$0xff]
    %v776 = vld [vmem:[#allocation8 + $0x3c8] sm:$0xff]
    %v777 = vld [vmem:[#allocation8 + $0x3d0] sm:$0xff]
    %v778 = vld [vmem:[#allocation8 + $0x3d8] sm:$0xff]
    %v779 = vld [vmem:[#allocation8 + $0x3e0] sm:$0xff]
    %v780 = vld [vmem:[#allocation8 + $0x3e8] sm:$0xff]
    %v781 = vld [vmem:[#allocation8 + $0x3f0] sm:$0xff]
    %v782 = vld [vmem:[#allocation8 + $0x3f8] sm:$0xff]
    %v783 = vld [vmem:[#allocation8 + $0x400] sm:$0xff]
    %v784 = vld [vmem:[#allocation8 + $0x408] sm:$0xff]
    %v785 = vld [vmem:[#allocation8 + $0x410] sm:$0xff]
    %v786 = vld [vmem:[#allocation8 + $0x418] sm:$0xff]
    %v787 = vld [vmem:[#allocation8 + $0x420] sm:$0xff]
    %v788 = vld [vmem:[#allocation8 + $0x428] sm:$0xff]
    %v789 = vld [vmem:[#allocation8 + $0x430] sm:$0xff]
    %v790 = vld [vmem:[#allocation8 + $0x438] sm:$0xff]
    %v791 = vld [vmem:[#allocation8 + $0x440] sm:$0xff]
    %v792 = vld [vmem:[#allocation8 + $0x448] sm:$0xff]
    %v793 = vld [vmem:[#allocation8 + $0x450] sm:$0xff]
    %v794 = vld [vmem:[#allocation8 + $0x458] sm:$0xff]
    %v795 = vld [vmem:[#allocation8 + $0x460] sm:$0xff]
    %v796 = vld [vmem:[#allocation8 + $0x468] sm:$0xff]
    %v797 = vld [vmem:[#allocation8 + $0x470] sm:$0xff]
    %v798 = vld [vmem:[#allocation8 + $0x478] sm:$0xff]
    %v799 = vld [vmem:[#allocation8 + $0x480] sm:$0xff]
    %v800 = vld [vmem:[#allocation8 + $0x488] sm:$0xff]
    %v801 = vld [vmem:[#allocation8 + $0x490] sm:$0xff]
    %v802 = vld [vmem:[#allocation8 + $0x498] sm:$0xff]
    %v803 = vld [vmem:[#allocation8 + $0x4a0] sm:$0xff]
    %v804 = vld [vmem:[#allocation8 + $0x4a8] sm:$0xff]
    %v805 = vld [vmem:[#allocation8 + $0x4b0] sm:$0xff]
    %v806 = vld [vmem:[#allocation8 + $0x4b8] sm:$0xff]
    %v807 = vld [vmem:[#allocation8 + $0x4c0] sm:$0xff]
    %v808 = vld [vmem:[#allocation8 + $0x4c8] sm:$0xff]
    %v809 = vld [vmem:[#allocation8 + $0x4d0] sm:$0xff]
    %v810 = vld [vmem:[#allocation8 + $0x4d8] sm:$0xff]
    %v811 = vld [vmem:[#allocation8 + $0x4e0] sm:$0xff]
    %v812 = vld [vmem:[#allocation8 + $0x4e8] sm:$0xff]
    %v813 = vld [vmem:[#allocation8 + $0x4f0] sm:$0xff]
    %v814 = vld [vmem:[#allocation8 + $0x4f8] sm:$0xff]
    %v815 = vld [vmem:[#allocation8 + $0x500] sm:$0xff]
    %v816 = vld [vmem:[#allocation8 + $0x508] sm:$0xff]
    %v817 = vld [vmem:[#allocation8 + $0x510] sm:$0xff]
    %v818 = vld [vmem:[#allocation8 + $0x518] sm:$0xff]
    %v819 = vld [vmem:[#allocation8 + $0x520] sm:$0xff]
    %v820 = vld [vmem:[#allocation8 + $0x528] sm:$0xff]
    %v821 = vld [vmem:[#allocation8 + $0x530] sm:$0xff]
    %v822 = vld [vmem:[#allocation8 + $0x538] sm:$0xff]
    %v823 = vld [vmem:[#allocation8 + $0x540] sm:$0xff]
    %v824 = vld [vmem:[#allocation8 + $0x548] sm:$0xff]
    %v825 = vld [vmem:[#allocation8 + $0x550] sm:$0xff]
    %v826 = vld [vmem:[#allocation8 + $0x558] sm:$0xff]
    %v827 = vld [vmem:[#allocation8 + $0x560] sm:$0xff]
    %v828 = vld [vmem:[#allocation8 + $0x568] sm:$0xff]
    %v829 = vld [vmem:[#allocation8 + $0x570] sm:$0xff]
    %v830 = vld [vmem:[#allocation8 + $0x578] sm:$0xff]
    %v831 = vld [vmem:[#allocation8 + $0x580] sm:$0xff]
    %v832 = vld [vmem:[#allocation8 + $0x588] sm:$0xff]
    %v833 = vld [vmem:[#allocation8 + $0x590] sm:$0xff]
    %v834 = vld [vmem:[#allocation8 + $0x598] sm:$0xff]
    %v835 = vld [vmem:[#allocation8 + $0x5a0] sm:$0xff]
    %v836 = vld [vmem:[#allocation8 + $0x5a8] sm:$0xff]
    %v837 = vld [vmem:[#allocation8 + $0x5b0] sm:$0xff]
    %v838 = vld [vmem:[#allocation8 + $0x5b8] sm:$0xff]
    %v839 = vld [vmem:[#allocation8 + $0x5c0] sm:$0xff]
    %v840 = vld [vmem:[#allocation8 + $0x5c8] sm:$0xff]
    %v841 = vld [vmem:[#allocation8 + $0x5d0] sm:$0xff]
    %v842 = vld [vmem:[#allocation8 + $0x5d8] sm:$0xff]
    %v843 = vld [vmem:[#allocation8 + $0x5e0] sm:$0xff]
    %v844 = vld [vmem:[#allocation8 + $0x5e8] sm:$0xff]
    %v845 = vld [vmem:[#allocation8 + $0x5f0] sm:$0xff]
    %v846 = vld [vmem:[#allocation8 + $0x5f8] sm:$0xff]
    %v847 = vld [vmem:[#allocation8 + $0x600] sm:$0xff]
    %v848 = vld [vmem:[#allocation8 + $0x608] sm:$0xff]
    %v849 = vld [vmem:[#allocation8 + $0x610] sm:$0xff]
    %v850 = vld [vmem:[#allocation8 + $0x618] sm:$0xff]
    %v851 = vld [vmem:[#allocation8 + $0x620] sm:$0xff]
    %v852 = vld [vmem:[#allocation8 + $0x628] sm:$0xff]
    %v853 = vld [vmem:[#allocation8 + $0x630] sm:$0xff]
    %v854 = vld [vmem:[#allocation8 + $0x638] sm:$0xff]
    %v855 = vld [vmem:[#allocation8 + $0x640] sm:$0xff]
    %v856 = vld [vmem:[#allocation8 + $0x648] sm:$0xff]
    %v857 = vld [vmem:[#allocation8 + $0x650] sm:$0xff]
    %v858 = vld [vmem:[#allocation8 + $0x658] sm:$0xff]
    %v859 = vld [vmem:[#allocation8 + $0x660] sm:$0xff]
    %v860 = vld [vmem:[#allocation8 + $0x668] sm:$0xff]
    %v861 = vld [vmem:[#allocation8 + $0x670] sm:$0xff]
    %v862 = vld [vmem:[#allocation8 + $0x678] sm:$0xff]
    %v863 = vld [vmem:[#allocation8 + $0x680] sm:$0xff]
    %v864 = vld [vmem:[#allocation8 + $0x688] sm:$0xff]
    %v865 = vld [vmem:[#allocation8 + $0x690] sm:$0xff]
    %v866 = vld [vmem:[#allocation8 + $0x698] sm:$0xff]
    %v867 = vld [vmem:[#allocation8 + $0x6a0] sm:$0xff]
    %v868 = vld [vmem:[#allocation8 + $0x6a8] sm:$0xff]
    %v869 = vld [vmem:[#allocation8 + $0x6b0] sm:$0xff]
    %v870 = vld [vmem:[#allocation8 + $0x6b8] sm:$0xff]
    %v871 = vld [vmem:[#allocation8 + $0x6c0] sm:$0xff]
    %v872 = vld [vmem:[#allocation8 + $0x6c8] sm:$0xff]
    %v873 = vld [vmem:[#allocation8 + $0x6d0] sm:$0xff]
    %v874 = vld [vmem:[#allocation8 + $0x6d8] sm:$0xff]
    %v875 = vld [vmem:[#allocation8 + $0x6e0] sm:$0xff]
    %v876 = vld [vmem:[#allocation8 + $0x6e8] sm:$0xff]
    %v877 = vld [vmem:[#allocation8 + $0x6f0] sm:$0xff]
    %v878 = vld [vmem:[#allocation8 + $0x6f8] sm:$0xff]
    %v879 = vld [vmem:[#allocation8 + $0x700] sm:$0xff]
    %v880 = vld [vmem:[#allocation8 + $0x708] sm:$0xff]
    %v881 = vld [vmem:[#allocation8 + $0x710] sm:$0xff]
    %v882 = vld [vmem:[#allocation8 + $0x718] sm:$0xff]
    %v883 = vld [vmem:[#allocation8 + $0x720] sm:$0xff]
    %v884 = vld [vmem:[#allocation8 + $0x728] sm:$0xff]
    %v885 = vld [vmem:[#allocation8 + $0x730] sm:$0xff]
    %v886 = vld [vmem:[#allocation8 + $0x738] sm:$0xff]
    %v887 = vld [vmem:[#allocation8 + $0x740] sm:$0xff]
    %v888 = vld [vmem:[#allocation8 + $0x748] sm:$0xff]
    %v889 = vld [vmem:[#allocation8 + $0x750] sm:$0xff]
    %v890 = vld [vmem:[#allocation8 + $0x758] sm:$0xff]
    %v891 = vld [vmem:[#allocation8 + $0x760] sm:$0xff]
    %v892 = vld [vmem:[#allocation8 + $0x768] sm:$0xff]
    %v893 = vld [vmem:[#allocation8 + $0x770] sm:$0xff]
    %v894 = vld [vmem:[#allocation8 + $0x778] sm:$0xff]
    %v895 = vld [vmem:[#allocation8 + $0x780] sm:$0xff]
    %v896 = vld [vmem:[#allocation8 + $0x788] sm:$0xff]
    %v897 = vld [vmem:[#allocation8 + $0x790] sm:$0xff]
    %v898 = vld [vmem:[#allocation8 + $0x798] sm:$0xff]
    %v899 = vld [vmem:[#allocation8 + $0x7a0] sm:$0xff]
    %v900 = vld [vmem:[#allocation8 + $0x7a8] sm:$0xff]
    %v901 = vld [vmem:[#allocation8 + $0x7b0] sm:$0xff]
    %v902 = vld [vmem:[#allocation8 + $0x7b8] sm:$0xff]
    %v903 = vld [vmem:[#allocation8 + $0x7c0] sm:$0xff]
    %v904 = vld [vmem:[#allocation8 + $0x7c8] sm:$0xff]
    %v905 = vld [vmem:[#allocation8 + $0x7d0] sm:$0xff]
    %v906 = vld [vmem:[#allocation8 + $0x7d8] sm:$0xff]
    %v907 = vld [vmem:[#allocation8 + $0x7e0] sm:$0xff]
    %v908 = vld [vmem:[#allocation8 + $0x7e8] sm:$0xff]
    %v909 = vld [vmem:[#allocation8 + $0x7f0] sm:$0xff]
    %v910 = vld [vmem:[#allocation8 + $0x7f8] sm:$0xff]
    %v911 = vld [vmem:[#allocation8 + $0x800] sm:$0xff]
    %v912 = vld [vmem:[#allocation8 + $0x808] sm:$0xff]
    %v913 = vld [vmem:[#allocation8 + $0x810] sm:$0xff]
    %v914 = vld [vmem:[#allocation8 + $0x818] sm:$0xff]
    %v915 = vld [vmem:[#allocation8 + $0x820] sm:$0xff]
    %v916 = vld [vmem:[#allocation8 + $0x828] sm:$0xff]
    %v917 = vld [vmem:[#allocation8 + $0x830] sm:$0xff]
    %v918 = vld [vmem:[#allocation8 + $0x838] sm:$0xff]
    %v919 = vld [vmem:[#allocation8 + $0x840] sm:$0xff]
    %v920 = vld [vmem:[#allocation8 + $0x848] sm:$0xff]
    %v921 = vld [vmem:[#allocation8 + $0x850] sm:$0xff]
    %v922 = vld [vmem:[#allocation8 + $0x858] sm:$0xff]
    %v923 = vld [vmem:[#allocation8 + $0x860] sm:$0xff]
    %v924 = vld [vmem:[#allocation8 + $0x868] sm:$0xff]
    %v925 = vld [vmem:[#allocation8 + $0x870] sm:$0xff]
    %v926 = vld [vmem:[#allocation8 + $0x878] sm:$0xff]
    %v927 = vld [vmem:[#allocation8 + $0x880] sm:$0xff]
    %v928 = vld [vmem:[#allocation8 + $0x888] sm:$0xff]
    %v929 = vld [vmem:[#allocation8 + $0x890] sm:$0xff]
    %v930 = vld [vmem:[#allocation8 + $0x898] sm:$0xff]
    %v931 = vld [vmem:[#allocation8 + $0x8a0] sm:$0xff]
    %v932 = vld [vmem:[#allocation8 + $0x8a8] sm:$0xff]
    %v933 = vld [vmem:[#allocation8 + $0x8b0] sm:$0xff]
    %v934 = vld [vmem:[#allocation8 + $0x8b8] sm:$0xff]
    %v935 = vld [vmem:[#allocation8 + $0x8c0] sm:$0xff]
    %v936 = vld [vmem:[#allocation8 + $0x8c8] sm:$0xff]
    %v937 = vld [vmem:[#allocation8 + $0x8d0] sm:$0xff]
    %v938 = vld [vmem:[#allocation8 + $0x8d8] sm:$0xff]
    %v939 = vld [vmem:[#allocation8 + $0x8e0] sm:$0xff]
    %v940 = vld [vmem:[#allocation8 + $0x8e8] sm:$0xff]
    %v941 = vld [vmem:[#allocation8 + $0x8f0] sm:$0xff]
    %v942 = vld [vmem:[#allocation8 + $0x8f8] sm:$0xff]
    %v943 = vld [vmem:[#allocation8 + $0x900] sm:$0xff]
    %v944 = vld [vmem:[#allocation8 + $0x908] sm:$0xff]
    %v945 = vld [vmem:[#allocation8 + $0x910] sm:$0xff]
    %v946 = vld [vmem:[#allocation8 + $0x918] sm:$0xff]
    %v947 = vld [vmem:[#allocation8 + $0x920] sm:$0xff]
    %v948 = vld [vmem:[#allocation8 + $0x928] sm:$0xff]
    %v949 = vld [vmem:[#allocation8 + $0x930] sm:$0xff]
    %v950 = vld [vmem:[#allocation8 + $0x938] sm:$0xff]
    %v951 = vld [vmem:[#allocation8 + $0x940] sm:$0xff]
    %v952 = vld [vmem:[#allocation8 + $0x948] sm:$0xff]
    %v953 = vld [vmem:[#allocation8 + $0x950] sm:$0xff]
    %v954 = vld [vmem:[#allocation8 + $0x958] sm:$0xff]
    %v955 = vld [vmem:[#allocation8 + $0x960] sm:$0xff]
    %v956 = vld [vmem:[#allocation8 + $0x968] sm:$0xff]
    %v957 = vld [vmem:[#allocation8 + $0x970] sm:$0xff]
    %v958 = vld [vmem:[#allocation8 + $0x978] sm:$0xff]
    %v959 = vld [vmem:[#allocation8 + $0x980] sm:$0xff]
    %v960 = vld [vmem:[#allocation8 + $0x988] sm:$0xff]
    %v961 = vld [vmem:[#allocation8 + $0x990] sm:$0xff]
    %v962 = vld [vmem:[#allocation8 + $0x998] sm:$0xff]
    %v963 = vld [vmem:[#allocation8 + $0x9a0] sm:$0xff]
    %v964 = vld [vmem:[#allocation8 + $0x9a8] sm:$0xff]
    %v965 = vld [vmem:[#allocation8 + $0x9b0] sm:$0xff]
    %v966 = vld [vmem:[#allocation8 + $0x9b8] sm:$0xff]
    %v967 = vld [vmem:[#allocation8 + $0x9c0] sm:$0xff]
    %v968 = vld [vmem:[#allocation8 + $0x9c8] sm:$0xff]
    %v969 = vld [vmem:[#allocation8 + $0x9d0] sm:$0xff]
    %v970 = vld [vmem:[#allocation8 + $0x9d8] sm:$0xff]
    %v971 = vld [vmem:[#allocation8 + $0x9e0] sm:$0xff]
    %v972 = vld [vmem:[#allocation8 + $0x9e8] sm:$0xff]
    %v973 = vld [vmem:[#allocation8 + $0x9f0] sm:$0xff]
    %v974 = vld [vmem:[#allocation8 + $0x9f8] sm:$0xff]
    %v975 = vld [vmem:[#allocation8 + $0xa00] sm:$0xff]
    %v976 = vld [vmem:[#allocation8 + $0xa08] sm:$0xff]
    %v977 = vld [vmem:[#allocation8 + $0xa10] sm:$0xff]
    %v978 = vld [vmem:[#allocation8 + $0xa18] sm:$0xff]
    %v979 = vld [vmem:[#allocation8 + $0xa20] sm:$0xff]
    %v980 = vld [vmem:[#allocation8 + $0xa28] sm:$0xff]
    %v981 = vld [vmem:[#allocation8 + $0xa30] sm:$0xff]
    %v982 = vld [vmem:[#allocation8 + $0xa38] sm:$0xff]
    %v983 = vld [vmem:[#allocation8 + $0xa40] sm:$0xff]
    %v984 = vld [vmem:[#allocation8 + $0xa48] sm:$0xff]
    %v985 = vld [vmem:[#allocation8 + $0xa50] sm:$0xff]
    %v986 = vld [vmem:[#allocation8 + $0xa58] sm:$0xff]
    %v987 = vld [vmem:[#allocation8 + $0xa60] sm:$0xff]
    %v988 = vld [vmem:[#allocation8 + $0xa68] sm:$0xff]
    %v989 = vld [vmem:[#allocation8 + $0xa70] sm:$0xff]
    %v990 = vld [vmem:[#allocation8 + $0xa78] sm:$0xff]
    %v991 = vld [vmem:[#allocation8 + $0xa80] sm:$0xff]
    %v992 = vld [vmem:[#allocation8 + $0xa88] sm:$0xff]
    %v993 = vld [vmem:[#allocation8 + $0xa90] sm:$0xff]
    %v994 = vld [vmem:[#allocation8 + $0xa98] sm:$0xff]
    %v995 = vld [vmem:[#allocation8 + $0xaa0] sm:$0xff]
    %v996 = vld [vmem:[#allocation8 + $0xaa8] sm:$0xff]
    %v997 = vld [vmem:[#allocation8 + $0xab0] sm:$0xff]
    %v998 = vld [vmem:[#allocation8 + $0xab8] sm:$0xff]
    %v999 = vld [vmem:[#allocation8 + $0xac0] sm:$0xff]
    %v1000 = vld [vmem:[#allocation8 + $0xac8] sm:$0xff]
    %v1001 = vld [vmem:[#allocation8 + $0xad0] sm:$0xff]
    %v1002 = vld [vmem:[#allocation8 + $0xad8] sm:$0xff]
    %v1003 = vld [vmem:[#allocation8 + $0xae0] sm:$0xff]
    %v1004 = vld [vmem:[#allocation8 + $0xae8] sm:$0xff]
    %v1005 = vld [vmem:[#allocation8 + $0xaf0] sm:$0xff]
    %v1006 = vld [vmem:[#allocation8 + $0xaf8] sm:$0xff]
    %v1007 = vld [vmem:[#allocation8 + $0xb00] sm:$0xff]
    %v1008 = vld [vmem:[#allocation8 + $0xb08] sm:$0xff]
    %v1009 = vld [vmem:[#allocation8 + $0xb10] sm:$0xff]
    %v1010 = vld [vmem:[#allocation8 + $0xb18] sm:$0xff]
    %v1011 = vld [vmem:[#allocation8 + $0xb20] sm:$0xff]
    %v1012 = vld [vmem:[#allocation8 + $0xb28] sm:$0xff]
    %v1013 = vld [vmem:[#allocation8 + $0xb30] sm:$0xff]
    %v1014 = vld [vmem:[#allocation8 + $0xb38] sm:$0xff]
    %v1015 = vld [vmem:[#allocation8 + $0xb40] sm:$0xff]
    %v1016 = vld [vmem:[#allocation8 + $0xb48] sm:$0xff]
    %v1017 = vld [vmem:[#allocation8 + $0xb50] sm:$0xff]
    %v1018 = vld [vmem:[#allocation8 + $0xb58] sm:$0xff]
    %v1019 = vld [vmem:[#allocation8 + $0xb60] sm:$0xff]
    %v1020 = vld [vmem:[#allocation8 + $0xb68] sm:$0xff]
    %v1021 = vld [vmem:[#allocation8 + $0xb70] sm:$0xff]
    %v1022 = vld [vmem:[#allocation8 + $0xb78] sm:$0xff]
    %v1023 = vld [vmem:[#allocation8 + $0xb80] sm:$0xff]
    %v1024 = vld [vmem:[#allocation8 + $0xb88] sm:$0xff]
    %v1025 = vld [vmem:[#allocation8 + $0xb90] sm:$0xff]
    %v1026 = vld [vmem:[#allocation8 + $0xb98] sm:$0xff]
    %v1027 = vld [vmem:[#allocation8 + $0xba0] sm:$0xff]
    %v1028 = vld [vmem:[#allocation8 + $0xba8] sm:$0xff]
    %v1029 = vld [vmem:[#allocation8 + $0xbb0] sm:$0xff]
    %v1030 = vld [vmem:[#allocation8 + $0xbb8] sm:$0xff]
    %v1031 = vld [vmem:[#allocation8 + $0xbc0] sm:$0xff]
    %v1032 = vld [vmem:[#allocation8 + $0xbc8] sm:$0xff]
    %v1033 = vld [vmem:[#allocation8 + $0xbd0] sm:$0xff]
    %v1034 = vld [vmem:[#allocation8 + $0xbd8] sm:$0xff]
    %v1035 = vld [vmem:[#allocation8 + $0xbe0] sm:$0xff]
    %v1036 = vld [vmem:[#allocation8 + $0xbe8] sm:$0xff]
    %v1037 = vld [vmem:[#allocation8 + $0xbf0] sm:$0xff]
    %v1038 = vld [vmem:[#allocation8 + $0xbf8] sm:$0xff]
    %v1039 = vld [vmem:[#allocation8 + $0xc00] sm:$0xff]
    %v1040 = vld [vmem:[#allocation8 + $0xc08] sm:$0xff]
    %v1041 = vld [vmem:[#allocation8 + $0xc10] sm:$0xff]
    %v1042 = vld [vmem:[#allocation8 + $0xc18] sm:$0xff]
    %v1043 = vld [vmem:[#allocation8 + $0xc20] sm:$0xff]
    %v1044 = vld [vmem:[#allocation8 + $0xc28] sm:$0xff]
    %v1045 = vld [vmem:[#allocation8 + $0xc30] sm:$0xff]
    %v1046 = vld [vmem:[#allocation8 + $0xc38] sm:$0xff]
    %v1047 = vld [vmem:[#allocation8 + $0xc40] sm:$0xff]
    %v1048 = vld [vmem:[#allocation8 + $0xc48] sm:$0xff]
    %v1049 = vld [vmem:[#allocation8 + $0xc50] sm:$0xff]
    %v1050 = vld [vmem:[#allocation8 + $0xc58] sm:$0xff]
    %v1051 = vld [vmem:[#allocation8 + $0xc60] sm:$0xff]
    %v1052 = vld [vmem:[#allocation8 + $0xc68] sm:$0xff]
    %v1053 = vld [vmem:[#allocation8 + $0xc70] sm:$0xff]
    %v1054 = vld [vmem:[#allocation8 + $0xc78] sm:$0xff]
    %v1055 = vld [vmem:[#allocation8 + $0xc80] sm:$0xff]
    %v1056 = vld [vmem:[#allocation8 + $0xc88] sm:$0xff]
    %v1057 = vld [vmem:[#allocation8 + $0xc90] sm:$0xff]
    %v1058 = vld [vmem:[#allocation8 + $0xc98] sm:$0xff]
    %v1059 = vld [vmem:[#allocation8 + $0xca0] sm:$0xff]
    %v1060 = vld [vmem:[#allocation8 + $0xca8] sm:$0xff]
    %v1061 = vld [vmem:[#allocation8 + $0xcb0] sm:$0xff]
    %v1062 = vld [vmem:[#allocation8 + $0xcb8] sm:$0xff]
    %v1063 = vld [vmem:[#allocation8 + $0xcc0] sm:$0xff]
    %v1064 = vld [vmem:[#allocation8 + $0xcc8] sm:$0xff]
    %v1065 = vld [vmem:[#allocation8 + $0xcd0] sm:$0xff]
    %v1066 = vld [vmem:[#allocation8 + $0xcd8] sm:$0xff]
    %v1067 = vld [vmem:[#allocation8 + $0xce0] sm:$0xff]
    %v1068 = vld [vmem:[#allocation8 + $0xce8] sm:$0xff]
    %v1069 = vld [vmem:[#allocation8 + $0xcf0] sm:$0xff]
    %v1070 = vld [vmem:[#allocation8 + $0xcf8] sm:$0xff]
    %v1071 = vld [vmem:[#allocation8 + $0xd00] sm:$0xff]
    %v1072 = vld [vmem:[#allocation8 + $0xd08] sm:$0xff]
    %v1073 = vld [vmem:[#allocation8 + $0xd10] sm:$0xff]
    %v1074 = vld [vmem:[#allocation8 + $0xd18] sm:$0xff]
    %v1075 = vld [vmem:[#allocation8 + $0xd20] sm:$0xff]
    %v1076 = vld [vmem:[#allocation8 + $0xd28] sm:$0xff]
    %v1077 = vld [vmem:[#allocation8 + $0xd30] sm:$0xff]
    %v1078 = vld [vmem:[#allocation8 + $0xd38] sm:$0xff]
    %v1079 = vld [vmem:[#allocation8 + $0xd40] sm:$0xff]
    %v1080 = vld [vmem:[#allocation8 + $0xd48] sm:$0xff]
    %v1081 = vld [vmem:[#allocation8 + $0xd50] sm:$0xff]
    %v1082 = vld [vmem:[#allocation8 + $0xd58] sm:$0xff]
    %v1083 = vld [vmem:[#allocation8 + $0xd60] sm:$0xff]
    %v1084 = vld [vmem:[#allocation8 + $0xd68] sm:$0xff]
    %v1085 = vld [vmem:[#allocation8 + $0xd70] sm:$0xff]
    %v1086 = vld [vmem:[#allocation8 + $0xd78] sm:$0xff]
    %v1087 = vld [vmem:[#allocation8 + $0xd80] sm:$0xff]
    %v1088 = vld [vmem:[#allocation8 + $0xd88] sm:$0xff]
    %v1089 = vld [vmem:[#allocation8 + $0xd90] sm:$0xff]
    %v1090 = vld [vmem:[#allocation8 + $0xd98] sm:$0xff]
    %v1091 = vld [vmem:[#allocation8 + $0xda0] sm:$0xff]
    %v1092 = vld [vmem:[#allocation8 + $0xda8] sm:$0xff]
    %v1093 = vld [vmem:[#allocation8 + $0xdb0] sm:$0xff]
    %v1094 = vld [vmem:[#allocation8 + $0xdb8] sm:$0xff]
    %v1095 = vld [vmem:[#allocation8 + $0xdc0] sm:$0xff]
    %v1096 = vld [vmem:[#allocation8 + $0xdc8] sm:$0xff]
    %v1097 = vld [vmem:[#allocation8 + $0xdd0] sm:$0xff]
    %v1098 = vld [vmem:[#allocation8 + $0xdd8] sm:$0xff]
    %v1099 = vld [vmem:[#allocation8 + $0xde0] sm:$0xff]
    %v1100 = vld [vmem:[#allocation8 + $0xde8] sm:$0xff]
    %v1101 = vld [vmem:[#allocation8 + $0xdf0] sm:$0xff]
    %v1102 = vld [vmem:[#allocation8 + $0xdf8] sm:$0xff]
    %v1103 = vld [vmem:[#allocation8 + $0xe00] sm:$0xff]
    %v1104 = vld [vmem:[#allocation8 + $0xe08] sm:$0xff]
    %v1105 = vld [vmem:[#allocation8 + $0xe10] sm:$0xff]
    %v1106 = vld [vmem:[#allocation8 + $0xe18] sm:$0xff]
    %v1107 = vld [vmem:[#allocation8 + $0xe20] sm:$0xff]
    %v1108 = vld [vmem:[#allocation8 + $0xe28] sm:$0xff]
    %v1109 = vld [vmem:[#allocation8 + $0xe30] sm:$0xff]
    %v1110 = vld [vmem:[#allocation8 + $0xe38] sm:$0xff]
    %v1111 = vld [vmem:[#allocation8 + $0xe40] sm:$0xff]
    %v1112 = vld [vmem:[#allocation8 + $0xe48] sm:$0xff]
    %v1113 = vld [vmem:[#allocation8 + $0xe50] sm:$0xff]
    %v1114 = vld [vmem:[#allocation8 + $0xe58] sm:$0xff]
    %v1115 = vld [vmem:[#allocation8 + $0xe60] sm:$0xff]
    %v1116 = vld [vmem:[#allocation8 + $0xe68] sm:$0xff]
    %v1117 = vld [vmem:[#allocation8 + $0xe70] sm:$0xff]
    %v1118 = vld [vmem:[#allocation8 + $0xe78] sm:$0xff]
    %v1119 = vld [vmem:[#allocation8 + $0xe80] sm:$0xff]
    %v1120 = vld [vmem:[#allocation8 + $0xe88] sm:$0xff]
    %v1121 = vld [vmem:[#allocation8 + $0xe90] sm:$0xff]
    %v1122 = vld [vmem:[#allocation8 + $0xe98] sm:$0xff]
    %v1123 = vld [vmem:[#allocation8 + $0xea0] sm:$0xff]
    %v1124 = vld [vmem:[#allocation8 + $0xea8] sm:$0xff]
    %v1125 = vld [vmem:[#allocation8 + $0xeb0] sm:$0xff]
    %v1126 = vld [vmem:[#allocation8 + $0xeb8] sm:$0xff]
    %v1127 = vld [vmem:[#allocation8 + $0xec0] sm:$0xff]
    %v1128 = vld [vmem:[#allocation8 + $0xec8] sm:$0xff]
    %v1129 = vld [vmem:[#allocation8 + $0xed0] sm:$0xff]
    %v1130 = vld [vmem:[#allocation8 + $0xed8] sm:$0xff]
    %v1131 = vld [vmem:[#allocation8 + $0xee0] sm:$0xff]
    %v1132 = vld [vmem:[#allocation8 + $0xee8] sm:$0xff]
    %v1133 = vld [vmem:[#allocation8 + $0xef0] sm:$0xff]
    %v1134 = vld [vmem:[#allocation8 + $0xef8] sm:$0xff]
    %v1135 = vld [vmem:[#allocation8 + $0xf00] sm:$0xff]
    %v1136 = vld [vmem:[#allocation8 + $0xf08] sm:$0xff]
    %v1137 = vld [vmem:[#allocation8 + $0xf10] sm:$0xff]
    %v1138 = vld [vmem:[#allocation8 + $0xf18] sm:$0xff]
    %v1139 = vld [vmem:[#allocation8 + $0xf20] sm:$0xff]
    %v1140 = vld [vmem:[#allocation8 + $0xf28] sm:$0xff]
    %v1141 = vld [vmem:[#allocation8 + $0xf30] sm:$0xff]
    %v1142 = vld [vmem:[#allocation8 + $0xf38] sm:$0xff]
    %v1143 = vld [vmem:[#allocation8 + $0xf40] sm:$0xff]
    %v1144 = vld [vmem:[#allocation8 + $0xf48] sm:$0xff]
    %v1145 = vld [vmem:[#allocation8 + $0xf50] sm:$0xff]
    %v1146 = vld [vmem:[#allocation8 + $0xf58] sm:$0xff]
    %v1147 = vld [vmem:[#allocation8 + $0xf60] sm:$0xff]
    %v1148 = vld [vmem:[#allocation8 + $0xf68] sm:$0xff]
    %v1149 = vld [vmem:[#allocation8 + $0xf70] sm:$0xff]
    %v1150 = vld [vmem:[#allocation8 + $0xf78] sm:$0xff]
    %v1151 = vld [vmem:[#allocation8 + $0xf80] sm:$0xff]
    %v1152 = vld [vmem:[#allocation8 + $0xf88] sm:$0xff]
    %v1153 = vld [vmem:[#allocation8 + $0xf90] sm:$0xff]
    %v1154 = vld [vmem:[#allocation8 + $0xf98] sm:$0xff]
    %v1155 = vld [vmem:[#allocation8 + $0xfa0] sm:$0xff]
    %v1156 = vld [vmem:[#allocation8 + $0xfa8] sm:$0xff]
    %v1157 = vld [vmem:[#allocation8 + $0xfb0] sm:$0xff]
    %v1158 = vld [vmem:[#allocation8 + $0xfb8] sm:$0xff]
    %v1159 = vld [vmem:[#allocation8 + $0xfc0] sm:$0xff]
    %v1160 = vld [vmem:[#allocation8 + $0xfc8] sm:$0xff]
    %v1161 = vld [vmem:[#allocation8 + $0xfd0] sm:$0xff]
    %v1162 = vld [vmem:[#allocation8 + $0xfd8] sm:$0xff]
    %v1163 = vld [vmem:[#allocation8 + $0xfe0] sm:$0xff]
    %v1164 = vld [vmem:[#allocation8 + $0xfe8] sm:$0xff]
    %v1165 = vld [vmem:[#allocation8 + $0xff0] sm:$0xff]
    %v1166 = vld [vmem:[#allocation8 + $0xff8] sm:$0xff]
    %v1167 = vld [vmem:[#allocation10] sm:$0xff]
    %v1169 = vlaneseq
    %v1170 = vshrl.u32 %v1169, 7
    %v1171 = vsub.s32 0, %v1170
    %v1172 = vrot.slane %v1167, %v1171
    %v1173 = vlaneseq
    %v1174 = vshrl.u32 %v1173, 7
    %v1175 = vsub.s32 1, %v1174
    %v1176 = vrot.slane %v1167, %v1175
    %v1177 = vlaneseq
    %v1178 = vshrl.u32 %v1177, 7
    %v1179 = vsub.s32 2, %v1178
    %v1180 = vrot.slane %v1167, %v1179
    %v1181 = vlaneseq
    %v1182 = vshrl.u32 %v1181, 7
    %v1183 = vsub.s32 3, %v1182
    %v1184 = vrot.slane %v1167, %v1183
    %v1185 = vlaneseq
    %v1186 = vshrl.u32 %v1185, 7
    %v1187 = vsub.s32 4, %v1186
    %v1188 = vrot.slane %v1167, %v1187
    %v1189 = vlaneseq
    %v1190 = vshrl.u32 %v1189, 7
    %v1191 = vsub.s32 5, %v1190
    %v1192 = vrot.slane %v1167, %v1191
    %v1193 = vlaneseq
    %v1194 = vshrl.u32 %v1193, 7
    %v1195 = vsub.s32 6, %v1194
    %v1196 = vrot.slane %v1167, %v1195
    %v1197 = vlaneseq
    %v1198 = vshrl.u32 %v1197, 7
    %v1199 = vsub.s32 7, %v1198
    %v1200 = vrot.slane %v1167, %v1199
    %v1721 = vunpack.c.l.b16 %v655
    %v1722 = vunpack.c.h.b16 %v655
    %v1723 = vunpack.c.l.b16 %v656
    %v1724 = vunpack.c.h.b16 %v656
    %v1725 = vunpack.c.l.b16 %v657
    %v1726 = vunpack.c.h.b16 %v657
    %v1727 = vunpack.c.l.b16 %v658
    %v1728 = vunpack.c.h.b16 %v658
    %v1729 = vunpack.c.l.b16 %v659
    %v1730 = vunpack.c.h.b16 %v659
    %v1731 = vunpack.c.l.b16 %v660
    %v1732 = vunpack.c.h.b16 %v660
    %v1733 = vunpack.c.l.b16 %v661
    %v1734 = vunpack.c.h.b16 %v661
    %v1735 = vunpack.c.l.b16 %v662
    %v1736 = vunpack.c.h.b16 %v662
    %v1737 = vunpack.c.l.b16 %v663
    %v1738 = vunpack.c.h.b16 %v663
    %v1739 = vunpack.c.l.b16 %v664
    %v1740 = vunpack.c.h.b16 %v664
    %v1741 = vunpack.c.l.b16 %v665
    %v1742 = vunpack.c.h.b16 %v665
    %v1743 = vunpack.c.l.b16 %v666
    %v1744 = vunpack.c.h.b16 %v666
    %v1745 = vunpack.c.l.b16 %v667
    %v1746 = vunpack.c.h.b16 %v667
    %v1747 = vunpack.c.l.b16 %v668
    %v1748 = vunpack.c.h.b16 %v668
    %v1749 = vunpack.c.l.b16 %v669
    %v1750 = vunpack.c.h.b16 %v669
    %v1751 = vunpack.c.l.b16 %v670
    %v1752 = vunpack.c.h.b16 %v670
    %v1753 = vunpack.c.l.b16 %v671
    %v1754 = vunpack.c.h.b16 %v671
    %v1755 = vunpack.c.l.b16 %v672
    %v1756 = vunpack.c.h.b16 %v672
    %v1757 = vunpack.c.l.b16 %v673
    %v1758 = vunpack.c.h.b16 %v673
    %v1759 = vunpack.c.l.b16 %v674
    %v1760 = vunpack.c.h.b16 %v674
    %v1761 = vunpack.c.l.b16 %v675
    %v1762 = vunpack.c.h.b16 %v675
    %v1763 = vunpack.c.l.b16 %v676
    %v1764 = vunpack.c.h.b16 %v676
    %v1765 = vunpack.c.l.b16 %v677
    %v1766 = vunpack.c.h.b16 %v677
    %v1767 = vunpack.c.l.b16 %v678
    %v1768 = vunpack.c.h.b16 %v678
    %v1769 = vunpack.c.l.b16 %v679
    %v1770 = vunpack.c.h.b16 %v679
    %v1771 = vunpack.c.l.b16 %v680
    %v1772 = vunpack.c.h.b16 %v680
    %v1773 = vunpack.c.l.b16 %v681
    %v1774 = vunpack.c.h.b16 %v681
    %v1775 = vunpack.c.l.b16 %v682
    %v1776 = vunpack.c.h.b16 %v682
    %v1777 = vunpack.c.l.b16 %v683
    %v1778 = vunpack.c.h.b16 %v683
    %v1779 = vunpack.c.l.b16 %v684
    %v1780 = vunpack.c.h.b16 %v684
    %v1781 = vunpack.c.l.b16 %v685
    %v1782 = vunpack.c.h.b16 %v685
    %v1783 = vunpack.c.l.b16 %v686
    %v1784 = vunpack.c.h.b16 %v686
    %v1785 = vunpack.c.l.b16 %v687
    %v1786 = vunpack.c.h.b16 %v687
    %v1787 = vunpack.c.l.b16 %v688
    %v1788 = vunpack.c.h.b16 %v688
    %v1789 = vunpack.c.l.b16 %v689
    %v1790 = vunpack.c.h.b16 %v689
    %v1791 = vunpack.c.l.b16 %v690
    %v1792 = vunpack.c.h.b16 %v690
    %v1793 = vunpack.c.l.b16 %v691
    %v1794 = vunpack.c.h.b16 %v691
    %v1795 = vunpack.c.l.b16 %v692
    %v1796 = vunpack.c.h.b16 %v692
    %v1797 = vunpack.c.l.b16 %v693
    %v1798 = vunpack.c.h.b16 %v693
    %v1799 = vunpack.c.l.b16 %v694
    %v1800 = vunpack.c.h.b16 %v694
    %v1801 = vunpack.c.l.b16 %v695
    %v1802 = vunpack.c.h.b16 %v695
    %v1803 = vunpack.c.l.b16 %v696
    %v1804 = vunpack.c.h.b16 %v696
    %v1805 = vunpack.c.l.b16 %v697
    %v1806 = vunpack.c.h.b16 %v697
    %v1807 = vunpack.c.l.b16 %v698
    %v1808 = vunpack.c.h.b16 %v698
    %v1809 = vunpack.c.l.b16 %v699
    %v1810 = vunpack.c.h.b16 %v699
    %v1811 = vunpack.c.l.b16 %v700
    %v1812 = vunpack.c.h.b16 %v700
    %v1813 = vunpack.c.l.b16 %v701
    %v1814 = vunpack.c.h.b16 %v701
    %v1815 = vunpack.c.l.b16 %v702
    %v1816 = vunpack.c.h.b16 %v702
    %v1817 = vunpack.c.l.b16 %v703
    %v1818 = vunpack.c.h.b16 %v703
    %v1819 = vunpack.c.l.b16 %v704
    %v1820 = vunpack.c.h.b16 %v704
    %v1821 = vunpack.c.l.b16 %v705
    %v1822 = vunpack.c.h.b16 %v705
    %v1823 = vunpack.c.l.b16 %v706
    %v1824 = vunpack.c.h.b16 %v706
    %v1825 = vunpack.c.l.b16 %v707
    %v1826 = vunpack.c.h.b16 %v707
    %v1827 = vunpack.c.l.b16 %v708
    %v1828 = vunpack.c.h.b16 %v708
    %v1829 = vunpack.c.l.b16 %v709
    %v1830 = vunpack.c.h.b16 %v709
    %v1831 = vunpack.c.l.b16 %v710
    %v1832 = vunpack.c.h.b16 %v710
    %v1833 = vunpack.c.l.b16 %v711
    %v1834 = vunpack.c.h.b16 %v711
    %v1835 = vunpack.c.l.b16 %v712
    %v1836 = vunpack.c.h.b16 %v712
    %v1837 = vunpack.c.l.b16 %v713
    %v1838 = vunpack.c.h.b16 %v713
    %v1839 = vunpack.c.l.b16 %v714
    %v1840 = vunpack.c.h.b16 %v714
    %v1841 = vunpack.c.l.b16 %v715
    %v1842 = vunpack.c.h.b16 %v715
    %v1843 = vunpack.c.l.b16 %v716
    %v1844 = vunpack.c.h.b16 %v716
    %v1845 = vunpack.c.l.b16 %v717
    %v1846 = vunpack.c.h.b16 %v717
    %v1847 = vunpack.c.l.b16 %v718
    %v1848 = vunpack.c.h.b16 %v718
    %v1849 = vunpack.c.l.b16 %v719
    %v1850 = vunpack.c.h.b16 %v719
    %v1851 = vunpack.c.l.b16 %v720
    %v1852 = vunpack.c.h.b16 %v720
    %v1853 = vunpack.c.l.b16 %v721
    %v1854 = vunpack.c.h.b16 %v721
    %v1855 = vunpack.c.l.b16 %v722
    %v1856 = vunpack.c.h.b16 %v722
    %v1857 = vunpack.c.l.b16 %v723
    %v1858 = vunpack.c.h.b16 %v723
    %v1859 = vunpack.c.l.b16 %v724
    %v1860 = vunpack.c.h.b16 %v724
    %v1861 = vunpack.c.l.b16 %v725
    %v1862 = vunpack.c.h.b16 %v725
    %v1863 = vunpack.c.l.b16 %v726
    %v1864 = vunpack.c.h.b16 %v726
    %v1865 = vunpack.c.l.b16 %v727
    %v1866 = vunpack.c.h.b16 %v727
    %v1867 = vunpack.c.l.b16 %v728
    %v1868 = vunpack.c.h.b16 %v728
    %v1869 = vunpack.c.l.b16 %v729
    %v1870 = vunpack.c.h.b16 %v729
    %v1871 = vunpack.c.l.b16 %v730
    %v1872 = vunpack.c.h.b16 %v730
    %v1873 = vunpack.c.l.b16 %v731
    %v1874 = vunpack.c.h.b16 %v731
    %v1875 = vunpack.c.l.b16 %v732
    %v1876 = vunpack.c.h.b16 %v732
    %v1877 = vunpack.c.l.b16 %v733
    %v1878 = vunpack.c.h.b16 %v733
    %v1879 = vunpack.c.l.b16 %v734
    %v1880 = vunpack.c.h.b16 %v734
    %v1881 = vunpack.c.l.b16 %v735
    %v1882 = vunpack.c.h.b16 %v735
    %v1883 = vunpack.c.l.b16 %v736
    %v1884 = vunpack.c.h.b16 %v736
    %v1885 = vunpack.c.l.b16 %v737
    %v1886 = vunpack.c.h.b16 %v737
    %v1887 = vunpack.c.l.b16 %v738
    %v1888 = vunpack.c.h.b16 %v738
    %v1889 = vunpack.c.l.b16 %v739
    %v1890 = vunpack.c.h.b16 %v739
    %v1891 = vunpack.c.l.b16 %v740
    %v1892 = vunpack.c.h.b16 %v740
    %v1893 = vunpack.c.l.b16 %v741
    %v1894 = vunpack.c.h.b16 %v741
    %v1895 = vunpack.c.l.b16 %v742
    %v1896 = vunpack.c.h.b16 %v742
    %v1897 = vunpack.c.l.b16 %v743
    %v1898 = vunpack.c.h.b16 %v743
    %v1899 = vunpack.c.l.b16 %v744
    %v1900 = vunpack.c.h.b16 %v744
    %v1901 = vunpack.c.l.b16 %v745
    %v1902 = vunpack.c.h.b16 %v745
    %v1903 = vunpack.c.l.b16 %v746
    %v1904 = vunpack.c.h.b16 %v746
    %v1905 = vunpack.c.l.b16 %v747
    %v1906 = vunpack.c.h.b16 %v747
    %v1907 = vunpack.c.l.b16 %v748
    %v1908 = vunpack.c.h.b16 %v748
    %v1909 = vunpack.c.l.b16 %v749
    %v1910 = vunpack.c.h.b16 %v749
    %v1911 = vunpack.c.l.b16 %v750
    %v1912 = vunpack.c.h.b16 %v750
    %v1913 = vunpack.c.l.b16 %v751
    %v1914 = vunpack.c.h.b16 %v751
    %v1915 = vunpack.c.l.b16 %v752
    %v1916 = vunpack.c.h.b16 %v752
    %v1917 = vunpack.c.l.b16 %v753
    %v1918 = vunpack.c.h.b16 %v753
    %v1919 = vunpack.c.l.b16 %v754
    %v1920 = vunpack.c.h.b16 %v754
    %v1921 = vunpack.c.l.b16 %v755
    %v1922 = vunpack.c.h.b16 %v755
    %v1923 = vunpack.c.l.b16 %v756
    %v1924 = vunpack.c.h.b16 %v756
    %v1925 = vunpack.c.l.b16 %v757
    %v1926 = vunpack.c.h.b16 %v757
    %v1927 = vunpack.c.l.b16 %v758
    %v1928 = vunpack.c.h.b16 %v758
    %v1929 = vunpack.c.l.b16 %v759
    %v1930 = vunpack.c.h.b16 %v759
    %v1931 = vunpack.c.l.b16 %v760
    %v1932 = vunpack.c.h.b16 %v760
    %v1933 = vunpack.c.l.b16 %v761
    %v1934 = vunpack.c.h.b16 %v761
    %v1935 = vunpack.c.l.b16 %v762
    %v1936 = vunpack.c.h.b16 %v762
    %v1937 = vunpack.c.l.b16 %v763
    %v1938 = vunpack.c.h.b16 %v763
    %v1939 = vunpack.c.l.b16 %v764
    %v1940 = vunpack.c.h.b16 %v764
    %v1941 = vunpack.c.l.b16 %v765
    %v1942 = vunpack.c.h.b16 %v765
    %v1943 = vunpack.c.l.b16 %v766
    %v1944 = vunpack.c.h.b16 %v766
    %v1945 = vunpack.c.l.b16 %v767
    %v1946 = vunpack.c.h.b16 %v767
    %v1947 = vunpack.c.l.b16 %v768
    %v1948 = vunpack.c.h.b16 %v768
    %v1949 = vunpack.c.l.b16 %v769
    %v1950 = vunpack.c.h.b16 %v769
    %v1951 = vunpack.c.l.b16 %v770
    %v1952 = vunpack.c.h.b16 %v770
    %v1953 = vunpack.c.l.b16 %v771
    %v1954 = vunpack.c.h.b16 %v771
    %v1955 = vunpack.c.l.b16 %v772
    %v1956 = vunpack.c.h.b16 %v772
    %v1957 = vunpack.c.l.b16 %v773
    %v1958 = vunpack.c.h.b16 %v773
    %v1959 = vunpack.c.l.b16 %v774
    %v1960 = vunpack.c.h.b16 %v774
    %v1961 = vunpack.c.l.b16 %v775
    %v1962 = vunpack.c.h.b16 %v775
    %v1963 = vunpack.c.l.b16 %v776
    %v1964 = vunpack.c.h.b16 %v776
    %v1965 = vunpack.c.l.b16 %v777
    %v1966 = vunpack.c.h.b16 %v777
    %v1967 = vunpack.c.l.b16 %v778
    %v1968 = vunpack.c.h.b16 %v778
    %v1969 = vunpack.c.l.b16 %v779
    %v1970 = vunpack.c.h.b16 %v779
    %v1971 = vunpack.c.l.b16 %v780
    %v1972 = vunpack.c.h.b16 %v780
    %v1973 = vunpack.c.l.b16 %v781
    %v1974 = vunpack.c.h.b16 %v781
    %v1975 = vunpack.c.l.b16 %v782
    %v1976 = vunpack.c.h.b16 %v782
    %v1977 = vunpack.c.l.b16 %v783
    %v1978 = vunpack.c.h.b16 %v783
    %v1979 = vunpack.c.l.b16 %v784
    %v1980 = vunpack.c.h.b16 %v784
    %v1981 = vunpack.c.l.b16 %v785
    %v1982 = vunpack.c.h.b16 %v785
    %v1983 = vunpack.c.l.b16 %v786
    %v1984 = vunpack.c.h.b16 %v786
    %v1985 = vunpack.c.l.b16 %v787
    %v1986 = vunpack.c.h.b16 %v787
    %v1987 = vunpack.c.l.b16 %v788
    %v1988 = vunpack.c.h.b16 %v788
    %v1989 = vunpack.c.l.b16 %v789
    %v1990 = vunpack.c.h.b16 %v789
    %v1991 = vunpack.c.l.b16 %v790
    %v1992 = vunpack.c.h.b16 %v790
    %v1993 = vunpack.c.l.b16 %v791
    %v1994 = vunpack.c.h.b16 %v791
    %v1995 = vunpack.c.l.b16 %v792
    %v1996 = vunpack.c.h.b16 %v792
    %v1997 = vunpack.c.l.b16 %v793
    %v1998 = vunpack.c.h.b16 %v793
    %v1999 = vunpack.c.l.b16 %v794
    %v2000 = vunpack.c.h.b16 %v794
    %v2001 = vunpack.c.l.b16 %v795
    %v2002 = vunpack.c.h.b16 %v795
    %v2003 = vunpack.c.l.b16 %v796
    %v2004 = vunpack.c.h.b16 %v796
    %v2005 = vunpack.c.l.b16 %v797
    %v2006 = vunpack.c.h.b16 %v797
    %v2007 = vunpack.c.l.b16 %v798
    %v2008 = vunpack.c.h.b16 %v798
    %v2009 = vunpack.c.l.b16 %v799
    %v2010 = vunpack.c.h.b16 %v799
    %v2011 = vunpack.c.l.b16 %v800
    %v2012 = vunpack.c.h.b16 %v800
    %v2013 = vunpack.c.l.b16 %v801
    %v2014 = vunpack.c.h.b16 %v801
    %v2015 = vunpack.c.l.b16 %v802
    %v2016 = vunpack.c.h.b16 %v802
    %v2017 = vunpack.c.l.b16 %v803
    %v2018 = vunpack.c.h.b16 %v803
    %v2019 = vunpack.c.l.b16 %v804
    %v2020 = vunpack.c.h.b16 %v804
    %v2021 = vunpack.c.l.b16 %v805
    %v2022 = vunpack.c.h.b16 %v805
    %v2023 = vunpack.c.l.b16 %v806
    %v2024 = vunpack.c.h.b16 %v806
    %v2025 = vunpack.c.l.b16 %v807
    %v2026 = vunpack.c.h.b16 %v807
    %v2027 = vunpack.c.l.b16 %v808
    %v2028 = vunpack.c.h.b16 %v808
    %v2029 = vunpack.c.l.b16 %v809
    %v2030 = vunpack.c.h.b16 %v809
    %v2031 = vunpack.c.l.b16 %v810
    %v2032 = vunpack.c.h.b16 %v810
    %v2033 = vunpack.c.l.b16 %v811
    %v2034 = vunpack.c.h.b16 %v811
    %v2035 = vunpack.c.l.b16 %v812
    %v2036 = vunpack.c.h.b16 %v812
    %v2037 = vunpack.c.l.b16 %v813
    %v2038 = vunpack.c.h.b16 %v813
    %v2039 = vunpack.c.l.b16 %v814
    %v2040 = vunpack.c.h.b16 %v814
    %v2041 = vunpack.c.l.b16 %v815
    %v2042 = vunpack.c.h.b16 %v815
    %v2043 = vunpack.c.l.b16 %v816
    %v2044 = vunpack.c.h.b16 %v816
    %v2045 = vunpack.c.l.b16 %v817
    %v2046 = vunpack.c.h.b16 %v817
    %v2047 = vunpack.c.l.b16 %v818
    %v2048 = vunpack.c.h.b16 %v818
    %v2049 = vunpack.c.l.b16 %v819
    %v2050 = vunpack.c.h.b16 %v819
    %v2051 = vunpack.c.l.b16 %v820
    %v2052 = vunpack.c.h.b16 %v820
    %v2053 = vunpack.c.l.b16 %v821
    %v2054 = vunpack.c.h.b16 %v821
    %v2055 = vunpack.c.l.b16 %v822
    %v2056 = vunpack.c.h.b16 %v822
    %v2057 = vunpack.c.l.b16 %v823
    %v2058 = vunpack.c.h.b16 %v823
    %v2059 = vunpack.c.l.b16 %v824
    %v2060 = vunpack.c.h.b16 %v824
    %v2061 = vunpack.c.l.b16 %v825
    %v2062 = vunpack.c.h.b16 %v825
    %v2063 = vunpack.c.l.b16 %v826
    %v2064 = vunpack.c.h.b16 %v826
    %v2065 = vunpack.c.l.b16 %v827
    %v2066 = vunpack.c.h.b16 %v827
    %v2067 = vunpack.c.l.b16 %v828
    %v2068 = vunpack.c.h.b16 %v828
    %v2069 = vunpack.c.l.b16 %v829
    %v2070 = vunpack.c.h.b16 %v829
    %v2071 = vunpack.c.l.b16 %v830
    %v2072 = vunpack.c.h.b16 %v830
    %v2073 = vunpack.c.l.b16 %v831
    %v2074 = vunpack.c.h.b16 %v831
    %v2075 = vunpack.c.l.b16 %v832
    %v2076 = vunpack.c.h.b16 %v832
    %v2077 = vunpack.c.l.b16 %v833
    %v2078 = vunpack.c.h.b16 %v833
    %v2079 = vunpack.c.l.b16 %v834
    %v2080 = vunpack.c.h.b16 %v834
    %v2081 = vunpack.c.l.b16 %v835
    %v2082 = vunpack.c.h.b16 %v835
    %v2083 = vunpack.c.l.b16 %v836
    %v2084 = vunpack.c.h.b16 %v836
    %v2085 = vunpack.c.l.b16 %v837
    %v2086 = vunpack.c.h.b16 %v837
    %v2087 = vunpack.c.l.b16 %v838
    %v2088 = vunpack.c.h.b16 %v838
    %v2089 = vunpack.c.l.b16 %v839
    %v2090 = vunpack.c.h.b16 %v839
    %v2091 = vunpack.c.l.b16 %v840
    %v2092 = vunpack.c.h.b16 %v840
    %v2093 = vunpack.c.l.b16 %v841
    %v2094 = vunpack.c.h.b16 %v841
    %v2095 = vunpack.c.l.b16 %v842
    %v2096 = vunpack.c.h.b16 %v842
    %v2097 = vunpack.c.l.b16 %v843
    %v2098 = vunpack.c.h.b16 %v843
    %v2099 = vunpack.c.l.b16 %v844
    %v2100 = vunpack.c.h.b16 %v844
    %v2101 = vunpack.c.l.b16 %v845
    %v2102 = vunpack.c.h.b16 %v845
    %v2103 = vunpack.c.l.b16 %v846
    %v2104 = vunpack.c.h.b16 %v846
    %v2105 = vunpack.c.l.b16 %v847
    %v2106 = vunpack.c.h.b16 %v847
    %v2107 = vunpack.c.l.b16 %v848
    %v2108 = vunpack.c.h.b16 %v848
    %v2109 = vunpack.c.l.b16 %v849
    %v2110 = vunpack.c.h.b16 %v849
    %v2111 = vunpack.c.l.b16 %v850
    %v2112 = vunpack.c.h.b16 %v850
    %v2113 = vunpack.c.l.b16 %v851
    %v2114 = vunpack.c.h.b16 %v851
    %v2115 = vunpack.c.l.b16 %v852
    %v2116 = vunpack.c.h.b16 %v852
    %v2117 = vunpack.c.l.b16 %v853
    %v2118 = vunpack.c.h.b16 %v853
    %v2119 = vunpack.c.l.b16 %v854
    %v2120 = vunpack.c.h.b16 %v854
    %v2121 = vunpack.c.l.b16 %v855
    %v2122 = vunpack.c.h.b16 %v855
    %v2123 = vunpack.c.l.b16 %v856
    %v2124 = vunpack.c.h.b16 %v856
    %v2125 = vunpack.c.l.b16 %v857
    %v2126 = vunpack.c.h.b16 %v857
    %v2127 = vunpack.c.l.b16 %v858
    %v2128 = vunpack.c.h.b16 %v858
    %v2129 = vunpack.c.l.b16 %v859
    %v2130 = vunpack.c.h.b16 %v859
    %v2131 = vunpack.c.l.b16 %v860
    %v2132 = vunpack.c.h.b16 %v860
    %v2133 = vunpack.c.l.b16 %v861
    %v2134 = vunpack.c.h.b16 %v861
    %v2135 = vunpack.c.l.b16 %v862
    %v2136 = vunpack.c.h.b16 %v862
    %v2137 = vunpack.c.l.b16 %v863
    %v2138 = vunpack.c.h.b16 %v863
    %v2139 = vunpack.c.l.b16 %v864
    %v2140 = vunpack.c.h.b16 %v864
    %v2141 = vunpack.c.l.b16 %v865
    %v2142 = vunpack.c.h.b16 %v865
    %v2143 = vunpack.c.l.b16 %v866
    %v2144 = vunpack.c.h.b16 %v866
    %v2145 = vunpack.c.l.b16 %v867
    %v2146 = vunpack.c.h.b16 %v867
    %v2147 = vunpack.c.l.b16 %v868
    %v2148 = vunpack.c.h.b16 %v868
    %v2149 = vunpack.c.l.b16 %v869
    %v2150 = vunpack.c.h.b16 %v869
    %v2151 = vunpack.c.l.b16 %v870
    %v2152 = vunpack.c.h.b16 %v870
    %v2153 = vunpack.c.l.b16 %v871
    %v2154 = vunpack.c.h.b16 %v871
    %v2155 = vunpack.c.l.b16 %v872
    %v2156 = vunpack.c.h.b16 %v872
    %v2157 = vunpack.c.l.b16 %v873
    %v2158 = vunpack.c.h.b16 %v873
    %v2159 = vunpack.c.l.b16 %v874
    %v2160 = vunpack.c.h.b16 %v874
    %v2161 = vunpack.c.l.b16 %v875
    %v2162 = vunpack.c.h.b16 %v875
    %v2163 = vunpack.c.l.b16 %v876
    %v2164 = vunpack.c.h.b16 %v876
    %v2165 = vunpack.c.l.b16 %v877
    %v2166 = vunpack.c.h.b16 %v877
    %v2167 = vunpack.c.l.b16 %v878
    %v2168 = vunpack.c.h.b16 %v878
    %v2169 = vunpack.c.l.b16 %v879
    %v2170 = vunpack.c.h.b16 %v879
    %v2171 = vunpack.c.l.b16 %v880
    %v2172 = vunpack.c.h.b16 %v880
    %v2173 = vunpack.c.l.b16 %v881
    %v2174 = vunpack.c.h.b16 %v881
    %v2175 = vunpack.c.l.b16 %v882
    %v2176 = vunpack.c.h.b16 %v882
    %v2177 = vunpack.c.l.b16 %v883
    %v2178 = vunpack.c.h.b16 %v883
    %v2179 = vunpack.c.l.b16 %v884
    %v2180 = vunpack.c.h.b16 %v884
    %v2181 = vunpack.c.l.b16 %v885
    %v2182 = vunpack.c.h.b16 %v885
    %v2183 = vunpack.c.l.b16 %v886
    %v2184 = vunpack.c.h.b16 %v886
    %v2185 = vunpack.c.l.b16 %v887
    %v2186 = vunpack.c.h.b16 %v887
    %v2187 = vunpack.c.l.b16 %v888
    %v2188 = vunpack.c.h.b16 %v888
    %v2189 = vunpack.c.l.b16 %v889
    %v2190 = vunpack.c.h.b16 %v889
    %v2191 = vunpack.c.l.b16 %v890
    %v2192 = vunpack.c.h.b16 %v890
    %v2193 = vunpack.c.l.b16 %v891
    %v2194 = vunpack.c.h.b16 %v891
    %v2195 = vunpack.c.l.b16 %v892
    %v2196 = vunpack.c.h.b16 %v892
    %v2197 = vunpack.c.l.b16 %v893
    %v2198 = vunpack.c.h.b16 %v893
    %v2199 = vunpack.c.l.b16 %v894
    %v2200 = vunpack.c.h.b16 %v894
    %v2201 = vunpack.c.l.b16 %v895
    %v2202 = vunpack.c.h.b16 %v895
    %v2203 = vunpack.c.l.b16 %v896
    %v2204 = vunpack.c.h.b16 %v896
    %v2205 = vunpack.c.l.b16 %v897
    %v2206 = vunpack.c.h.b16 %v897
    %v2207 = vunpack.c.l.b16 %v898
    %v2208 = vunpack.c.h.b16 %v898
    %v2209 = vunpack.c.l.b16 %v899
    %v2210 = vunpack.c.h.b16 %v899
    %v2211 = vunpack.c.l.b16 %v900
    %v2212 = vunpack.c.h.b16 %v900
    %v2213 = vunpack.c.l.b16 %v901
    %v2214 = vunpack.c.h.b16 %v901
    %v2215 = vunpack.c.l.b16 %v902
    %v2216 = vunpack.c.h.b16 %v902
    %v2217 = vunpack.c.l.b16 %v903
    %v2218 = vunpack.c.h.b16 %v903
    %v2219 = vunpack.c.l.b16 %v904
    %v2220 = vunpack.c.h.b16 %v904
    %v2221 = vunpack.c.l.b16 %v905
    %v2222 = vunpack.c.h.b16 %v905
    %v2223 = vunpack.c.l.b16 %v906
    %v2224 = vunpack.c.h.b16 %v906
    %v2225 = vunpack.c.l.b16 %v907
    %v2226 = vunpack.c.h.b16 %v907
    %v2227 = vunpack.c.l.b16 %v908
    %v2228 = vunpack.c.h.b16 %v908
    %v2229 = vunpack.c.l.b16 %v909
    %v2230 = vunpack.c.h.b16 %v909
    %v2231 = vunpack.c.l.b16 %v910
    %v2232 = vunpack.c.h.b16 %v910
    %v2233 = vunpack.c.l.b16 %v911
    %v2234 = vunpack.c.h.b16 %v911
    %v2235 = vunpack.c.l.b16 %v912
    %v2236 = vunpack.c.h.b16 %v912
    %v2237 = vunpack.c.l.b16 %v913
    %v2238 = vunpack.c.h.b16 %v913
    %v2239 = vunpack.c.l.b16 %v914
    %v2240 = vunpack.c.h.b16 %v914
    %v2241 = vunpack.c.l.b16 %v915
    %v2242 = vunpack.c.h.b16 %v915
    %v2243 = vunpack.c.l.b16 %v916
    %v2244 = vunpack.c.h.b16 %v916
    %v2245 = vunpack.c.l.b16 %v917
    %v2246 = vunpack.c.h.b16 %v917
    %v2247 = vunpack.c.l.b16 %v918
    %v2248 = vunpack.c.h.b16 %v918
    %v2249 = vunpack.c.l.b16 %v919
    %v2250 = vunpack.c.h.b16 %v919
    %v2251 = vunpack.c.l.b16 %v920
    %v2252 = vunpack.c.h.b16 %v920
    %v2253 = vunpack.c.l.b16 %v921
    %v2254 = vunpack.c.h.b16 %v921
    %v2255 = vunpack.c.l.b16 %v922
    %v2256 = vunpack.c.h.b16 %v922
    %v2257 = vunpack.c.l.b16 %v923
    %v2258 = vunpack.c.h.b16 %v923
    %v2259 = vunpack.c.l.b16 %v924
    %v2260 = vunpack.c.h.b16 %v924
    %v2261 = vunpack.c.l.b16 %v925
    %v2262 = vunpack.c.h.b16 %v925
    %v2263 = vunpack.c.l.b16 %v926
    %v2264 = vunpack.c.h.b16 %v926
    %v2265 = vunpack.c.l.b16 %v927
    %v2266 = vunpack.c.h.b16 %v927
    %v2267 = vunpack.c.l.b16 %v928
    %v2268 = vunpack.c.h.b16 %v928
    %v2269 = vunpack.c.l.b16 %v929
    %v2270 = vunpack.c.h.b16 %v929
    %v2271 = vunpack.c.l.b16 %v930
    %v2272 = vunpack.c.h.b16 %v930
    %v2273 = vunpack.c.l.b16 %v931
    %v2274 = vunpack.c.h.b16 %v931
    %v2275 = vunpack.c.l.b16 %v932
    %v2276 = vunpack.c.h.b16 %v932
    %v2277 = vunpack.c.l.b16 %v933
    %v2278 = vunpack.c.h.b16 %v933
    %v2279 = vunpack.c.l.b16 %v934
    %v2280 = vunpack.c.h.b16 %v934
    %v2281 = vunpack.c.l.b16 %v935
    %v2282 = vunpack.c.h.b16 %v935
    %v2283 = vunpack.c.l.b16 %v936
    %v2284 = vunpack.c.h.b16 %v936
    %v2285 = vunpack.c.l.b16 %v937
    %v2286 = vunpack.c.h.b16 %v937
    %v2287 = vunpack.c.l.b16 %v938
    %v2288 = vunpack.c.h.b16 %v938
    %v2289 = vunpack.c.l.b16 %v939
    %v2290 = vunpack.c.h.b16 %v939
    %v2291 = vunpack.c.l.b16 %v940
    %v2292 = vunpack.c.h.b16 %v940
    %v2293 = vunpack.c.l.b16 %v941
    %v2294 = vunpack.c.h.b16 %v941
    %v2295 = vunpack.c.l.b16 %v942
    %v2296 = vunpack.c.h.b16 %v942
    %v2297 = vunpack.c.l.b16 %v943
    %v2298 = vunpack.c.h.b16 %v943
    %v2299 = vunpack.c.l.b16 %v944
    %v2300 = vunpack.c.h.b16 %v944
    %v2301 = vunpack.c.l.b16 %v945
    %v2302 = vunpack.c.h.b16 %v945
    %v2303 = vunpack.c.l.b16 %v946
    %v2304 = vunpack.c.h.b16 %v946
    %v2305 = vunpack.c.l.b16 %v947
    %v2306 = vunpack.c.h.b16 %v947
    %v2307 = vunpack.c.l.b16 %v948
    %v2308 = vunpack.c.h.b16 %v948
    %v2309 = vunpack.c.l.b16 %v949
    %v2310 = vunpack.c.h.b16 %v949
    %v2311 = vunpack.c.l.b16 %v950
    %v2312 = vunpack.c.h.b16 %v950
    %v2313 = vunpack.c.l.b16 %v951
    %v2314 = vunpack.c.h.b16 %v951
    %v2315 = vunpack.c.l.b16 %v952
    %v2316 = vunpack.c.h.b16 %v952
    %v2317 = vunpack.c.l.b16 %v953
    %v2318 = vunpack.c.h.b16 %v953
    %v2319 = vunpack.c.l.b16 %v954
    %v2320 = vunpack.c.h.b16 %v954
    %v2321 = vunpack.c.l.b16 %v955
    %v2322 = vunpack.c.h.b16 %v955
    %v2323 = vunpack.c.l.b16 %v956
    %v2324 = vunpack.c.h.b16 %v956
    %v2325 = vunpack.c.l.b16 %v957
    %v2326 = vunpack.c.h.b16 %v957
    %v2327 = vunpack.c.l.b16 %v958
    %v2328 = vunpack.c.h.b16 %v958
    %v2329 = vunpack.c.l.b16 %v959
    %v2330 = vunpack.c.h.b16 %v959
    %v2331 = vunpack.c.l.b16 %v960
    %v2332 = vunpack.c.h.b16 %v960
    %v2333 = vunpack.c.l.b16 %v961
    %v2334 = vunpack.c.h.b16 %v961
    %v2335 = vunpack.c.l.b16 %v962
    %v2336 = vunpack.c.h.b16 %v962
    %v2337 = vunpack.c.l.b16 %v963
    %v2338 = vunpack.c.h.b16 %v963
    %v2339 = vunpack.c.l.b16 %v964
    %v2340 = vunpack.c.h.b16 %v964
    %v2341 = vunpack.c.l.b16 %v965
    %v2342 = vunpack.c.h.b16 %v965
    %v2343 = vunpack.c.l.b16 %v966
    %v2344 = vunpack.c.h.b16 %v966
    %v2345 = vunpack.c.l.b16 %v967
    %v2346 = vunpack.c.h.b16 %v967
    %v2347 = vunpack.c.l.b16 %v968
    %v2348 = vunpack.c.h.b16 %v968
    %v2349 = vunpack.c.l.b16 %v969
    %v2350 = vunpack.c.h.b16 %v969
    %v2351 = vunpack.c.l.b16 %v970
    %v2352 = vunpack.c.h.b16 %v970
    %v2353 = vunpack.c.l.b16 %v971
    %v2354 = vunpack.c.h.b16 %v971
    %v2355 = vunpack.c.l.b16 %v972
    %v2356 = vunpack.c.h.b16 %v972
    %v2357 = vunpack.c.l.b16 %v973
    %v2358 = vunpack.c.h.b16 %v973
    %v2359 = vunpack.c.l.b16 %v974
    %v2360 = vunpack.c.h.b16 %v974
    %v2361 = vunpack.c.l.b16 %v975
    %v2362 = vunpack.c.h.b16 %v975
    %v2363 = vunpack.c.l.b16 %v976
    %v2364 = vunpack.c.h.b16 %v976
    %v2365 = vunpack.c.l.b16 %v977
    %v2366 = vunpack.c.h.b16 %v977
    %v2367 = vunpack.c.l.b16 %v978
    %v2368 = vunpack.c.h.b16 %v978
    %v2369 = vunpack.c.l.b16 %v979
    %v2370 = vunpack.c.h.b16 %v979
    %v2371 = vunpack.c.l.b16 %v980
    %v2372 = vunpack.c.h.b16 %v980
    %v2373 = vunpack.c.l.b16 %v981
    %v2374 = vunpack.c.h.b16 %v981
    %v2375 = vunpack.c.l.b16 %v982
    %v2376 = vunpack.c.h.b16 %v982
    %v2377 = vunpack.c.l.b16 %v983
    %v2378 = vunpack.c.h.b16 %v983
    %v2379 = vunpack.c.l.b16 %v984
    %v2380 = vunpack.c.h.b16 %v984
    %v2381 = vunpack.c.l.b16 %v985
    %v2382 = vunpack.c.h.b16 %v985
    %v2383 = vunpack.c.l.b16 %v986
    %v2384 = vunpack.c.h.b16 %v986
    %v2385 = vunpack.c.l.b16 %v987
    %v2386 = vunpack.c.h.b16 %v987
    %v2387 = vunpack.c.l.b16 %v988
    %v2388 = vunpack.c.h.b16 %v988
    %v2389 = vunpack.c.l.b16 %v989
    %v2390 = vunpack.c.h.b16 %v989
    %v2391 = vunpack.c.l.b16 %v990
    %v2392 = vunpack.c.h.b16 %v990
    %v2393 = vunpack.c.l.b16 %v991
    %v2394 = vunpack.c.h.b16 %v991
    %v2395 = vunpack.c.l.b16 %v992
    %v2396 = vunpack.c.h.b16 %v992
    %v2397 = vunpack.c.l.b16 %v993
    %v2398 = vunpack.c.h.b16 %v993
    %v2399 = vunpack.c.l.b16 %v994
    %v2400 = vunpack.c.h.b16 %v994
    %v2401 = vunpack.c.l.b16 %v995
    %v2402 = vunpack.c.h.b16 %v995
    %v2403 = vunpack.c.l.b16 %v996
    %v2404 = vunpack.c.h.b16 %v996
    %v2405 = vunpack.c.l.b16 %v997
    %v2406 = vunpack.c.h.b16 %v997
    %v2407 = vunpack.c.l.b16 %v998
    %v2408 = vunpack.c.h.b16 %v998
    %v2409 = vunpack.c.l.b16 %v999
    %v2410 = vunpack.c.h.b16 %v999
    %v2411 = vunpack.c.l.b16 %v1000
    %v2412 = vunpack.c.h.b16 %v1000
    %v2413 = vunpack.c.l.b16 %v1001
    %v2414 = vunpack.c.h.b16 %v1001
    %v2415 = vunpack.c.l.b16 %v1002
    %v2416 = vunpack.c.h.b16 %v1002
    %v2417 = vunpack.c.l.b16 %v1003
    %v2418 = vunpack.c.h.b16 %v1003
    %v2419 = vunpack.c.l.b16 %v1004
    %v2420 = vunpack.c.h.b16 %v1004
    %v2421 = vunpack.c.l.b16 %v1005
    %v2422 = vunpack.c.h.b16 %v1005
    %v2423 = vunpack.c.l.b16 %v1006
    %v2424 = vunpack.c.h.b16 %v1006
    %v2425 = vunpack.c.l.b16 %v1007
    %v2426 = vunpack.c.h.b16 %v1007
    %v2427 = vunpack.c.l.b16 %v1008
    %v2428 = vunpack.c.h.b16 %v1008
    %v2429 = vunpack.c.l.b16 %v1009
    %v2430 = vunpack.c.h.b16 %v1009
    %v2431 = vunpack.c.l.b16 %v1010
    %v2432 = vunpack.c.h.b16 %v1010
    %v2433 = vunpack.c.l.b16 %v1011
    %v2434 = vunpack.c.h.b16 %v1011
    %v2435 = vunpack.c.l.b16 %v1012
    %v2436 = vunpack.c.h.b16 %v1012
    %v2437 = vunpack.c.l.b16 %v1013
    %v2438 = vunpack.c.h.b16 %v1013
    %v2439 = vunpack.c.l.b16 %v1014
    %v2440 = vunpack.c.h.b16 %v1014
    %v2441 = vunpack.c.l.b16 %v1015
    %v2442 = vunpack.c.h.b16 %v1015
    %v2443 = vunpack.c.l.b16 %v1016
    %v2444 = vunpack.c.h.b16 %v1016
    %v2445 = vunpack.c.l.b16 %v1017
    %v2446 = vunpack.c.h.b16 %v1017
    %v2447 = vunpack.c.l.b16 %v1018
    %v2448 = vunpack.c.h.b16 %v1018
    %v2449 = vunpack.c.l.b16 %v1019
    %v2450 = vunpack.c.h.b16 %v1019
    %v2451 = vunpack.c.l.b16 %v1020
    %v2452 = vunpack.c.h.b16 %v1020
    %v2453 = vunpack.c.l.b16 %v1021
    %v2454 = vunpack.c.h.b16 %v1021
    %v2455 = vunpack.c.l.b16 %v1022
    %v2456 = vunpack.c.h.b16 %v1022
    %v2457 = vunpack.c.l.b16 %v1023
    %v2458 = vunpack.c.h.b16 %v1023
    %v2459 = vunpack.c.l.b16 %v1024
    %v2460 = vunpack.c.h.b16 %v1024
    %v2461 = vunpack.c.l.b16 %v1025
    %v2462 = vunpack.c.h.b16 %v1025
    %v2463 = vunpack.c.l.b16 %v1026
    %v2464 = vunpack.c.h.b16 %v1026
    %v2465 = vunpack.c.l.b16 %v1027
    %v2466 = vunpack.c.h.b16 %v1027
    %v2467 = vunpack.c.l.b16 %v1028
    %v2468 = vunpack.c.h.b16 %v1028
    %v2469 = vunpack.c.l.b16 %v1029
    %v2470 = vunpack.c.h.b16 %v1029
    %v2471 = vunpack.c.l.b16 %v1030
    %v2472 = vunpack.c.h.b16 %v1030
    %v2473 = vunpack.c.l.b16 %v1031
    %v2474 = vunpack.c.h.b16 %v1031
    %v2475 = vunpack.c.l.b16 %v1032
    %v2476 = vunpack.c.h.b16 %v1032
    %v2477 = vunpack.c.l.b16 %v1033
    %v2478 = vunpack.c.h.b16 %v1033
    %v2479 = vunpack.c.l.b16 %v1034
    %v2480 = vunpack.c.h.b16 %v1034
    %v2481 = vunpack.c.l.b16 %v1035
    %v2482 = vunpack.c.h.b16 %v1035
    %v2483 = vunpack.c.l.b16 %v1036
    %v2484 = vunpack.c.h.b16 %v1036
    %v2485 = vunpack.c.l.b16 %v1037
    %v2486 = vunpack.c.h.b16 %v1037
    %v2487 = vunpack.c.l.b16 %v1038
    %v2488 = vunpack.c.h.b16 %v1038
    %v2489 = vunpack.c.l.b16 %v1039
    %v2490 = vunpack.c.h.b16 %v1039
    %v2491 = vunpack.c.l.b16 %v1040
    %v2492 = vunpack.c.h.b16 %v1040
    %v2493 = vunpack.c.l.b16 %v1041
    %v2494 = vunpack.c.h.b16 %v1041
    %v2495 = vunpack.c.l.b16 %v1042
    %v2496 = vunpack.c.h.b16 %v1042
    %v2497 = vunpack.c.l.b16 %v1043
    %v2498 = vunpack.c.h.b16 %v1043
    %v2499 = vunpack.c.l.b16 %v1044
    %v2500 = vunpack.c.h.b16 %v1044
    %v2501 = vunpack.c.l.b16 %v1045
    %v2502 = vunpack.c.h.b16 %v1045
    %v2503 = vunpack.c.l.b16 %v1046
    %v2504 = vunpack.c.h.b16 %v1046
    %v2505 = vunpack.c.l.b16 %v1047
    %v2506 = vunpack.c.h.b16 %v1047
    %v2507 = vunpack.c.l.b16 %v1048
    %v2508 = vunpack.c.h.b16 %v1048
    %v2509 = vunpack.c.l.b16 %v1049
    %v2510 = vunpack.c.h.b16 %v1049
    %v2511 = vunpack.c.l.b16 %v1050
    %v2512 = vunpack.c.h.b16 %v1050
    %v2513 = vunpack.c.l.b16 %v1051
    %v2514 = vunpack.c.h.b16 %v1051
    %v2515 = vunpack.c.l.b16 %v1052
    %v2516 = vunpack.c.h.b16 %v1052
    %v2517 = vunpack.c.l.b16 %v1053
    %v2518 = vunpack.c.h.b16 %v1053
    %v2519 = vunpack.c.l.b16 %v1054
    %v2520 = vunpack.c.h.b16 %v1054
    %v2521 = vunpack.c.l.b16 %v1055
    %v2522 = vunpack.c.h.b16 %v1055
    %v2523 = vunpack.c.l.b16 %v1056
    %v2524 = vunpack.c.h.b16 %v1056
    %v2525 = vunpack.c.l.b16 %v1057
    %v2526 = vunpack.c.h.b16 %v1057
    %v2527 = vunpack.c.l.b16 %v1058
    %v2528 = vunpack.c.h.b16 %v1058
    %v2529 = vunpack.c.l.b16 %v1059
    %v2530 = vunpack.c.h.b16 %v1059
    %v2531 = vunpack.c.l.b16 %v1060
    %v2532 = vunpack.c.h.b16 %v1060
    %v2533 = vunpack.c.l.b16 %v1061
    %v2534 = vunpack.c.h.b16 %v1061
    %v2535 = vunpack.c.l.b16 %v1062
    %v2536 = vunpack.c.h.b16 %v1062
    %v2537 = vunpack.c.l.b16 %v1063
    %v2538 = vunpack.c.h.b16 %v1063
    %v2539 = vunpack.c.l.b16 %v1064
    %v2540 = vunpack.c.h.b16 %v1064
    %v2541 = vunpack.c.l.b16 %v1065
    %v2542 = vunpack.c.h.b16 %v1065
    %v2543 = vunpack.c.l.b16 %v1066
    %v2544 = vunpack.c.h.b16 %v1066
    %v2545 = vunpack.c.l.b16 %v1067
    %v2546 = vunpack.c.h.b16 %v1067
    %v2547 = vunpack.c.l.b16 %v1068
    %v2548 = vunpack.c.h.b16 %v1068
    %v2549 = vunpack.c.l.b16 %v1069
    %v2550 = vunpack.c.h.b16 %v1069
    %v2551 = vunpack.c.l.b16 %v1070
    %v2552 = vunpack.c.h.b16 %v1070
    %v2553 = vunpack.c.l.b16 %v1071
    %v2554 = vunpack.c.h.b16 %v1071
    %v2555 = vunpack.c.l.b16 %v1072
    %v2556 = vunpack.c.h.b16 %v1072
    %v2557 = vunpack.c.l.b16 %v1073
    %v2558 = vunpack.c.h.b16 %v1073
    %v2559 = vunpack.c.l.b16 %v1074
    %v2560 = vunpack.c.h.b16 %v1074
    %v2561 = vunpack.c.l.b16 %v1075
    %v2562 = vunpack.c.h.b16 %v1075
    %v2563 = vunpack.c.l.b16 %v1076
    %v2564 = vunpack.c.h.b16 %v1076
    %v2565 = vunpack.c.l.b16 %v1077
    %v2566 = vunpack.c.h.b16 %v1077
    %v2567 = vunpack.c.l.b16 %v1078
    %v2568 = vunpack.c.h.b16 %v1078
    %v2569 = vunpack.c.l.b16 %v1079
    %v2570 = vunpack.c.h.b16 %v1079
    %v2571 = vunpack.c.l.b16 %v1080
    %v2572 = vunpack.c.h.b16 %v1080
    %v2573 = vunpack.c.l.b16 %v1081
    %v2574 = vunpack.c.h.b16 %v1081
    %v2575 = vunpack.c.l.b16 %v1082
    %v2576 = vunpack.c.h.b16 %v1082
    %v2577 = vunpack.c.l.b16 %v1083
    %v2578 = vunpack.c.h.b16 %v1083
    %v2579 = vunpack.c.l.b16 %v1084
    %v2580 = vunpack.c.h.b16 %v1084
    %v2581 = vunpack.c.l.b16 %v1085
    %v2582 = vunpack.c.h.b16 %v1085
    %v2583 = vunpack.c.l.b16 %v1086
    %v2584 = vunpack.c.h.b16 %v1086
    %v2585 = vunpack.c.l.b16 %v1087
    %v2586 = vunpack.c.h.b16 %v1087
    %v2587 = vunpack.c.l.b16 %v1088
    %v2588 = vunpack.c.h.b16 %v1088
    %v2589 = vunpack.c.l.b16 %v1089
    %v2590 = vunpack.c.h.b16 %v1089
    %v2591 = vunpack.c.l.b16 %v1090
    %v2592 = vunpack.c.h.b16 %v1090
    %v2593 = vunpack.c.l.b16 %v1091
    %v2594 = vunpack.c.h.b16 %v1091
    %v2595 = vunpack.c.l.b16 %v1092
    %v2596 = vunpack.c.h.b16 %v1092
    %v2597 = vunpack.c.l.b16 %v1093
    %v2598 = vunpack.c.h.b16 %v1093
    %v2599 = vunpack.c.l.b16 %v1094
    %v2600 = vunpack.c.h.b16 %v1094
    %v2601 = vunpack.c.l.b16 %v1095
    %v2602 = vunpack.c.h.b16 %v1095
    %v2603 = vunpack.c.l.b16 %v1096
    %v2604 = vunpack.c.h.b16 %v1096
    %v2605 = vunpack.c.l.b16 %v1097
    %v2606 = vunpack.c.h.b16 %v1097
    %v2607 = vunpack.c.l.b16 %v1098
    %v2608 = vunpack.c.h.b16 %v1098
    %v2609 = vunpack.c.l.b16 %v1099
    %v2610 = vunpack.c.h.b16 %v1099
    %v2611 = vunpack.c.l.b16 %v1100
    %v2612 = vunpack.c.h.b16 %v1100
    %v2613 = vunpack.c.l.b16 %v1101
    %v2614 = vunpack.c.h.b16 %v1101
    %v2615 = vunpack.c.l.b16 %v1102
    %v2616 = vunpack.c.h.b16 %v1102
    %v2617 = vunpack.c.l.b16 %v1103
    %v2618 = vunpack.c.h.b16 %v1103
    %v2619 = vunpack.c.l.b16 %v1104
    %v2620 = vunpack.c.h.b16 %v1104
    %v2621 = vunpack.c.l.b16 %v1105
    %v2622 = vunpack.c.h.b16 %v1105
    %v2623 = vunpack.c.l.b16 %v1106
    %v2624 = vunpack.c.h.b16 %v1106
    %v2625 = vunpack.c.l.b16 %v1107
    %v2626 = vunpack.c.h.b16 %v1107
    %v2627 = vunpack.c.l.b16 %v1108
    %v2628 = vunpack.c.h.b16 %v1108
    %v2629 = vunpack.c.l.b16 %v1109
    %v2630 = vunpack.c.h.b16 %v1109
    %v2631 = vunpack.c.l.b16 %v1110
    %v2632 = vunpack.c.h.b16 %v1110
    %v2633 = vunpack.c.l.b16 %v1111
    %v2634 = vunpack.c.h.b16 %v1111
    %v2635 = vunpack.c.l.b16 %v1112
    %v2636 = vunpack.c.h.b16 %v1112
    %v2637 = vunpack.c.l.b16 %v1113
    %v2638 = vunpack.c.h.b16 %v1113
    %v2639 = vunpack.c.l.b16 %v1114
    %v2640 = vunpack.c.h.b16 %v1114
    %v2641 = vunpack.c.l.b16 %v1115
    %v2642 = vunpack.c.h.b16 %v1115
    %v2643 = vunpack.c.l.b16 %v1116
    %v2644 = vunpack.c.h.b16 %v1116
    %v2645 = vunpack.c.l.b16 %v1117
    %v2646 = vunpack.c.h.b16 %v1117
    %v2647 = vunpack.c.l.b16 %v1118
    %v2648 = vunpack.c.h.b16 %v1118
    %v2649 = vunpack.c.l.b16 %v1119
    %v2650 = vunpack.c.h.b16 %v1119
    %v2651 = vunpack.c.l.b16 %v1120
    %v2652 = vunpack.c.h.b16 %v1120
    %v2653 = vunpack.c.l.b16 %v1121
    %v2654 = vunpack.c.h.b16 %v1121
    %v2655 = vunpack.c.l.b16 %v1122
    %v2656 = vunpack.c.h.b16 %v1122
    %v2657 = vunpack.c.l.b16 %v1123
    %v2658 = vunpack.c.h.b16 %v1123
    %v2659 = vunpack.c.l.b16 %v1124
    %v2660 = vunpack.c.h.b16 %v1124
    %v2661 = vunpack.c.l.b16 %v1125
    %v2662 = vunpack.c.h.b16 %v1125
    %v2663 = vunpack.c.l.b16 %v1126
    %v2664 = vunpack.c.h.b16 %v1126
    %v2665 = vunpack.c.l.b16 %v1127
    %v2666 = vunpack.c.h.b16 %v1127
    %v2667 = vunpack.c.l.b16 %v1128
    %v2668 = vunpack.c.h.b16 %v1128
    %v2669 = vunpack.c.l.b16 %v1129
    %v2670 = vunpack.c.h.b16 %v1129
    %v2671 = vunpack.c.l.b16 %v1130
    %v2672 = vunpack.c.h.b16 %v1130
    %v2673 = vunpack.c.l.b16 %v1131
    %v2674 = vunpack.c.h.b16 %v1131
    %v2675 = vunpack.c.l.b16 %v1132
    %v2676 = vunpack.c.h.b16 %v1132
    %v2677 = vunpack.c.l.b16 %v1133
    %v2678 = vunpack.c.h.b16 %v1133
    %v2679 = vunpack.c.l.b16 %v1134
    %v2680 = vunpack.c.h.b16 %v1134
    %v2681 = vunpack.c.l.b16 %v1135
    %v2682 = vunpack.c.h.b16 %v1135
    %v2683 = vunpack.c.l.b16 %v1136
    %v2684 = vunpack.c.h.b16 %v1136
    %v2685 = vunpack.c.l.b16 %v1137
    %v2686 = vunpack.c.h.b16 %v1137
    %v2687 = vunpack.c.l.b16 %v1138
    %v2688 = vunpack.c.h.b16 %v1138
    %v2689 = vunpack.c.l.b16 %v1139
    %v2690 = vunpack.c.h.b16 %v1139
    %v2691 = vunpack.c.l.b16 %v1140
    %v2692 = vunpack.c.h.b16 %v1140
    %v2693 = vunpack.c.l.b16 %v1141
    %v2694 = vunpack.c.h.b16 %v1141
    %v2695 = vunpack.c.l.b16 %v1142
    %v2696 = vunpack.c.h.b16 %v1142
    %v2697 = vunpack.c.l.b16 %v1143
    %v2698 = vunpack.c.h.b16 %v1143
    %v2699 = vunpack.c.l.b16 %v1144
    %v2700 = vunpack.c.h.b16 %v1144
    %v2701 = vunpack.c.l.b16 %v1145
    %v2702 = vunpack.c.h.b16 %v1145
    %v2703 = vunpack.c.l.b16 %v1146
    %v2704 = vunpack.c.h.b16 %v1146
    %v2705 = vunpack.c.l.b16 %v1147
    %v2706 = vunpack.c.h.b16 %v1147
    %v2707 = vunpack.c.l.b16 %v1148
    %v2708 = vunpack.c.h.b16 %v1148
    %v2709 = vunpack.c.l.b16 %v1149
    %v2710 = vunpack.c.h.b16 %v1149
    %v2711 = vunpack.c.l.b16 %v1150
    %v2712 = vunpack.c.h.b16 %v1150
    %v2713 = vunpack.c.l.b16 %v1151
    %v2714 = vunpack.c.h.b16 %v1151
    %v2715 = vunpack.c.l.b16 %v1152
    %v2716 = vunpack.c.h.b16 %v1152
    %v2717 = vunpack.c.l.b16 %v1153
    %v2718 = vunpack.c.h.b16 %v1153
    %v2719 = vunpack.c.l.b16 %v1154
    %v2720 = vunpack.c.h.b16 %v1154
    %v2721 = vunpack.c.l.b16 %v1155
    %v2722 = vunpack.c.h.b16 %v1155
    %v2723 = vunpack.c.l.b16 %v1156
    %v2724 = vunpack.c.h.b16 %v1156
    %v2725 = vunpack.c.l.b16 %v1157
    %v2726 = vunpack.c.h.b16 %v1157
    %v2727 = vunpack.c.l.b16 %v1158
    %v2728 = vunpack.c.h.b16 %v1158
    %v2729 = vunpack.c.l.b16 %v1159
    %v2730 = vunpack.c.h.b16 %v1159
    %v2731 = vunpack.c.l.b16 %v1160
    %v2732 = vunpack.c.h.b16 %v1160
    %v2733 = vunpack.c.l.b16 %v1161
    %v2734 = vunpack.c.h.b16 %v1161
    %v2735 = vunpack.c.l.b16 %v1162
    %v2736 = vunpack.c.h.b16 %v1162
    %v2737 = vunpack.c.l.b16 %v1163
    %v2738 = vunpack.c.h.b16 %v1163
    %v2739 = vunpack.c.l.b16 %v1164
    %v2740 = vunpack.c.h.b16 %v1164
    %v2741 = vunpack.c.l.b16 %v1165
    %v2742 = vunpack.c.h.b16 %v1165
    %v2743 = vunpack.c.l.b16 %v1166
    %v2744 = vunpack.c.h.b16 %v1166
    %v2745 = vpack.c.b16 %v1729, %v1721
    %v2746 = vpack.c.b16 %v1730, %v1722
    %v2747 = vpack.c.b16 %v1731, %v1723
    %v2748 = vpack.c.b16 %v1732, %v1724
    %v2749 = vpack.c.b16 %v1733, %v1725
    %v2750 = vpack.c.b16 %v1734, %v1726
    %v2751 = vpack.c.b16 %v1735, %v1727
    %v2752 = vpack.c.b16 %v1736, %v1728
    %v2753 = vpack.c.b16 %v1745, %v1737
    %v2754 = vpack.c.b16 %v1746, %v1738
    %v2755 = vpack.c.b16 %v1747, %v1739
    %v2756 = vpack.c.b16 %v1748, %v1740
    %v2757 = vpack.c.b16 %v1749, %v1741
    %v2758 = vpack.c.b16 %v1750, %v1742
    %v2759 = vpack.c.b16 %v1751, %v1743
    %v2760 = vpack.c.b16 %v1752, %v1744
    %v2761 = vpack.c.b16 %v1761, %v1753
    %v2762 = vpack.c.b16 %v1762, %v1754
    %v2763 = vpack.c.b16 %v1763, %v1755
    %v2764 = vpack.c.b16 %v1764, %v1756
    %v2765 = vpack.c.b16 %v1765, %v1757
    %v2766 = vpack.c.b16 %v1766, %v1758
    %v2767 = vpack.c.b16 %v1767, %v1759
    %v2768 = vpack.c.b16 %v1768, %v1760
    %v2769 = vpack.c.b16 %v1777, %v1769
    %v2770 = vpack.c.b16 %v1778, %v1770
    %v2771 = vpack.c.b16 %v1779, %v1771
    %v2772 = vpack.c.b16 %v1780, %v1772
    %v2773 = vpack.c.b16 %v1781, %v1773
    %v2774 = vpack.c.b16 %v1782, %v1774
    %v2775 = vpack.c.b16 %v1783, %v1775
    %v2776 = vpack.c.b16 %v1784, %v1776
    %v2777 = vpack.c.b16 %v1793, %v1785
    %v2778 = vpack.c.b16 %v1794, %v1786
    %v2779 = vpack.c.b16 %v1795, %v1787
    %v2780 = vpack.c.b16 %v1796, %v1788
    %v2781 = vpack.c.b16 %v1797, %v1789
    %v2782 = vpack.c.b16 %v1798, %v1790
    %v2783 = vpack.c.b16 %v1799, %v1791
    %v2784 = vpack.c.b16 %v1800, %v1792
    %v2785 = vpack.c.b16 %v1809, %v1801
    %v2786 = vpack.c.b16 %v1810, %v1802
    %v2787 = vpack.c.b16 %v1811, %v1803
    %v2788 = vpack.c.b16 %v1812, %v1804
    %v2789 = vpack.c.b16 %v1813, %v1805
    %v2790 = vpack.c.b16 %v1814, %v1806
    %v2791 = vpack.c.b16 %v1815, %v1807
    %v2792 = vpack.c.b16 %v1816, %v1808
    %v2793 = vpack.c.b16 %v1825, %v1817
    %v2794 = vpack.c.b16 %v1826, %v1818
    %v2795 = vpack.c.b16 %v1827, %v1819
    %v2796 = vpack.c.b16 %v1828, %v1820
    %v2797 = vpack.c.b16 %v1829, %v1821
    %v2798 = vpack.c.b16 %v1830, %v1822
    %v2799 = vpack.c.b16 %v1831, %v1823
    %v2800 = vpack.c.b16 %v1832, %v1824
    %v2801 = vpack.c.b16 %v1841, %v1833
    %v2802 = vpack.c.b16 %v1842, %v1834
    %v2803 = vpack.c.b16 %v1843, %v1835
    %v2804 = vpack.c.b16 %v1844, %v1836
    %v2805 = vpack.c.b16 %v1845, %v1837
    %v2806 = vpack.c.b16 %v1846, %v1838
    %v2807 = vpack.c.b16 %v1847, %v1839
    %v2808 = vpack.c.b16 %v1848, %v1840
    %v2809 = vpack.c.b16 %v1857, %v1849
    %v2810 = vpack.c.b16 %v1858, %v1850
    %v2811 = vpack.c.b16 %v1859, %v1851
    %v2812 = vpack.c.b16 %v1860, %v1852
    %v2813 = vpack.c.b16 %v1861, %v1853
    %v2814 = vpack.c.b16 %v1862, %v1854
    %v2815 = vpack.c.b16 %v1863, %v1855
    %v2816 = vpack.c.b16 %v1864, %v1856
    %v2817 = vpack.c.b16 %v1873, %v1865
    %v2818 = vpack.c.b16 %v1874, %v1866
    %v2819 = vpack.c.b16 %v1875, %v1867
    %v2820 = vpack.c.b16 %v1876, %v1868
    %v2821 = vpack.c.b16 %v1877, %v1869
    %v2822 = vpack.c.b16 %v1878, %v1870
    %v2823 = vpack.c.b16 %v1879, %v1871
    %v2824 = vpack.c.b16 %v1880, %v1872
    %v2825 = vpack.c.b16 %v1889, %v1881
    %v2826 = vpack.c.b16 %v1890, %v1882
    %v2827 = vpack.c.b16 %v1891, %v1883
    %v2828 = vpack.c.b16 %v1892, %v1884
    %v2829 = vpack.c.b16 %v1893, %v1885
    %v2830 = vpack.c.b16 %v1894, %v1886
    %v2831 = vpack.c.b16 %v1895, %v1887
    %v2832 = vpack.c.b16 %v1896, %v1888
    %v2833 = vpack.c.b16 %v1905, %v1897
    %v2834 = vpack.c.b16 %v1906, %v1898
    %v2835 = vpack.c.b16 %v1907, %v1899
    %v2836 = vpack.c.b16 %v1908, %v1900
    %v2837 = vpack.c.b16 %v1909, %v1901
    %v2838 = vpack.c.b16 %v1910, %v1902
    %v2839 = vpack.c.b16 %v1911, %v1903
    %v2840 = vpack.c.b16 %v1912, %v1904
    %v2841 = vpack.c.b16 %v1921, %v1913
    %v2842 = vpack.c.b16 %v1922, %v1914
    %v2843 = vpack.c.b16 %v1923, %v1915
    %v2844 = vpack.c.b16 %v1924, %v1916
    %v2845 = vpack.c.b16 %v1925, %v1917
    %v2846 = vpack.c.b16 %v1926, %v1918
    %v2847 = vpack.c.b16 %v1927, %v1919
    %v2848 = vpack.c.b16 %v1928, %v1920
    %v2849 = vpack.c.b16 %v1937, %v1929
    %v2850 = vpack.c.b16 %v1938, %v1930
    %v2851 = vpack.c.b16 %v1939, %v1931
    %v2852 = vpack.c.b16 %v1940, %v1932
    %v2853 = vpack.c.b16 %v1941, %v1933
    %v2854 = vpack.c.b16 %v1942, %v1934
    %v2855 = vpack.c.b16 %v1943, %v1935
    %v2856 = vpack.c.b16 %v1944, %v1936
    %v2857 = vpack.c.b16 %v1953, %v1945
    %v2858 = vpack.c.b16 %v1954, %v1946
    %v2859 = vpack.c.b16 %v1955, %v1947
    %v2860 = vpack.c.b16 %v1956, %v1948
    %v2861 = vpack.c.b16 %v1957, %v1949
    %v2862 = vpack.c.b16 %v1958, %v1950
    %v2863 = vpack.c.b16 %v1959, %v1951
    %v2864 = vpack.c.b16 %v1960, %v1952
    %v2865 = vpack.c.b16 %v1969, %v1961
    %v2866 = vpack.c.b16 %v1970, %v1962
    %v2867 = vpack.c.b16 %v1971, %v1963
    %v2868 = vpack.c.b16 %v1972, %v1964
    %v2869 = vpack.c.b16 %v1973, %v1965
    %v2870 = vpack.c.b16 %v1974, %v1966
    %v2871 = vpack.c.b16 %v1975, %v1967
    %v2872 = vpack.c.b16 %v1976, %v1968
    %v2873 = vpack.c.b16 %v1985, %v1977
    %v2874 = vpack.c.b16 %v1986, %v1978
    %v2875 = vpack.c.b16 %v1987, %v1979
    %v2876 = vpack.c.b16 %v1988, %v1980
    %v2877 = vpack.c.b16 %v1989, %v1981
    %v2878 = vpack.c.b16 %v1990, %v1982
    %v2879 = vpack.c.b16 %v1991, %v1983
    %v2880 = vpack.c.b16 %v1992, %v1984
    %v2881 = vpack.c.b16 %v2001, %v1993
    %v2882 = vpack.c.b16 %v2002, %v1994
    %v2883 = vpack.c.b16 %v2003, %v1995
    %v2884 = vpack.c.b16 %v2004, %v1996
    %v2885 = vpack.c.b16 %v2005, %v1997
    %v2886 = vpack.c.b16 %v2006, %v1998
    %v2887 = vpack.c.b16 %v2007, %v1999
    %v2888 = vpack.c.b16 %v2008, %v2000
    %v2889 = vpack.c.b16 %v2017, %v2009
    %v2890 = vpack.c.b16 %v2018, %v2010
    %v2891 = vpack.c.b16 %v2019, %v2011
    %v2892 = vpack.c.b16 %v2020, %v2012
    %v2893 = vpack.c.b16 %v2021, %v2013
    %v2894 = vpack.c.b16 %v2022, %v2014
    %v2895 = vpack.c.b16 %v2023, %v2015
    %v2896 = vpack.c.b16 %v2024, %v2016
    %v2897 = vpack.c.b16 %v2033, %v2025
    %v2898 = vpack.c.b16 %v2034, %v2026
    %v2899 = vpack.c.b16 %v2035, %v2027
    %v2900 = vpack.c.b16 %v2036, %v2028
    %v2901 = vpack.c.b16 %v2037, %v2029
    %v2902 = vpack.c.b16 %v2038, %v2030
    %v2903 = vpack.c.b16 %v2039, %v2031
    %v2904 = vpack.c.b16 %v2040, %v2032
    %v2905 = vpack.c.b16 %v2049, %v2041
    %v2906 = vpack.c.b16 %v2050, %v2042
    %v2907 = vpack.c.b16 %v2051, %v2043
    %v2908 = vpack.c.b16 %v2052, %v2044
    %v2909 = vpack.c.b16 %v2053, %v2045
    %v2910 = vpack.c.b16 %v2054, %v2046
    %v2911 = vpack.c.b16 %v2055, %v2047
    %v2912 = vpack.c.b16 %v2056, %v2048
    %v2913 = vpack.c.b16 %v2065, %v2057
    %v2914 = vpack.c.b16 %v2066, %v2058
    %v2915 = vpack.c.b16 %v2067, %v2059
    %v2916 = vpack.c.b16 %v2068, %v2060
    %v2917 = vpack.c.b16 %v2069, %v2061
    %v2918 = vpack.c.b16 %v2070, %v2062
    %v2919 = vpack.c.b16 %v2071, %v2063
    %v2920 = vpack.c.b16 %v2072, %v2064
    %v2921 = vpack.c.b16 %v2081, %v2073
    %v2922 = vpack.c.b16 %v2082, %v2074
    %v2923 = vpack.c.b16 %v2083, %v2075
    %v2924 = vpack.c.b16 %v2084, %v2076
    %v2925 = vpack.c.b16 %v2085, %v2077
    %v2926 = vpack.c.b16 %v2086, %v2078
    %v2927 = vpack.c.b16 %v2087, %v2079
    %v2928 = vpack.c.b16 %v2088, %v2080
    %v2929 = vpack.c.b16 %v2097, %v2089
    %v2930 = vpack.c.b16 %v2098, %v2090
    %v2931 = vpack.c.b16 %v2099, %v2091
    %v2932 = vpack.c.b16 %v2100, %v2092
    %v2933 = vpack.c.b16 %v2101, %v2093
    %v2934 = vpack.c.b16 %v2102, %v2094
    %v2935 = vpack.c.b16 %v2103, %v2095
    %v2936 = vpack.c.b16 %v2104, %v2096
    %v2937 = vpack.c.b16 %v2113, %v2105
    %v2938 = vpack.c.b16 %v2114, %v2106
    %v2939 = vpack.c.b16 %v2115, %v2107
    %v2940 = vpack.c.b16 %v2116, %v2108
    %v2941 = vpack.c.b16 %v2117, %v2109
    %v2942 = vpack.c.b16 %v2118, %v2110
    %v2943 = vpack.c.b16 %v2119, %v2111
    %v2944 = vpack.c.b16 %v2120, %v2112
    %v2945 = vpack.c.b16 %v2129, %v2121
    %v2946 = vpack.c.b16 %v2130, %v2122
    %v2947 = vpack.c.b16 %v2131, %v2123
    %v2948 = vpack.c.b16 %v2132, %v2124
    %v2949 = vpack.c.b16 %v2133, %v2125
    %v2950 = vpack.c.b16 %v2134, %v2126
    %v2951 = vpack.c.b16 %v2135, %v2127
    %v2952 = vpack.c.b16 %v2136, %v2128
    %v2953 = vpack.c.b16 %v2145, %v2137
    %v2954 = vpack.c.b16 %v2146, %v2138
    %v2955 = vpack.c.b16 %v2147, %v2139
    %v2956 = vpack.c.b16 %v2148, %v2140
    %v2957 = vpack.c.b16 %v2149, %v2141
    %v2958 = vpack.c.b16 %v2150, %v2142
    %v2959 = vpack.c.b16 %v2151, %v2143
    %v2960 = vpack.c.b16 %v2152, %v2144
    %v2961 = vpack.c.b16 %v2161, %v2153
    %v2962 = vpack.c.b16 %v2162, %v2154
    %v2963 = vpack.c.b16 %v2163, %v2155
    %v2964 = vpack.c.b16 %v2164, %v2156
    %v2965 = vpack.c.b16 %v2165, %v2157
    %v2966 = vpack.c.b16 %v2166, %v2158
    %v2967 = vpack.c.b16 %v2167, %v2159
    %v2968 = vpack.c.b16 %v2168, %v2160
    %v2969 = vpack.c.b16 %v2177, %v2169
    %v2970 = vpack.c.b16 %v2178, %v2170
    %v2971 = vpack.c.b16 %v2179, %v2171
    %v2972 = vpack.c.b16 %v2180, %v2172
    %v2973 = vpack.c.b16 %v2181, %v2173
    %v2974 = vpack.c.b16 %v2182, %v2174
    %v2975 = vpack.c.b16 %v2183, %v2175
    %v2976 = vpack.c.b16 %v2184, %v2176
    %v2977 = vpack.c.b16 %v2193, %v2185
    %v2978 = vpack.c.b16 %v2194, %v2186
    %v2979 = vpack.c.b16 %v2195, %v2187
    %v2980 = vpack.c.b16 %v2196, %v2188
    %v2981 = vpack.c.b16 %v2197, %v2189
    %v2982 = vpack.c.b16 %v2198, %v2190
    %v2983 = vpack.c.b16 %v2199, %v2191
    %v2984 = vpack.c.b16 %v2200, %v2192
    %v2985 = vpack.c.b16 %v2209, %v2201
    %v2986 = vpack.c.b16 %v2210, %v2202
    %v2987 = vpack.c.b16 %v2211, %v2203
    %v2988 = vpack.c.b16 %v2212, %v2204
    %v2989 = vpack.c.b16 %v2213, %v2205
    %v2990 = vpack.c.b16 %v2214, %v2206
    %v2991 = vpack.c.b16 %v2215, %v2207
    %v2992 = vpack.c.b16 %v2216, %v2208
    %v2993 = vpack.c.b16 %v2225, %v2217
    %v2994 = vpack.c.b16 %v2226, %v2218
    %v2995 = vpack.c.b16 %v2227, %v2219
    %v2996 = vpack.c.b16 %v2228, %v2220
    %v2997 = vpack.c.b16 %v2229, %v2221
    %v2998 = vpack.c.b16 %v2230, %v2222
    %v2999 = vpack.c.b16 %v2231, %v2223
    %v3000 = vpack.c.b16 %v2232, %v2224
    %v3001 = vpack.c.b16 %v2241, %v2233
    %v3002 = vpack.c.b16 %v2242, %v2234
    %v3003 = vpack.c.b16 %v2243, %v2235
    %v3004 = vpack.c.b16 %v2244, %v2236
    %v3005 = vpack.c.b16 %v2245, %v2237
    %v3006 = vpack.c.b16 %v2246, %v2238
    %v3007 = vpack.c.b16 %v2247, %v2239
    %v3008 = vpack.c.b16 %v2248, %v2240
    %v3009 = vpack.c.b16 %v2257, %v2249
    %v3010 = vpack.c.b16 %v2258, %v2250
    %v3011 = vpack.c.b16 %v2259, %v2251
    %v3012 = vpack.c.b16 %v2260, %v2252
    %v3013 = vpack.c.b16 %v2261, %v2253
    %v3014 = vpack.c.b16 %v2262, %v2254
    %v3015 = vpack.c.b16 %v2263, %v2255
    %v3016 = vpack.c.b16 %v2264, %v2256
    %v3017 = vpack.c.b16 %v2273, %v2265
    %v3018 = vpack.c.b16 %v2274, %v2266
    %v3019 = vpack.c.b16 %v2275, %v2267
    %v3020 = vpack.c.b16 %v2276, %v2268
    %v3021 = vpack.c.b16 %v2277, %v2269
    %v3022 = vpack.c.b16 %v2278, %v2270
    %v3023 = vpack.c.b16 %v2279, %v2271
    %v3024 = vpack.c.b16 %v2280, %v2272
    %v3025 = vpack.c.b16 %v2289, %v2281
    %v3026 = vpack.c.b16 %v2290, %v2282
    %v3027 = vpack.c.b16 %v2291, %v2283
    %v3028 = vpack.c.b16 %v2292, %v2284
    %v3029 = vpack.c.b16 %v2293, %v2285
    %v3030 = vpack.c.b16 %v2294, %v2286
    %v3031 = vpack.c.b16 %v2295, %v2287
    %v3032 = vpack.c.b16 %v2296, %v2288
    %v3033 = vpack.c.b16 %v2305, %v2297
    %v3034 = vpack.c.b16 %v2306, %v2298
    %v3035 = vpack.c.b16 %v2307, %v2299
    %v3036 = vpack.c.b16 %v2308, %v2300
    %v3037 = vpack.c.b16 %v2309, %v2301
    %v3038 = vpack.c.b16 %v2310, %v2302
    %v3039 = vpack.c.b16 %v2311, %v2303
    %v3040 = vpack.c.b16 %v2312, %v2304
    %v3041 = vpack.c.b16 %v2321, %v2313
    %v3042 = vpack.c.b16 %v2322, %v2314
    %v3043 = vpack.c.b16 %v2323, %v2315
    %v3044 = vpack.c.b16 %v2324, %v2316
    %v3045 = vpack.c.b16 %v2325, %v2317
    %v3046 = vpack.c.b16 %v2326, %v2318
    %v3047 = vpack.c.b16 %v2327, %v2319
    %v3048 = vpack.c.b16 %v2328, %v2320
    %v3049 = vpack.c.b16 %v2337, %v2329
    %v3050 = vpack.c.b16 %v2338, %v2330
    %v3051 = vpack.c.b16 %v2339, %v2331
    %v3052 = vpack.c.b16 %v2340, %v2332
    %v3053 = vpack.c.b16 %v2341, %v2333
    %v3054 = vpack.c.b16 %v2342, %v2334
    %v3055 = vpack.c.b16 %v2343, %v2335
    %v3056 = vpack.c.b16 %v2344, %v2336
    %v3057 = vpack.c.b16 %v2353, %v2345
    %v3058 = vpack.c.b16 %v2354, %v2346
    %v3059 = vpack.c.b16 %v2355, %v2347
    %v3060 = vpack.c.b16 %v2356, %v2348
    %v3061 = vpack.c.b16 %v2357, %v2349
    %v3062 = vpack.c.b16 %v2358, %v2350
    %v3063 = vpack.c.b16 %v2359, %v2351
    %v3064 = vpack.c.b16 %v2360, %v2352
    %v3065 = vpack.c.b16 %v2369, %v2361
    %v3066 = vpack.c.b16 %v2370, %v2362
    %v3067 = vpack.c.b16 %v2371, %v2363
    %v3068 = vpack.c.b16 %v2372, %v2364
    %v3069 = vpack.c.b16 %v2373, %v2365
    %v3070 = vpack.c.b16 %v2374, %v2366
    %v3071 = vpack.c.b16 %v2375, %v2367
    %v3072 = vpack.c.b16 %v2376, %v2368
    %v3073 = vpack.c.b16 %v2385, %v2377
    %v3074 = vpack.c.b16 %v2386, %v2378
    %v3075 = vpack.c.b16 %v2387, %v2379
    %v3076 = vpack.c.b16 %v2388, %v2380
    %v3077 = vpack.c.b16 %v2389, %v2381
    %v3078 = vpack.c.b16 %v2390, %v2382
    %v3079 = vpack.c.b16 %v2391, %v2383
    %v3080 = vpack.c.b16 %v2392, %v2384
    %v3081 = vpack.c.b16 %v2401, %v2393
    %v3082 = vpack.c.b16 %v2402, %v2394
    %v3083 = vpack.c.b16 %v2403, %v2395
    %v3084 = vpack.c.b16 %v2404, %v2396
    %v3085 = vpack.c.b16 %v2405, %v2397
    %v3086 = vpack.c.b16 %v2406, %v2398
    %v3087 = vpack.c.b16 %v2407, %v2399
    %v3088 = vpack.c.b16 %v2408, %v2400
    %v3089 = vpack.c.b16 %v2417, %v2409
    %v3090 = vpack.c.b16 %v2418, %v2410
    %v3091 = vpack.c.b16 %v2419, %v2411
    %v3092 = vpack.c.b16 %v2420, %v2412
    %v3093 = vpack.c.b16 %v2421, %v2413
    %v3094 = vpack.c.b16 %v2422, %v2414
    %v3095 = vpack.c.b16 %v2423, %v2415
    %v3096 = vpack.c.b16 %v2424, %v2416
    %v3097 = vpack.c.b16 %v2433, %v2425
    %v3098 = vpack.c.b16 %v2434, %v2426
    %v3099 = vpack.c.b16 %v2435, %v2427
    %v3100 = vpack.c.b16 %v2436, %v2428
    %v3101 = vpack.c.b16 %v2437, %v2429
    %v3102 = vpack.c.b16 %v2438, %v2430
    %v3103 = vpack.c.b16 %v2439, %v2431
    %v3104 = vpack.c.b16 %v2440, %v2432
    %v3105 = vpack.c.b16 %v2449, %v2441
    %v3106 = vpack.c.b16 %v2450, %v2442
    %v3107 = vpack.c.b16 %v2451, %v2443
    %v3108 = vpack.c.b16 %v2452, %v2444
    %v3109 = vpack.c.b16 %v2453, %v2445
    %v3110 = vpack.c.b16 %v2454, %v2446
    %v3111 = vpack.c.b16 %v2455, %v2447
    %v3112 = vpack.c.b16 %v2456, %v2448
    %v3113 = vpack.c.b16 %v2465, %v2457
    %v3114 = vpack.c.b16 %v2466, %v2458
    %v3115 = vpack.c.b16 %v2467, %v2459
    %v3116 = vpack.c.b16 %v2468, %v2460
    %v3117 = vpack.c.b16 %v2469, %v2461
    %v3118 = vpack.c.b16 %v2470, %v2462
    %v3119 = vpack.c.b16 %v2471, %v2463
    %v3120 = vpack.c.b16 %v2472, %v2464
    %v3121 = vpack.c.b16 %v2481, %v2473
    %v3122 = vpack.c.b16 %v2482, %v2474
    %v3123 = vpack.c.b16 %v2483, %v2475
    %v3124 = vpack.c.b16 %v2484, %v2476
    %v3125 = vpack.c.b16 %v2485, %v2477
    %v3126 = vpack.c.b16 %v2486, %v2478
    %v3127 = vpack.c.b16 %v2487, %v2479
    %v3128 = vpack.c.b16 %v2488, %v2480
    %v3129 = vpack.c.b16 %v2497, %v2489
    %v3130 = vpack.c.b16 %v2498, %v2490
    %v3131 = vpack.c.b16 %v2499, %v2491
    %v3132 = vpack.c.b16 %v2500, %v2492
    %v3133 = vpack.c.b16 %v2501, %v2493
    %v3134 = vpack.c.b16 %v2502, %v2494
    %v3135 = vpack.c.b16 %v2503, %v2495
    %v3136 = vpack.c.b16 %v2504, %v2496
    %v3137 = vpack.c.b16 %v2513, %v2505
    %v3138 = vpack.c.b16 %v2514, %v2506
    %v3139 = vpack.c.b16 %v2515, %v2507
    %v3140 = vpack.c.b16 %v2516, %v2508
    %v3141 = vpack.c.b16 %v2517, %v2509
    %v3142 = vpack.c.b16 %v2518, %v2510
    %v3143 = vpack.c.b16 %v2519, %v2511
    %v3144 = vpack.c.b16 %v2520, %v2512
    %v3145 = vpack.c.b16 %v2529, %v2521
    %v3146 = vpack.c.b16 %v2530, %v2522
    %v3147 = vpack.c.b16 %v2531, %v2523
    %v3148 = vpack.c.b16 %v2532, %v2524
    %v3149 = vpack.c.b16 %v2533, %v2525
    %v3150 = vpack.c.b16 %v2534, %v2526
    %v3151 = vpack.c.b16 %v2535, %v2527
    %v3152 = vpack.c.b16 %v2536, %v2528
    %v3153 = vpack.c.b16 %v2545, %v2537
    %v3154 = vpack.c.b16 %v2546, %v2538
    %v3155 = vpack.c.b16 %v2547, %v2539
    %v3156 = vpack.c.b16 %v2548, %v2540
    %v3157 = vpack.c.b16 %v2549, %v2541
    %v3158 = vpack.c.b16 %v2550, %v2542
    %v3159 = vpack.c.b16 %v2551, %v2543
    %v3160 = vpack.c.b16 %v2552, %v2544
    %v3161 = vpack.c.b16 %v2561, %v2553
    %v3162 = vpack.c.b16 %v2562, %v2554
    %v3163 = vpack.c.b16 %v2563, %v2555
    %v3164 = vpack.c.b16 %v2564, %v2556
    %v3165 = vpack.c.b16 %v2565, %v2557
    %v3166 = vpack.c.b16 %v2566, %v2558
    %v3167 = vpack.c.b16 %v2567, %v2559
    %v3168 = vpack.c.b16 %v2568, %v2560
    %v3169 = vpack.c.b16 %v2577, %v2569
    %v3170 = vpack.c.b16 %v2578, %v2570
    %v3171 = vpack.c.b16 %v2579, %v2571
    %v3172 = vpack.c.b16 %v2580, %v2572
    %v3173 = vpack.c.b16 %v2581, %v2573
    %v3174 = vpack.c.b16 %v2582, %v2574
    %v3175 = vpack.c.b16 %v2583, %v2575
    %v3176 = vpack.c.b16 %v2584, %v2576
    %v3177 = vpack.c.b16 %v2593, %v2585
    %v3178 = vpack.c.b16 %v2594, %v2586
    %v3179 = vpack.c.b16 %v2595, %v2587
    %v3180 = vpack.c.b16 %v2596, %v2588
    %v3181 = vpack.c.b16 %v2597, %v2589
    %v3182 = vpack.c.b16 %v2598, %v2590
    %v3183 = vpack.c.b16 %v2599, %v2591
    %v3184 = vpack.c.b16 %v2600, %v2592
    %v3185 = vpack.c.b16 %v2609, %v2601
    %v3186 = vpack.c.b16 %v2610, %v2602
    %v3187 = vpack.c.b16 %v2611, %v2603
    %v3188 = vpack.c.b16 %v2612, %v2604
    %v3189 = vpack.c.b16 %v2613, %v2605
    %v3190 = vpack.c.b16 %v2614, %v2606
    %v3191 = vpack.c.b16 %v2615, %v2607
    %v3192 = vpack.c.b16 %v2616, %v2608
    %v3193 = vpack.c.b16 %v2625, %v2617
    %v3194 = vpack.c.b16 %v2626, %v2618
    %v3195 = vpack.c.b16 %v2627, %v2619
    %v3196 = vpack.c.b16 %v2628, %v2620
    %v3197 = vpack.c.b16 %v2629, %v2621
    %v3198 = vpack.c.b16 %v2630, %v2622
    %v3199 = vpack.c.b16 %v2631, %v2623
    %v3200 = vpack.c.b16 %v2632, %v2624
    %v3201 = vpack.c.b16 %v2641, %v2633
    %v3202 = vpack.c.b16 %v2642, %v2634
    %v3203 = vpack.c.b16 %v2643, %v2635
    %v3204 = vpack.c.b16 %v2644, %v2636
    %v3205 = vpack.c.b16 %v2645, %v2637
    %v3206 = vpack.c.b16 %v2646, %v2638
    %v3207 = vpack.c.b16 %v2647, %v2639
    %v3208 = vpack.c.b16 %v2648, %v2640
    %v3209 = vpack.c.b16 %v2657, %v2649
    %v3210 = vpack.c.b16 %v2658, %v2650
    %v3211 = vpack.c.b16 %v2659, %v2651
    %v3212 = vpack.c.b16 %v2660, %v2652
    %v3213 = vpack.c.b16 %v2661, %v2653
    %v3214 = vpack.c.b16 %v2662, %v2654
    %v3215 = vpack.c.b16 %v2663, %v2655
    %v3216 = vpack.c.b16 %v2664, %v2656
    %v3217 = vpack.c.b16 %v2673, %v2665
    %v3218 = vpack.c.b16 %v2674, %v2666
    %v3219 = vpack.c.b16 %v2675, %v2667
    %v3220 = vpack.c.b16 %v2676, %v2668
    %v3221 = vpack.c.b16 %v2677, %v2669
    %v3222 = vpack.c.b16 %v2678, %v2670
    %v3223 = vpack.c.b16 %v2679, %v2671
    %v3224 = vpack.c.b16 %v2680, %v2672
    %v3225 = vpack.c.b16 %v2689, %v2681
    %v3226 = vpack.c.b16 %v2690, %v2682
    %v3227 = vpack.c.b16 %v2691, %v2683
    %v3228 = vpack.c.b16 %v2692, %v2684
    %v3229 = vpack.c.b16 %v2693, %v2685
    %v3230 = vpack.c.b16 %v2694, %v2686
    %v3231 = vpack.c.b16 %v2695, %v2687
    %v3232 = vpack.c.b16 %v2696, %v2688
    %v3233 = vpack.c.b16 %v2705, %v2697
    %v3234 = vpack.c.b16 %v2706, %v2698
    %v3235 = vpack.c.b16 %v2707, %v2699
    %v3236 = vpack.c.b16 %v2708, %v2700
    %v3237 = vpack.c.b16 %v2709, %v2701
    %v3238 = vpack.c.b16 %v2710, %v2702
    %v3239 = vpack.c.b16 %v2711, %v2703
    %v3240 = vpack.c.b16 %v2712, %v2704
    %v3241 = vpack.c.b16 %v2721, %v2713
    %v3242 = vpack.c.b16 %v2722, %v2714
    %v3243 = vpack.c.b16 %v2723, %v2715
    %v3244 = vpack.c.b16 %v2724, %v2716
    %v3245 = vpack.c.b16 %v2725, %v2717
    %v3246 = vpack.c.b16 %v2726, %v2718
    %v3247 = vpack.c.b16 %v2727, %v2719
    %v3248 = vpack.c.b16 %v2728, %v2720
    %v3249 = vpack.c.b16 %v2737, %v2729
    %v3250 = vpack.c.b16 %v2738, %v2730
    %v3251 = vpack.c.b16 %v2739, %v2731
    %v3252 = vpack.c.b16 %v2740, %v2732
    %v3253 = vpack.c.b16 %v2741, %v2733
    %v3254 = vpack.c.b16 %v2742, %v2734
    %v3255 = vpack.c.b16 %v2743, %v2735
    %v3256 = vpack.c.b16 %v2744, %v2736
    %3769 = vmatprep.subr.bf16.mxu0 %v2746
    %3770 = vmatpush1.bf16.msra.mxu0 %v2745
    %3771 = vmatprep.subr.bf16.mxu0 %v2754
    %3772 = vmatpush1.bf16.msra.mxu0 %v2753
    %3773 = vmatprep.subr.bf16.mxu0 %v2762
    %3774 = vmatpush1.bf16.msra.mxu0 %v2761
    %3775 = vmatprep.subr.bf16.mxu0 %v2770
    %3776 = vmatpush1.bf16.msra.mxu0 %v2769
    %3777 = vmatprep.subr.bf16.mxu0 %v2778
    %3778 = vmatpush1.bf16.msra.mxu0 %v2777
    %3779 = vmatprep.subr.bf16.mxu0 %v2786
    %3780 = vmatpush1.bf16.msra.mxu0 %v2785
    %3781 = vmatprep.subr.bf16.mxu0 %v2794
    %3782 = vmatpush1.bf16.msra.mxu0 %v2793
    %3783 = vmatprep.subr.bf16.mxu0 %v2802
    %3784 = vmatpush1.bf16.msra.mxu0 %v2801
    %3785 = vmatprep.subr.bf16.mxu0 %v2810
    %3786 = vmatpush1.bf16.msra.mxu0 %v2809
    %3787 = vmatprep.subr.bf16.mxu0 %v2818
    %3788 = vmatpush1.bf16.msra.mxu0 %v2817
    %3789 = vmatprep.subr.bf16.mxu0 %v2826
    %3790 = vmatpush1.bf16.msra.mxu0 %v2825
    %3791 = vmatprep.subr.bf16.mxu0 %v2834
    %3792 = vmatpush1.bf16.msra.mxu0 %v2833
    %3793 = vmatprep.subr.bf16.mxu0 %v2842
    %3794 = vmatpush1.bf16.msra.mxu0 %v2841
    %3795 = vmatprep.subr.bf16.mxu0 %v2850
    %3796 = vmatpush1.bf16.msra.mxu0 %v2849
    %3797 = vmatprep.subr.bf16.mxu0 %v2858
    %3798 = vmatpush1.bf16.msra.mxu0 %v2857
    %3799 = vmatprep.subr.bf16.mxu0 %v2866
    %3800 = vmatpush1.bf16.msra.mxu0 %v2865
    %3801 = vmatprep.mubr.bf16.mxu0 %v648
    %3802 = vmatmul.mubr.bf16.gmra.mrb[0].mxu0 %v647
    %v3803 = vpop.f32.mrb[0].mxu0
    %v3804 = vadd.f32 %v1172, %v3803
    %v3805 = vpop.f32.mrb[0].mxu0
    %v3806 = vadd.f32 %v1176, %v3805
    %v3807 = vpop.f32.mrb[0].mxu0
    %v3808 = vadd.f32 %v1172, %v3807
    %v3809 = vpop.f32.mrb[0].mxu0
    %v3810 = vadd.f32 %v1176, %v3809
    %3811 = vdwg.mxu0
    %3812 = vmatprep.subr.bf16.mxu0 %v2874
    %3813 = vmatpush1.bf16.msra.mxu0 %v2873
    %3814 = vmatprep.subr.bf16.mxu0 %v2882
    %3815 = vmatpush1.bf16.msra.mxu0 %v2881
    %3816 = vmatprep.subr.bf16.mxu0 %v2890
    %3817 = vmatpush1.bf16.msra.mxu0 %v2889
    %3818 = vmatprep.subr.bf16.mxu0 %v2898
    %3819 = vmatpush1.bf16.msra.mxu0 %v2897
    %3820 = vmatprep.subr.bf16.mxu0 %v2906
    %3821 = vmatpush1.bf16.msra.mxu0 %v2905
    %3822 = vmatprep.subr.bf16.mxu0 %v2914
    %3823 = vmatpush1.bf16.msra.mxu0 %v2913
    %3824 = vmatprep.subr.bf16.mxu0 %v2922
    %3825 = vmatpush1.bf16.msra.mxu0 %v2921
    %3826 = vmatprep.subr.bf16.mxu0 %v2930
    %3827 = vmatpush1.bf16.msra.mxu0 %v2929
    %3828 = vmatprep.subr.bf16.mxu0 %v2938
    %3829 = vmatpush1.bf16.msra.mxu0 %v2937
    %3830 = vmatprep.subr.bf16.mxu0 %v2946
    %3831 = vmatpush1.bf16.msra.mxu0 %v2945
    %3832 = vmatprep.subr.bf16.mxu0 %v2954
    %3833 = vmatpush1.bf16.msra.mxu0 %v2953
    %3834 = vmatprep.subr.bf16.mxu0 %v2962
    %3835 = vmatpush1.bf16.msra.mxu0 %v2961
    %3836 = vmatprep.subr.bf16.mxu0 %v2970
    %3837 = vmatpush1.bf16.msra.mxu0 %v2969
    %3838 = vmatprep.subr.bf16.mxu0 %v2978
    %3839 = vmatpush1.bf16.msra.mxu0 %v2977
    %3840 = vmatprep.subr.bf16.mxu0 %v2986
    %3841 = vmatpush1.bf16.msra.mxu0 %v2985
    %3842 = vmatprep.subr.bf16.mxu0 %v2994
    %3843 = vmatpush1.bf16.msra.mxu0 %v2993
    %3844 = vmatprep.mubr.bf16.mxu0 %v650
    %3845 = vmatmul.mubr.bf16.gmra.mrb[0].mxu0 %v649
    %v3846 = vpop.f32.mrb[0].mxu0
    %v3847 = vadd.f32 %v3804, %v3846
    %v3848 = vpop.f32.mrb[0].mxu0
    %v3849 = vadd.f32 %v3806, %v3848
    %v3850 = vpop.f32.mrb[0].mxu0
    %v3851 = vadd.f32 %v3808, %v3850
    %v3852 = vpop.f32.mrb[0].mxu0
    %v3853 = vadd.f32 %v3810, %v3852
    %3854 = vdwg.mxu0
    %3855 = vmatprep.subr.bf16.mxu0 %v3002
    %3856 = vmatpush1.bf16.msra.mxu0 %v3001
    %3857 = vmatprep.subr.bf16.mxu0 %v3010
    %3858 = vmatpush1.bf16.msra.mxu0 %v3009
    %3859 = vmatprep.subr.bf16.mxu0 %v3018
    %3860 = vmatpush1.bf16.msra.mxu0 %v3017
    %3861 = vmatprep.subr.bf16.mxu0 %v3026
    %3862 = vmatpush1.bf16.msra.mxu0 %v3025
    %3863 = vmatprep.subr.bf16.mxu0 %v3034
    %3864 = vmatpush1.bf16.msra.mxu0 %v3033
    %3865 = vmatprep.subr.bf16.mxu0 %v3042
    %3866 = vmatpush1.bf16.msra.mxu0 %v3041
    %3867 = vmatprep.subr.bf16.mxu0 %v3050
    %3868 = vmatpush1.bf16.msra.mxu0 %v3049
    %3869 = vmatprep.subr.bf16.mxu0 %v3058
    %3870 = vmatpush1.bf16.msra.mxu0 %v3057
    %3871 = vmatprep.subr.bf16.mxu0 %v3066
    %3872 = vmatpush1.bf16.msra.mxu0 %v3065
    %3873 = vmatprep.subr.bf16.mxu0 %v3074
    %3874 = vmatpush1.bf16.msra.mxu0 %v3073
    %3875 = vmatprep.subr.bf16.mxu0 %v3082
    %3876 = vmatpush1.bf16.msra.mxu0 %v3081
    %3877 = vmatprep.subr.bf16.mxu0 %v3090
    %3878 = vmatpush1.bf16.msra.mxu0 %v3089
    %3879 = vmatprep.subr.bf16.mxu0 %v3098
    %3880 = vmatpush1.bf16.msra.mxu0 %v3097
    %3881 = vmatprep.subr.bf16.mxu0 %v3106
    %3882 = vmatpush1.bf16.msra.mxu0 %v3105
    %3883 = vmatprep.subr.bf16.mxu0 %v3114
    %3884 = vmatpush1.bf16.msra.mxu0 %v3113
    %3885 = vmatprep.subr.bf16.mxu0 %v3122
    %3886 = vmatpush1.bf16.msra.mxu0 %v3121
    %3887 = vmatprep.mubr.bf16.mxu0 %v652
    %3888 = vmatmul.mubr.bf16.gmra.mrb[0].mxu0 %v651
    %v3889 = vpop.f32.mrb[0].mxu0
    %v3890 = vadd.f32 %v3847, %v3889
    %v3891 = vpop.f32.mrb[0].mxu0
    %v3892 = vadd.f32 %v3849, %v3891
    %v3893 = vpop.f32.mrb[0].mxu0
    %v3894 = vadd.f32 %v3851, %v3893
    %v3895 = vpop.f32.mrb[0].mxu0
    %v3896 = vadd.f32 %v3853, %v3895
    %3897 = vdwg.mxu0
    %3898 = vmatprep.subr.bf16.mxu0 %v3130
    %3899 = vmatpush1.bf16.msra.mxu0 %v3129
    %3900 = vmatprep.subr.bf16.mxu0 %v3138
    %3901 = vmatpush1.bf16.msra.mxu0 %v3137
    %3902 = vmatprep.subr.bf16.mxu0 %v3146
    %3903 = vmatpush1.bf16.msra.mxu0 %v3145
    %3904 = vmatprep.subr.bf16.mxu0 %v3154
    %3905 = vmatpush1.bf16.msra.mxu0 %v3153
    %3906 = vmatprep.subr.bf16.mxu0 %v3162
    %3907 = vmatpush1.bf16.msra.mxu0 %v3161
    %3908 = vmatprep.subr.bf16.mxu0 %v3170
    %3909 = vmatpush1.bf16.msra.mxu0 %v3169
    %3910 = vmatprep.subr.bf16.mxu0 %v3178
    %3911 = vmatpush1.bf16.msra.mxu0 %v3177
    %3912 = vmatprep.subr.bf16.mxu0 %v3186
    %3913 = vmatpush1.bf16.msra.mxu0 %v3185
    %3914 = vmatprep.subr.bf16.mxu0 %v3194
    %3915 = vmatpush1.bf16.msra.mxu0 %v3193
    %3916 = vmatprep.subr.bf16.mxu0 %v3202
    %3917 = vmatpush1.bf16.msra.mxu0 %v3201
    %3918 = vmatprep.subr.bf16.mxu0 %v3210
    %3919 = vmatpush1.bf16.msra.mxu0 %v3209
    %3920 = vmatprep.subr.bf16.mxu0 %v3218
    %3921 = vmatpush1.bf16.msra.mxu0 %v3217
    %3922 = vmatprep.subr.bf16.mxu0 %v3226
    %3923 = vmatpush1.bf16.msra.mxu0 %v3225
    %3924 = vmatprep.subr.bf16.mxu0 %v3234
    %3925 = vmatpush1.bf16.msra.mxu0 %v3233
    %3926 = vmatprep.subr.bf16.mxu0 %v3242
    %3927 = vmatpush1.bf16.msra.mxu0 %v3241
    %3928 = vmatprep.subr.bf16.mxu0 %v3250
    %3929 = vmatpush1.bf16.msra.mxu0 %v3249
    %3930 = vmatprep.mubr.bf16.mxu0 %v654
    %3931 = vmatmul.mubr.bf16.gmra.mrb[0].mxu0 %v653
    %v3932 = vpop.f32.mrb[0].mxu0
    %v3933 = vadd.f32 %v3890, %v3932
    %v3934 = vpop.f32.mrb[0].mxu0
    %v3935 = vadd.f32 %v3892, %v3934
    %v3936 = vpop.f32.mrb[0].mxu0
    %v3937 = vadd.f32 %v3894, %v3936
    %v3938 = vpop.f32.mrb[0].mxu0
    %v3939 = vadd.f32 %v3896, %v3938
    %3940 = vdwg.mxu0
    %3941 = vmatprep.subr.bf16.mxu0 %v2748
    %3942 = vmatpush1.bf16.msra.mxu0 %v2747
    %3943 = vmatprep.subr.bf16.mxu0 %v2756
    %3944 = vmatpush1.bf16.msra.mxu0 %v2755
    %3945 = vmatprep.subr.bf16.mxu0 %v2764
    %3946 = vmatpush1.bf16.msra.mxu0 %v2763
    %3947 = vmatprep.subr.bf16.mxu0 %v2772
    %3948 = vmatpush1.bf16.msra.mxu0 %v2771
    %3949 = vmatprep.subr.bf16.mxu0 %v2780
    %3950 = vmatpush1.bf16.msra.mxu0 %v2779
    %3951 = vmatprep.subr.bf16.mxu0 %v2788
    %3952 = vmatpush1.bf16.msra.mxu0 %v2787
    %3953 = vmatprep.subr.bf16.mxu0 %v2796
    %3954 = vmatpush1.bf16.msra.mxu0 %v2795
    %3955 = vmatprep.subr.bf16.mxu0 %v2804
    %3956 = vmatpush1.bf16.msra.mxu0 %v2803
    %3957 = vmatprep.subr.bf16.mxu0 %v2812
    %3958 = vmatpush1.bf16.msra.mxu0 %v2811
    %3959 = vmatprep.subr.bf16.mxu0 %v2820
    %3960 = vmatpush1.bf16.msra.mxu0 %v2819
    %3961 = vmatprep.subr.bf16.mxu0 %v2828
    %3962 = vmatpush1.bf16.msra.mxu0 %v2827
    %3963 = vmatprep.subr.bf16.mxu0 %v2836
    %3964 = vmatpush1.bf16.msra.mxu0 %v2835
    %3965 = vmatprep.subr.bf16.mxu0 %v2844
    %3966 = vmatpush1.bf16.msra.mxu0 %v2843
    %3967 = vmatprep.subr.bf16.mxu0 %v2852
    %3968 = vmatpush1.bf16.msra.mxu0 %v2851
    %3969 = vmatprep.subr.bf16.mxu0 %v2860
    %3970 = vmatpush1.bf16.msra.mxu0 %v2859
    %3971 = vmatprep.subr.bf16.mxu0 %v2868
    %3972 = vmatpush1.bf16.msra.mxu0 %v2867
    %3973 = vmatprep.mubr.bf16.mxu0 %v648
    %3974 = vmatmul.mubr.bf16.gmra.mrb[0].mxu0 %v647
    %v3975 = vpop.f32.mrb[0].mxu0
    %v3976 = vadd.f32 %v1180, %v3975
    %v3977 = vpop.f32.mrb[0].mxu0
    %v3978 = vadd.f32 %v1184, %v3977
    %v3979 = vpop.f32.mrb[0].mxu0
    %v3980 = vadd.f32 %v1180, %v3979
    %v3981 = vpop.f32.mrb[0].mxu0
    %v3982 = vadd.f32 %v1184, %v3981
    %3983 = vdwg.mxu0
    %3984 = vmatprep.subr.bf16.mxu0 %v2876
    %3985 = vmatpush1.bf16.msra.mxu0 %v2875
    %3986 = vmatprep.subr.bf16.mxu0 %v2884
    %3987 = vmatpush1.bf16.msra.mxu0 %v2883
    %3988 = vmatprep.subr.bf16.mxu0 %v2892
    %3989 = vmatpush1.bf16.msra.mxu0 %v2891
    %3990 = vmatprep.subr.bf16.mxu0 %v2900
    %3991 = vmatpush1.bf16.msra.mxu0 %v2899
    %3992 = vmatprep.subr.bf16.mxu0 %v2908
    %3993 = vmatpush1.bf16.msra.mxu0 %v2907
    %3994 = vmatprep.subr.bf16.mxu0 %v2916
    %3995 = vmatpush1.bf16.msra.mxu0 %v2915
    %3996 = vmatprep.subr.bf16.mxu0 %v2924
    %3997 = vmatpush1.bf16.msra.mxu0 %v2923
    %3998 = vmatprep.subr.bf16.mxu0 %v2932
    %3999 = vmatpush1.bf16.msra.mxu0 %v2931
    %4000 = vmatprep.subr.bf16.mxu0 %v2940
    %4001 = vmatpush1.bf16.msra.mxu0 %v2939
    %4002 = vmatprep.subr.bf16.mxu0 %v2948
    %4003 = vmatpush1.bf16.msra.mxu0 %v2947
    %4004 = vmatprep.subr.bf16.mxu0 %v2956
    %4005 = vmatpush1.bf16.msra.mxu0 %v2955
    %4006 = vmatprep.subr.bf16.mxu0 %v2964
    %4007 = vmatpush1.bf16.msra.mxu0 %v2963
    %4008 = vmatprep.subr.bf16.mxu0 %v2972
    %4009 = vmatpush1.bf16.msra.mxu0 %v2971
    %4010 = vmatprep.subr.bf16.mxu0 %v2980
    %4011 = vmatpush1.bf16.msra.mxu0 %v2979
    %4012 = vmatprep.subr.bf16.mxu0 %v2988
    %4013 = vmatpush1.bf16.msra.mxu0 %v2987
    %4014 = vmatprep.subr.bf16.mxu0 %v2996
    %4015 = vmatpush1.bf16.msra.mxu0 %v2995
    %4016 = vmatprep.mubr.bf16.mxu0 %v650
    %4017 = vmatmul.mubr.bf16.gmra.mrb[0].mxu0 %v649
    %v4018 = vpop.f32.mrb[0].mxu0
    %v4019 = vadd.f32 %v3976, %v4018
    %v4020 = vpop.f32.mrb[0].mxu0
    %v4021 = vadd.f32 %v3978, %v4020
    %v4022 = vpop.f32.mrb[0].mxu0
    %v4023 = vadd.f32 %v3980, %v4022
    %v4024 = vpop.f32.mrb[0].mxu0
    %v4025 = vadd.f32 %v3982, %v4024
    %4026 = vdwg.mxu0
    %4027 = vmatprep.subr.bf16.mxu0 %v3004
    %4028 = vmatpush1.bf16.msra.mxu0 %v3003
    %4029 = vmatprep.subr.bf16.mxu0 %v3012
    %4030 = vmatpush1.bf16.msra.mxu0 %v3011
    %4031 = vmatprep.subr.bf16.mxu0 %v3020
    %4032 = vmatpush1.bf16.msra.mxu0 %v3019
    %4033 = vmatprep.subr.bf16.mxu0 %v3028
    %4034 = vmatpush1.bf16.msra.mxu0 %v3027
    %4035 = vmatprep.subr.bf16.mxu0 %v3036
    %4036 = vmatpush1.bf16.msra.mxu0 %v3035
    %4037 = vmatprep.subr.bf16.mxu0 %v3044
    %4038 = vmatpush1.bf16.msra.mxu0 %v3043
    %4039 = vmatprep.subr.bf16.mxu0 %v3052
    %4040 = vmatpush1.bf16.msra.mxu0 %v3051
    %4041 = vmatprep.subr.bf16.mxu0 %v3060
    %4042 = vmatpush1.bf16.msra.mxu0 %v3059
    %4043 = vmatprep.subr.bf16.mxu0 %v3068
    %4044 = vmatpush1.bf16.msra.mxu0 %v3067
    %4045 = vmatprep.subr.bf16.mxu0 %v3076
    %4046 = vmatpush1.bf16.msra.mxu0 %v3075
    %4047 = vmatprep.subr.bf16.mxu0 %v3084
    %4048 = vmatpush1.bf16.msra.mxu0 %v3083
    %4049 = vmatprep.subr.bf16.mxu0 %v3092
    %4050 = vmatpush1.bf16.msra.mxu0 %v3091
    %4051 = vmatprep.subr.bf16.mxu0 %v3100
    %4052 = vmatpush1.bf16.msra.mxu0 %v3099
    %4053 = vmatprep.subr.bf16.mxu0 %v3108
    %4054 = vmatpush1.bf16.msra.mxu0 %v3107
    %4055 = vmatprep.subr.bf16.mxu0 %v3116
    %4056 = vmatpush1.bf16.msra.mxu0 %v3115
    %4057 = vmatprep.subr.bf16.mxu0 %v3124
    %4058 = vmatpush1.bf16.msra.mxu0 %v3123
    %4059 = vmatprep.mubr.bf16.mxu0 %v652
    %4060 = vmatmul.mubr.bf16.gmra.mrb[0].mxu0 %v651
    %v4061 = vpop.f32.mrb[0].mxu0
    %v4062 = vadd.f32 %v4019, %v4061
    %v4063 = vpop.f32.mrb[0].mxu0
    %v4064 = vadd.f32 %v4021, %v4063
    %v4065 = vpop.f32.mrb[0].mxu0
    %v4066 = vadd.f32 %v4023, %v4065
    %v4067 = vpop.f32.mrb[0].mxu0
    %v4068 = vadd.f32 %v4025, %v4067
    %4069 = vdwg.mxu0
    %4070 = vmatprep.subr.bf16.mxu0 %v3132
    %4071 = vmatpush1.bf16.msra.mxu0 %v3131
    %4072 = vmatprep.subr.bf16.mxu0 %v3140
    %4073 = vmatpush1.bf16.msra.mxu0 %v3139
    %4074 = vmatprep.subr.bf16.mxu0 %v3148
    %4075 = vmatpush1.bf16.msra.mxu0 %v3147
    %4076 = vmatprep.subr.bf16.mxu0 %v3156
    %4077 = vmatpush1.bf16.msra.mxu0 %v3155
    %4078 = vmatprep.subr.bf16.mxu0 %v3164
    %4079 = vmatpush1.bf16.msra.mxu0 %v3163
    %4080 = vmatprep.subr.bf16.mxu0 %v3172
    %4081 = vmatpush1.bf16.msra.mxu0 %v3171
    %4082 = vmatprep.subr.bf16.mxu0 %v3180
    %4083 = vmatpush1.bf16.msra.mxu0 %v3179
    %4084 = vmatprep.subr.bf16.mxu0 %v3188
    %4085 = vmatpush1.bf16.msra.mxu0 %v3187
    %4086 = vmatprep.subr.bf16.mxu0 %v3196
    %4087 = vmatpush1.bf16.msra.mxu0 %v3195
    %4088 = vmatprep.subr.bf16.mxu0 %v3204
    %4089 = vmatpush1.bf16.msra.mxu0 %v3203
    %4090 = vmatprep.subr.bf16.mxu0 %v3212
    %4091 = vmatpush1.bf16.msra.mxu0 %v3211
    %4092 = vmatprep.subr.bf16.mxu0 %v3220
    %4093 = vmatpush1.bf16.msra.mxu0 %v3219
    %4094 = vmatprep.subr.bf16.mxu0 %v3228
    %4095 = vmatpush1.bf16.msra.mxu0 %v3227
    %4096 = vmatprep.subr.bf16.mxu0 %v3236
    %4097 = vmatpush1.bf16.msra.mxu0 %v3235
    %4098 = vmatprep.subr.bf16.mxu0 %v3244
    %4099 = vmatpush1.bf16.msra.mxu0 %v3243
    %4100 = vmatprep.subr.bf16.mxu0 %v3252
    %4101 = vmatpush1.bf16.msra.mxu0 %v3251
    %4102 = vmatprep.mubr.bf16.mxu0 %v654
    %4103 = vmatmul.mubr.bf16.gmra.mrb[0].mxu0 %v653
    %v4104 = vpop.f32.mrb[0].mxu0
    %v4105 = vadd.f32 %v4062, %v4104
    %v4106 = vpop.f32.mrb[0].mxu0
    %v4107 = vadd.f32 %v4064, %v4106
    %v4108 = vpop.f32.mrb[0].mxu0
    %v4109 = vadd.f32 %v4066, %v4108
    %v4110 = vpop.f32.mrb[0].mxu0
    %v4111 = vadd.f32 %v4068, %v4110
    %4112 = vdwg.mxu0
    %4113 = vmatprep.subr.bf16.mxu0 %v2750
    %4114 = vmatpush1.bf16.msra.mxu0 %v2749
    %4115 = vmatprep.subr.bf16.mxu0 %v2758
    %4116 = vmatpush1.bf16.msra.mxu0 %v2757
    %4117 = vmatprep.subr.bf16.mxu0 %v2766
    %4118 = vmatpush1.bf16.msra.mxu0 %v2765
    %4119 = vmatprep.subr.bf16.mxu0 %v2774
    %4120 = vmatpush1.bf16.msra.mxu0 %v2773
    %4121 = vmatprep.subr.bf16.mxu0 %v2782
    %4122 = vmatpush1.bf16.msra.mxu0 %v2781
    %4123 = vmatprep.subr.bf16.mxu0 %v2790
    %4124 = vmatpush1.bf16.msra.mxu0 %v2789
    %4125 = vmatprep.subr.bf16.mxu0 %v2798
    %4126 = vmatpush1.bf16.msra.mxu0 %v2797
    %4127 = vmatprep.subr.bf16.mxu0 %v2806
    %4128 = vmatpush1.bf16.msra.mxu0 %v2805
    %4129 = vmatprep.subr.bf16.mxu0 %v2814
    %4130 = vmatpush1.bf16.msra.mxu0 %v2813
    %4131 = vmatprep.subr.bf16.mxu0 %v2822
    %4132 = vmatpush1.bf16.msra.mxu0 %v2821
    %4133 = vmatprep.subr.bf16.mxu0 %v2830
    %4134 = vmatpush1.bf16.msra.mxu0 %v2829
    %4135 = vmatprep.subr.bf16.mxu0 %v2838
    %4136 = vmatpush1.bf16.msra.mxu0 %v2837
    %4137 = vmatprep.subr.bf16.mxu0 %v2846
    %4138 = vmatpush1.bf16.msra.mxu0 %v2845
    %4139 = vmatprep.subr.bf16.mxu0 %v2854
    %4140 = vmatpush1.bf16.msra.mxu0 %v2853
    %4141 = vmatprep.subr.bf16.mxu0 %v2862
    %4142 = vmatpush1.bf16.msra.mxu0 %v2861
    %4143 = vmatprep.subr.bf16.mxu0 %v2870
    %4144 = vmatpush1.bf16.msra.mxu0 %v2869
    %4145 = vmatprep.mubr.bf16.mxu0 %v648
    %4146 = vmatmul.mubr.bf16.gmra.mrb[0].mxu0 %v647
    %v4147 = vpop.f32.mrb[0].mxu0
    %v4148 = vadd.f32 %v1188, %v4147
    %v4149 = vpop.f32.mrb[0].mxu0
    %v4150 = vadd.f32 %v1192, %v4149
    %v4151 = vpop.f32.mrb[0].mxu0
    %v4152 = vadd.f32 %v1188, %v4151
    %v4153 = vpop.f32.mrb[0].mxu0
    %v4154 = vadd.f32 %v1192, %v4153
    %4155 = vdwg.mxu0
    %4156 = vmatprep.subr.bf16.mxu0 %v2878
    %4157 = vmatpush1.bf16.msra.mxu0 %v2877
    %4158 = vmatprep.subr.bf16.mxu0 %v2886
    %4159 = vmatpush1.bf16.msra.mxu0 %v2885
    %4160 = vmatprep.subr.bf16.mxu0 %v2894
    %4161 = vmatpush1.bf16.msra.mxu0 %v2893
    %4162 = vmatprep.subr.bf16.mxu0 %v2902
    %4163 = vmatpush1.bf16.msra.mxu0 %v2901
    %4164 = vmatprep.subr.bf16.mxu0 %v2910
    %4165 = vmatpush1.bf16.msra.mxu0 %v2909
    %4166 = vmatprep.subr.bf16.mxu0 %v2918
    %4167 = vmatpush1.bf16.msra.mxu0 %v2917
    %4168 = vmatprep.subr.bf16.mxu0 %v2926
    %4169 = vmatpush1.bf16.msra.mxu0 %v2925
    %4170 = vmatprep.subr.bf16.mxu0 %v2934
    %4171 = vmatpush1.bf16.msra.mxu0 %v2933
    %4172 = vmatprep.subr.bf16.mxu0 %v2942
    %4173 = vmatpush1.bf16.msra.mxu0 %v2941
    %4174 = vmatprep.subr.bf16.mxu0 %v2950
    %4175 = vmatpush1.bf16.msra.mxu0 %v2949
    %4176 = vmatprep.subr.bf16.mxu0 %v2958
    %4177 = vmatpush1.bf16.msra.mxu0 %v2957
    %4178 = vmatprep.subr.bf16.mxu0 %v2966
    %4179 = vmatpush1.bf16.msra.mxu0 %v2965
    %4180 = vmatprep.subr.bf16.mxu0 %v2974
    %4181 = vmatpush1.bf16.msra.mxu0 %v2973
    %4182 = vmatprep.subr.bf16.mxu0 %v2982
    %4183 = vmatpush1.bf16.msra.mxu0 %v2981
    %4184 = vmatprep.subr.bf16.mxu0 %v2990
    %4185 = vmatpush1.bf16.msra.mxu0 %v2989
    %4186 = vmatprep.subr.bf16.mxu0 %v2998
    %4187 = vmatpush1.bf16.msra.mxu0 %v2997
    %4188 = vmatprep.mubr.bf16.mxu0 %v650
    %4189 = vmatmul.mubr.bf16.gmra.mrb[0].mxu0 %v649
    %v4190 = vpop.f32.mrb[0].mxu0
    %v4191 = vadd.f32 %v4148, %v4190
    %v4192 = vpop.f32.mrb[0].mxu0
    %v4193 = vadd.f32 %v4150, %v4192
    %v4194 = vpop.f32.mrb[0].mxu0
    %v4195 = vadd.f32 %v4152, %v4194
    %v4196 = vpop.f32.mrb[0].mxu0
    %v4197 = vadd.f32 %v4154, %v4196
    %4198 = vdwg.mxu0
    %4199 = vmatprep.subr.bf16.mxu0 %v3006
    %4200 = vmatpush1.bf16.msra.mxu0 %v3005
    %4201 = vmatprep.subr.bf16.mxu0 %v3014
    %4202 = vmatpush1.bf16.msra.mxu0 %v3013
    %4203 = vmatprep.subr.bf16.mxu0 %v3022
    %4204 = vmatpush1.bf16.msra.mxu0 %v3021
    %4205 = vmatprep.subr.bf16.mxu0 %v3030
    %4206 = vmatpush1.bf16.msra.mxu0 %v3029
    %4207 = vmatprep.subr.bf16.mxu0 %v3038
    %4208 = vmatpush1.bf16.msra.mxu0 %v3037
    %4209 = vmatprep.subr.bf16.mxu0 %v3046
    %4210 = vmatpush1.bf16.msra.mxu0 %v3045
    %4211 = vmatprep.subr.bf16.mxu0 %v3054
    %4212 = vmatpush1.bf16.msra.mxu0 %v3053
    %4213 = vmatprep.subr.bf16.mxu0 %v3062
    %4214 = vmatpush1.bf16.msra.mxu0 %v3061
    %4215 = vmatprep.subr.bf16.mxu0 %v3070
    %4216 = vmatpush1.bf16.msra.mxu0 %v3069
    %4217 = vmatprep.subr.bf16.mxu0 %v3078
    %4218 = vmatpush1.bf16.msra.mxu0 %v3077
    %4219 = vmatprep.subr.bf16.mxu0 %v3086
    %4220 = vmatpush1.bf16.msra.mxu0 %v3085
    %4221 = vmatprep.subr.bf16.mxu0 %v3094
    %4222 = vmatpush1.bf16.msra.mxu0 %v3093
    %4223 = vmatprep.subr.bf16.mxu0 %v3102
    %4224 = vmatpush1.bf16.msra.mxu0 %v3101
    %4225 = vmatprep.subr.bf16.mxu0 %v3110
    %4226 = vmatpush1.bf16.msra.mxu0 %v3109
    %4227 = vmatprep.subr.bf16.mxu0 %v3118
    %4228 = vmatpush1.bf16.msra.mxu0 %v3117
    %4229 = vmatprep.subr.bf16.mxu0 %v3126
    %4230 = vmatpush1.bf16.msra.mxu0 %v3125
    %4231 = vmatprep.mubr.bf16.mxu0 %v652
    %4232 = vmatmul.mubr.bf16.gmra.mrb[0].mxu0 %v651
    %v4233 = vpop.f32.mrb[0].mxu0
    %v4234 = vadd.f32 %v4191, %v4233
    %v4235 = vpop.f32.mrb[0].mxu0
    %v4236 = vadd.f32 %v4193, %v4235
    %v4237 = vpop.f32.mrb[0].mxu0
    %v4238 = vadd.f32 %v4195, %v4237
    %v4239 = vpop.f32.mrb[0].mxu0
    %v4240 = vadd.f32 %v4197, %v4239
    %4241 = vdwg.mxu0
    %4242 = vmatprep.subr.bf16.mxu0 %v3134
    %4243 = vmatpush1.bf16.msra.mxu0 %v3133
    %4244 = vmatprep.subr.bf16.mxu0 %v3142
    %4245 = vmatpush1.bf16.msra.mxu0 %v3141
    %4246 = vmatprep.subr.bf16.mxu0 %v3150
    %4247 = vmatpush1.bf16.msra.mxu0 %v3149
    %4248 = vmatprep.subr.bf16.mxu0 %v3158
    %4249 = vmatpush1.bf16.msra.mxu0 %v3157
    %4250 = vmatprep.subr.bf16.mxu0 %v3166
    %4251 = vmatpush1.bf16.msra.mxu0 %v3165
    %4252 = vmatprep.subr.bf16.mxu0 %v3174
    %4253 = vmatpush1.bf16.msra.mxu0 %v3173
    %4254 = vmatprep.subr.bf16.mxu0 %v3182
    %4255 = vmatpush1.bf16.msra.mxu0 %v3181
    %4256 = vmatprep.subr.bf16.mxu0 %v3190
    %4257 = vmatpush1.bf16.msra.mxu0 %v3189
    %4258 = vmatprep.subr.bf16.mxu0 %v3198
    %4259 = vmatpush1.bf16.msra.mxu0 %v3197
    %4260 = vmatprep.subr.bf16.mxu0 %v3206
    %4261 = vmatpush1.bf16.msra.mxu0 %v3205
    %4262 = vmatprep.subr.bf16.mxu0 %v3214
    %4263 = vmatpush1.bf16.msra.mxu0 %v3213
    %4264 = vmatprep.subr.bf16.mxu0 %v3222
    %4265 = vmatpush1.bf16.msra.mxu0 %v3221
    %4266 = vmatprep.subr.bf16.mxu0 %v3230
    %4267 = vmatpush1.bf16.msra.mxu0 %v3229
    %4268 = vmatprep.subr.bf16.mxu0 %v3238
    %4269 = vmatpush1.bf16.msra.mxu0 %v3237
    %4270 = vmatprep.subr.bf16.mxu0 %v3246
    %4271 = vmatpush1.bf16.msra.mxu0 %v3245
    %4272 = vmatprep.subr.bf16.mxu0 %v3254
    %4273 = vmatpush1.bf16.msra.mxu0 %v3253
    %4274 = vmatprep.mubr.bf16.mxu0 %v654
    %4275 = vmatmul.mubr.bf16.gmra.mrb[0].mxu0 %v653
    %v4276 = vpop.f32.mrb[0].mxu0
    %v4277 = vadd.f32 %v4234, %v4276
    %v4278 = vpop.f32.mrb[0].mxu0
    %v4279 = vadd.f32 %v4236, %v4278
    %v4280 = vpop.f32.mrb[0].mxu0
    %v4281 = vadd.f32 %v4238, %v4280
    %v4282 = vpop.f32.mrb[0].mxu0
    %v4283 = vadd.f32 %v4240, %v4282
    %4284 = vdwg.mxu0
    %4285 = vmatprep.subr.bf16.mxu0 %v2752
    %4286 = vmatpush1.bf16.msra.mxu0 %v2751
    %4287 = vmatprep.subr.bf16.mxu0 %v2760
    %4288 = vmatpush1.bf16.msra.mxu0 %v2759
    %4289 = vmatprep.subr.bf16.mxu0 %v2768
    %4290 = vmatpush1.bf16.msra.mxu0 %v2767
    %4291 = vmatprep.subr.bf16.mxu0 %v2776
    %4292 = vmatpush1.bf16.msra.mxu0 %v2775
    %4293 = vmatprep.subr.bf16.mxu0 %v2784
    %4294 = vmatpush1.bf16.msra.mxu0 %v2783
    %4295 = vmatprep.subr.bf16.mxu0 %v2792
    %4296 = vmatpush1.bf16.msra.mxu0 %v2791
    %4297 = vmatprep.subr.bf16.mxu0 %v2800
    %4298 = vmatpush1.bf16.msra.mxu0 %v2799
    %4299 = vmatprep.subr.bf16.mxu0 %v2808
    %4300 = vmatpush1.bf16.msra.mxu0 %v2807
    %4301 = vmatprep.subr.bf16.mxu0 %v2816
    %4302 = vmatpush1.bf16.msra.mxu0 %v2815
    %4303 = vmatprep.subr.bf16.mxu0 %v2824
    %4304 = vmatpush1.bf16.msra.mxu0 %v2823
    %4305 = vmatprep.subr.bf16.mxu0 %v2832
    %4306 = vmatpush1.bf16.msra.mxu0 %v2831
    %4307 = vmatprep.subr.bf16.mxu0 %v2840
    %4308 = vmatpush1.bf16.msra.mxu0 %v2839
    %4309 = vmatprep.subr.bf16.mxu0 %v2848
    %4310 = vmatpush1.bf16.msra.mxu0 %v2847
    %4311 = vmatprep.subr.bf16.mxu0 %v2856
    %4312 = vmatpush1.bf16.msra.mxu0 %v2855
    %4313 = vmatprep.subr.bf16.mxu0 %v2864
    %4314 = vmatpush1.bf16.msra.mxu0 %v2863
    %4315 = vmatprep.subr.bf16.mxu0 %v2872
    %4316 = vmatpush1.bf16.msra.mxu0 %v2871
    %4317 = vmatprep.mubr.bf16.mxu0 %v648
    %4318 = vmatmul.mubr.bf16.gmra.mrb[0].mxu0 %v647
    %v4319 = vpop.f32.mrb[0].mxu0
    %v4320 = vadd.f32 %v1196, %v4319
    %v4321 = vpop.f32.mrb[0].mxu0
    %v4322 = vadd.f32 %v1200, %v4321
    %v4323 = vpop.f32.mrb[0].mxu0
    %v4324 = vadd.f32 %v1196, %v4323
    %v4325 = vpop.f32.mrb[0].mxu0
    %v4326 = vadd.f32 %v1200, %v4325
    %4327 = vdwg.mxu0
    %4328 = vmatprep.subr.bf16.mxu0 %v2880
    %4329 = vmatpush1.bf16.msra.mxu0 %v2879
    %4330 = vmatprep.subr.bf16.mxu0 %v2888
    %4331 = vmatpush1.bf16.msra.mxu0 %v2887
    %4332 = vmatprep.subr.bf16.mxu0 %v2896
    %4333 = vmatpush1.bf16.msra.mxu0 %v2895
    %4334 = vmatprep.subr.bf16.mxu0 %v2904
    %4335 = vmatpush1.bf16.msra.mxu0 %v2903
    %4336 = vmatprep.subr.bf16.mxu0 %v2912
    %4337 = vmatpush1.bf16.msra.mxu0 %v2911
    %4338 = vmatprep.subr.bf16.mxu0 %v2920
    %4339 = vmatpush1.bf16.msra.mxu0 %v2919
    %4340 = vmatprep.subr.bf16.mxu0 %v2928
    %4341 = vmatpush1.bf16.msra.mxu0 %v2927
    %4342 = vmatprep.subr.bf16.mxu0 %v2936
    %4343 = vmatpush1.bf16.msra.mxu0 %v2935
    %4344 = vmatprep.subr.bf16.mxu0 %v2944
    %4345 = vmatpush1.bf16.msra.mxu0 %v2943
    %4346 = vmatprep.subr.bf16.mxu0 %v2952
    %4347 = vmatpush1.bf16.msra.mxu0 %v2951
    %4348 = vmatprep.subr.bf16.mxu0 %v2960
    %4349 = vmatpush1.bf16.msra.mxu0 %v2959
    %4350 = vmatprep.subr.bf16.mxu0 %v2968
    %4351 = vmatpush1.bf16.msra.mxu0 %v2967
    %4352 = vmatprep.subr.bf16.mxu0 %v2976
    %4353 = vmatpush1.bf16.msra.mxu0 %v2975
    %4354 = vmatprep.subr.bf16.mxu0 %v2984
    %4355 = vmatpush1.bf16.msra.mxu0 %v2983
    %4356 = vmatprep.subr.bf16.mxu0 %v2992
    %4357 = vmatpush1.bf16.msra.mxu0 %v2991
    %4358 = vmatprep.subr.bf16.mxu0 %v3000
    %4359 = vmatpush1.bf16.msra.mxu0 %v2999
    %4360 = vmatprep.mubr.bf16.mxu0 %v650
    %4361 = vmatmul.mubr.bf16.gmra.mrb[0].mxu0 %v649
    %v4362 = vpop.f32.mrb[0].mxu0
    %v4363 = vadd.f32 %v4320, %v4362
    %v4364 = vpop.f32.mrb[0].mxu0
    %v4365 = vadd.f32 %v4322, %v4364
    %v4366 = vpop.f32.mrb[0].mxu0
    %v4367 = vadd.f32 %v4324, %v4366
    %v4368 = vpop.f32.mrb[0].mxu0
    %v4369 = vadd.f32 %v4326, %v4368
    %4370 = vdwg.mxu0
    %4371 = vmatprep.subr.bf16.mxu0 %v3008
    %4372 = vmatpush1.bf16.msra.mxu0 %v3007
    %4373 = vmatprep.subr.bf16.mxu0 %v3016
    %4374 = vmatpush1.bf16.msra.mxu0 %v3015
    %4375 = vmatprep.subr.bf16.mxu0 %v3024
    %4376 = vmatpush1.bf16.msra.mxu0 %v3023
    %4377 = vmatprep.subr.bf16.mxu0 %v3032
    %4378 = vmatpush1.bf16.msra.mxu0 %v3031
    %4379 = vmatprep.subr.bf16.mxu0 %v3040
    %4380 = vmatpush1.bf16.msra.mxu0 %v3039
    %4381 = vmatprep.subr.bf16.mxu0 %v3048
    %4382 = vmatpush1.bf16.msra.mxu0 %v3047
    %4383 = vmatprep.subr.bf16.mxu0 %v3056
    %4384 = vmatpush1.bf16.msra.mxu0 %v3055
    %4385 = vmatprep.subr.bf16.mxu0 %v3064
    %4386 = vmatpush1.bf16.msra.mxu0 %v3063
    %4387 = vmatprep.subr.bf16.mxu0 %v3072
    %4388 = vmatpush1.bf16.msra.mxu0 %v3071
    %4389 = vmatprep.subr.bf16.mxu0 %v3080
    %4390 = vmatpush1.bf16.msra.mxu0 %v3079
    %4391 = vmatprep.subr.bf16.mxu0 %v3088
    %4392 = vmatpush1.bf16.msra.mxu0 %v3087
    %4393 = vmatprep.subr.bf16.mxu0 %v3096
    %4394 = vmatpush1.bf16.msra.mxu0 %v3095
    %4395 = vmatprep.subr.bf16.mxu0 %v3104
    %4396 = vmatpush1.bf16.msra.mxu0 %v3103
    %4397 = vmatprep.subr.bf16.mxu0 %v3112
    %4398 = vmatpush1.bf16.msra.mxu0 %v3111
    %4399 = vmatprep.subr.bf16.mxu0 %v3120
    %4400 = vmatpush1.bf16.msra.mxu0 %v3119
    %4401 = vmatprep.subr.bf16.mxu0 %v3128
    %4402 = vmatpush1.bf16.msra.mxu0 %v3127
    %4403 = vmatprep.mubr.bf16.mxu0 %v652
    %4404 = vmatmul.mubr.bf16.gmra.mrb[0].mxu0 %v651
    %v4405 = vpop.f32.mrb[0].mxu0
    %v4406 = vadd.f32 %v4363, %v4405
    %v4407 = vpop.f32.mrb[0].mxu0
    %v4408 = vadd.f32 %v4365, %v4407
    %v4409 = vpop.f32.mrb[0].mxu0
    %v4410 = vadd.f32 %v4367, %v4409
    %v4411 = vpop.f32.mrb[0].mxu0
    %v4412 = vadd.f32 %v4369, %v4411
    %4413 = vdwg.mxu0
    %4414 = vmatprep.subr.bf16.mxu0 %v3136
    %4415 = vmatpush1.bf16.msra.mxu0 %v3135
    %4416 = vmatprep.subr.bf16.mxu0 %v3144
    %4417 = vmatpush1.bf16.msra.mxu0 %v3143
    %4418 = vmatprep.subr.bf16.mxu0 %v3152
    %4419 = vmatpush1.bf16.msra.mxu0 %v3151
    %4420 = vmatprep.subr.bf16.mxu0 %v3160
    %4421 = vmatpush1.bf16.msra.mxu0 %v3159
    %4422 = vmatprep.subr.bf16.mxu0 %v3168
    %4423 = vmatpush1.bf16.msra.mxu0 %v3167
    %4424 = vmatprep.subr.bf16.mxu0 %v3176
    %4425 = vmatpush1.bf16.msra.mxu0 %v3175
    %4426 = vmatprep.subr.bf16.mxu0 %v3184
    %4427 = vmatpush1.bf16.msra.mxu0 %v3183
    %4428 = vmatprep.subr.bf16.mxu0 %v3192
    %4429 = vmatpush1.bf16.msra.mxu0 %v3191
    %4430 = vmatprep.subr.bf16.mxu0 %v3200
    %4431 = vmatpush1.bf16.msra.mxu0 %v3199
    %4432 = vmatprep.subr.bf16.mxu0 %v3208
    %4433 = vmatpush1.bf16.msra.mxu0 %v3207
    %4434 = vmatprep.subr.bf16.mxu0 %v3216
    %4435 = vmatpush1.bf16.msra.mxu0 %v3215
    %4436 = vmatprep.subr.bf16.mxu0 %v3224
    %4437 = vmatpush1.bf16.msra.mxu0 %v3223
    %4438 = vmatprep.subr.bf16.mxu0 %v3232
    %4439 = vmatpush1.bf16.msra.mxu0 %v3231
    %4440 = vmatprep.subr.bf16.mxu0 %v3240
    %4441 = vmatpush1.bf16.msra.mxu0 %v3239
    %4442 = vmatprep.subr.bf16.mxu0 %v3248
    %4443 = vmatpush1.bf16.msra.mxu0 %v3247
    %4444 = vmatprep.subr.bf16.mxu0 %v3256
    %4445 = vmatpush1.bf16.msra.mxu0 %v3255
    %4446 = vmatprep.mubr.bf16.mxu0 %v654
    %4447 = vmatmul.mubr.bf16.gmra.mrb[0].mxu0 %v653
    %v4448 = vpop.f32.mrb[0].mxu0
    %v4449 = vadd.f32 %v4406, %v4448
    %v4450 = vpop.f32.mrb[0].mxu0
    %v4451 = vadd.f32 %v4408, %v4450
    %v4452 = vpop.f32.mrb[0].mxu0
    %v4453 = vadd.f32 %v4410, %v4452
    %v4454 = vpop.f32.mrb[0].mxu0
    %v4455 = vadd.f32 %v4412, %v4454
    %4456 = vdwg.mxu0
    %v4457 = vmax.f32 %v3933, 0.0
    %v4458 = vmax.f32 %v3935, 0.0
    %v4459 = vmax.f32 %v4105, 0.0
    %v4460 = vmax.f32 %v4107, 0.0
    %v4461 = vmax.f32 %v4277, 0.0
    %v4462 = vmax.f32 %v4279, 0.0
    %v4463 = vmax.f32 %v4449, 0.0
    %v4464 = vmax.f32 %v4451, 0.0
    %v4465 = vmax.f32 %v3937, 0.0
    %v4466 = vmax.f32 %v3939, 0.0
    %v4467 = vmax.f32 %v4109, 0.0
    %v4468 = vmax.f32 %v4111, 0.0
    %v4469 = vmax.f32 %v4281, 0.0
    %v4470 = vmax.f32 %v4283, 0.0
    %v4471 = vmax.f32 %v4453, 0.0
    %v4472 = vmax.f32 %v4455, 0.0
    %v4473 = vld [vmem:[#allocation11] sm:$0xff]
    %v4475 = vlaneseq
    %v4476 = vshrl.u32 %v4475, 7
    %v4477 = vsub.s32 0, %v4476
    %v4478 = vrot.slane %v4473, %v4477
    %v4479 = vlaneseq
    %v4480 = vshrl.u32 %v4479, 7
    %v4481 = vsub.s32 1, %v4480
    %v4482 = vrot.slane %v4473, %v4481
    %v4483 = vlaneseq
    %v4484 = vshrl.u32 %v4483, 7
    %v4485 = vsub.s32 2, %v4484
    %v4486 = vrot.slane %v4473, %v4485
    %v4487 = vlaneseq
    %v4488 = vshrl.u32 %v4487, 7
    %v4489 = vsub.s32 3, %v4488
    %v4490 = vrot.slane %v4473, %v4489
    %v4491 = vlaneseq
    %v4492 = vshrl.u32 %v4491, 7
    %v4493 = vsub.s32 4, %v4492
    %v4494 = vrot.slane %v4473, %v4493
    %v4495 = vlaneseq
    %v4496 = vshrl.u32 %v4495, 7
    %v4497 = vsub.s32 5, %v4496
    %v4498 = vrot.slane %v4473, %v4497
    %v4499 = vlaneseq
    %v4500 = vshrl.u32 %v4499, 7
    %v4501 = vsub.s32 6, %v4500
    %v4502 = vrot.slane %v4473, %v4501
    %v4503 = vlaneseq
    %v4504 = vshrl.u32 %v4503, 7
    %v4505 = vsub.s32 7, %v4504
    %v4506 = vrot.slane %v4473, %v4505
    %v4515 = vmul.f32 %v4457, %v4478
    %v4516 = vmul.f32 %v4458, %v4482
    %v4517 = vmul.f32 %v4459, %v4486
    %v4518 = vmul.f32 %v4460, %v4490
    %v4519 = vmul.f32 %v4461, %v4494
    %v4520 = vmul.f32 %v4462, %v4498
    %v4521 = vmul.f32 %v4463, %v4502
    %v4522 = vmul.f32 %v4464, %v4506
    %v4523 = vmul.f32 %v4465, %v4478
    %v4524 = vmul.f32 %v4466, %v4482
    %v4525 = vmul.f32 %v4467, %v4486
    %v4526 = vmul.f32 %v4468, %v4490
    %v4527 = vmul.f32 %v4469, %v4494
    %v4528 = vmul.f32 %v4470, %v4498
    %v4529 = vmul.f32 %v4471, %v4502
    %v4530 = vmul.f32 %v4472, %v4506
    %v4531 = vadd.f32 %v4515, %v4516
    %v4532 = vadd.f32 %v4531, %v4517
    %v4533 = vadd.f32 %v4532, %v4518
    %v4534 = vadd.f32 %v4533, %v4519
    %v4535 = vadd.f32 %v4534, %v4520
    %v4536 = vadd.f32 %v4535, %v4521
    %v4537 = vadd.f32 %v4536, %v4522
    %4538 = vadd.xlane.f32.xlu0 %v4537
    %v4539 = vpop.xlane.xlu0 %4538
    %v4540 = vadd.f32 %v4523, %v4524
    %v4541 = vadd.f32 %v4540, %v4525
    %v4542 = vadd.f32 %v4541, %v4526
    %v4543 = vadd.f32 %v4542, %v4527
    %v4544 = vadd.f32 %v4543, %v4528
    %v4545 = vadd.f32 %v4544, %v4529
    %v4546 = vadd.f32 %v4545, %v4530
    %4547 = vadd.xlane.f32.xlu0 %v4546
    %v4548 = vpop.xlane.xlu0 %4547
    %v4549 = vld [vmem:[#allocation2] sm:$0x1]
    %v4551 = vlaneseq
    %v4552 = vshrl.u32 %v4551, 7
    %v4553 = vsub.s32 0, %v4552
    %v4554 = vrot.slane %v4549, %v4553
    %v4556 = vadd.f32 %v4539, %v4554
    %v4557 = vadd.f32 %v4548, %v4554
    %vm4558 = vcmp.ge.f32.partialorder %v4556, 0.0
    %vm4559 = vcmp.ge.f32.partialorder %v4557, 0.0
    %v4560 = vmul.f32 %v4556, 0.01
    %v4561 = vmul.f32 %v4557, 0.01
    %v4562 = vsel %vm4558, %v4556, %v4560
    %v4563 = vsel %vm4559, %v4557, %v4561
    %vm4564 = vcmask 7168
    %4565 = vst.msk [vmem:[%s7] sm:$0xff] %vm4564, %v4562
    %4566 = vst.msk [vmem:[%s7 + $0x8] sm:$0xff] %vm4564, %v4563
    // Predicated region
    $region54: #{tpu_custom_call.1} parent=1 // pred_check
      _
    $region55: #{tpu_custom_call.1} parent=1 // pred_check_branch
      %4568 = sbr.rel (0) target = $region57
    $region56: #{tpu_custom_call.1} parent=1 // pred_region
      _
    $region57: #{tpu_custom_call.1} parent=1 // pred_fallthru
      _
    // Predicated region
    $region58: #{tpu_custom_call.1} parent=1 // pred_check
      _
    $region59: #{tpu_custom_call.1} parent=1 // pred_check_branch
      %4570 = sbr.rel (0) target = $region61
    $region60: #{tpu_custom_call.1} parent=1 // pred_region
      _
    $region61: #{tpu_custom_call.1} parent=1 // pred_fallthru
      _
    %4571 = vsyncpa [#allocation4], 1
    %4572 = vsyncpa [#allocation6], 1
    %4573 = vsyncpa [#allocation9], 1
    %4574 = vsyncpa [#allocation12], 1

</llo_original>
